<compile_context>
chip_gen: v6e
topology: v6e:2x2x1
jax: 0.10.0
libtpu: 0.0.40
codegen_flags: <defaults>
</compile_context>

<pallas_src>
import functools

import jax
import jax.numpy as jnp
from jax import lax
from jax.experimental import pallas as pl
from jax.experimental.pallas import tpu as pltpu


def _deform_gnn_kernel(H, W,
                       feat_ref, point_ref, adj_ref, mask_ref,
                       w0_ref, b0_ref, wres_ref, bres_ref,
                       wl_ref, bl_ref, wfc_ref, bfc_ref,
                       out_ref):
    f32 = jnp.float32
    Bb, C, HW = feat_ref.shape
    N = adj_ref.shape[1]
    BN = Bb * N
    n_res = wres_ref.shape[0] // 2

    # ---------------- bilinear sampling (interpolated_sum), (N, C) oriented ----------
    pt = point_ref[...]                                   # (Bb, N, 2) f32, coords in [0,1]
    X = pt[..., 0:1]                                      # (Bb, N, 1)
    Y = pt[..., 1:2]

    # torch: Xs = X * grid[1] (= W), Ys = Y * grid[0] (= H); weights computed from the
    # UNCLAMPED X0/X1/Y0/Y1, indices clamped afterwards (duplicate cells accumulate).
    Xs = X * float(W)
    X0 = jnp.floor(Xs)
    wx0 = (X0 + 1.0) - Xs
    wx1 = Xs - X0
    x0 = jnp.clip(X0, 0.0, float(W - 1)).astype(jnp.int32)
    x1 = jnp.clip(X0 + 1.0, 0.0, float(W - 1)).astype(jnp.int32)

    Ys = Y * float(H)
    Y0 = jnp.floor(Ys)
    wy0 = (Y0 + 1.0) - Ys
    wy1 = Ys - Y0
    y0 = jnp.clip(Y0, 0.0, float(H - 1)).astype(jnp.int32)
    y1 = jnp.clip(Y0 + 1.0, 0.0, float(H - 1)).astype(jnp.int32)

    w00 = wx0 * wy0                                       # (Bb, N, 1) bilinear weights
    w01 = wx0 * wy1
    w10 = wx1 * wy0
    w11 = wx1 * wy1
    n00 = x0 + y0 * W                                     # clamped flat corner ids
    n01 = x0 + y1 * W
    n10 = x1 + y0 * W
    n11 = x1 + y1 * W

    # Sampling matrix built directly lane-dense on the flat HW axis: no (H,W,N) outer
    # product, no reshape relayout, no post-matmul transpose.  Exactly reproduces
    # torch's 4-gather weighted sum (clamp-collapsed corners sum their weights).
    hw = lax.broadcasted_iota(jnp.int32, (Bb, N, HW), 2)
    S = (jnp.where(hw == n00, w00, 0.0) + jnp.where(hw == n01, w01, 0.0) +
         jnp.where(hw == n10, w10, 0.0) + jnp.where(hw == n11, w11, 0.0))

    # MXU contraction over HW with M = N rows (not C): (Bb,N,HW) x (Bb,C,HW) -> (Bb,N,C)
    Xc = jnp.einsum('bns,bcs->bnc', S.astype(feat_ref.dtype), feat_ref[...],
                    preferred_element_type=f32).reshape(BN, C)
    Xp = pt.reshape(BN, 2)
    Mk = mask_ref[...].reshape(BN, 1)

    # ---------------- per-batch normalized adjacency (no block-diagonal) -------------
    if Bb == 1:
        adj2 = adj_ref[0]                                 # (N, N)

        def bmm_adj(h2):
            return jnp.dot(adj2, h2, preferred_element_type=f32)
    else:
        adj3 = adj_ref[...]                               # (Bb, N, N)

        def bmm_adj(h2):
            D = h2.shape[-1]
            ah = jnp.einsum('bij,bjd->bid', adj3, h2.reshape(Bb, N, D),
                            preferred_element_type=f32)
            return ah.reshape(BN, D)

    # fused GraphConvolution: fc1(h) + fc2(A h) == [h | A h] @ [w1; w2] + (b1 + b2)
    def gconv(h2, wf, bf):
        hc = jnp.concatenate([h2, bmm_adj(h2)], axis=-1)
        return jnp.dot(hc, wf, preferred_element_type=f32) + bf

    # ---------------- GCN --------------------------------------------------------------
    x_in = jnp.concatenate([Xc, Xp], axis=-1)             # (BN, C+2)  (== torch.cat)
    h = gconv(x_in, w0_ref[...], b0_ref[...])             # gcn_0 -> (BN, state_dim)

    for i in range(n_res):                                # GraphResConvolution blocks
        o1 = jnp.maximum(gconv(h, wres_ref[2 * i], bres_ref[2 * i:2 * i + 1, :]), 0.0)
        o2 = gconv(o1, wres_ref[2 * i + 1], bres_ref[2 * i + 1:2 * i + 2, :])
        h = jnp.maximum(o2 + h, 0.0)

    h = gconv(h, wl_ref[...], bl_ref[...])                # gcn_last -> (BN, 32)
    gcn_pred = jnp.dot(h, wfc_ref[...], preferred_element_type=f32) + bfc_ref[...]

    # ---------------- deform + laplacian energy ----------------------------------------
    delta = gcn_pred[:, :2] * Mk
    poly = Xp + delta
    # (poly - A poly) - (point - A point) == delta - A delta      (exact simplification)
    diff = delta - bmm_adj(delta)
    # torch: ((lap2 - lap1)**2 + 1e-10).sum(-1).sqrt()   (eps added per component)
    e = jnp.sqrt(jnp.sum(diff * diff + 1e-10, axis=-1, keepdims=True))      # (BN, 1)

    # packed store [poly(2) | gcn_pred(out_dim) | energy(1)]; tiny vs the feat DMA.
    out_ref[...] = jnp.concatenate([poly, gcn_pred, e], axis=1)


def init_params(key, feature_channel_num, state_dim, out_dim, layer_num):
    """All nn.Linear layers: weight ~ N(0, 0.01), bias = 0 (DeformGNN.__init__)."""
    feat_dim = feature_channel_num + 2
    n_res = layer_num - 2
    ks = jax.random.split(key, 4)
    w0 = 0.01 * jax.random.normal(ks[0], (2, feat_dim, state_dim), jnp.float32)
    b0 = jnp.zeros((2, state_dim), jnp.float32)
    wres = 0.01 * jax.random.normal(ks[1], (4 * n_res, state_dim, state_dim), jnp.float32)
    bres = jnp.zeros((4 * n_res, state_dim), jnp.float32)
    wl = 0.01 * jax.random.normal(ks[2], (2, state_dim, 32), jnp.float32)
    bl = jnp.zeros((2, 32), jnp.float32)
    wfc = 0.01 * jax.random.normal(ks[3], (32, out_dim), jnp.float32)
    bfc = jnp.zeros((1, out_dim), jnp.float32)
    return (w0, b0, wres, bres, wl, bl, wfc, bfc)


def _tpu_vmem_capacity():
    try:
        return int(pltpu.get_tpu_info().vmem_capacity_bytes)
    except Exception:
        return 64 * 1024 * 1024            # assume the smallest generation (v7x) if unknown


def _choose_block_batch(B, N, C, HW, state_dim, K, feat_itemsize, weight_bytes):
    """Largest Bb that (a) divides B, (b) keeps >= 2 grid steps when B >= 2 (so both
    v7x TensorCores get work), (c) keeps stacked blocks sublane-aligned, and (d) fits a
    chip-aware VMEM budget covering double-buffered tiles, resident weights, the
    in-kernel sampling matrix and the GCN activations."""
    vmem_cap = _tpu_vmem_capacity()
    budget = int(vmem_cap * 0.55)

    def rup(x, m):
        return -(-x // m) * m

    def estimate(bb):
        bn = bb * N
        feat_t = bb * rup(C, 8) * rup(HW, 128) * feat_itemsize
        point_t = bb * rup(N, 8) * 128 * 4
        adj_t = bb * rup(N, 8) * rup(N, 128) * 4
        mask_t = bb * rup(N, 8) * 128 * 4
        out_t = rup(bn, 8) * rup(K, 128) * 4
        dbuf = 2 * (feat_t + point_t + adj_t + mask_t + out_t) + 2 * weight_bytes
        samp = 4 * bb * rup(N, 8) * rup(HW, 128) * 4          # S + iota/compare temps
        acts = 10 * rup(bn, 8) * rup(max(2 * state_dim, C + 2, 128), 128) * 4
        return dbuf + samp + acts

    bb_cap = B if B < 2 else max(1, B // 2)
    best = 1
    for bb in range(1, bb_cap + 1):
        if B % bb:
            continue
        if bb != B and (bb * N) % 8:
            continue                        # keep stacked blocks sublane-aligned
        if estimate(bb) > budget:
            break
        best = bb
        if bb * N >= 512:                   # two full 256-row MXU tiles is plenty
            break

    vmem_limit = min(int(vmem_cap * 0.85), 100 * 1024 * 1024)
    vmem_limit = min(max(vmem_limit, estimate(best) + (4 << 20)), int(vmem_cap * 0.95))
    return best, int(vmem_limit)


def deform_gnn_forward(features, base_point, base_normalized_point_adjacent,
                       base_point_mask, params, feat_dtype=jnp.bfloat16):
    B, C, H, W = features.shape
    N = base_point.shape[1]
    HW = H * W
    w0, b0, wres, bres, wl, bl, wfc, bfc = params
    out_dim = wfc.shape[1]
    state_dim = wl.shape[1]
    n_res = wres.shape[0] // 4
    K = 3 + out_dim                         # poly(2) + gcn_pred(out_dim) + energy(1)

    # fused GraphConvolution weights (wrapper-side, costs nothing in the kernel):
    # [w_fc1; w_fc2] stacked rows, biases summed.
    w0f = w0.reshape(2 * (C + 2), state_dim)
    b0f = jnp.sum(b0, axis=0, keepdims=True)
    wresf = wres.reshape(2 * n_res, 2 * state_dim, state_dim)
    bresf = jnp.sum(bres.reshape(2 * n_res, 2, state_dim), axis=1)
    wlf = wl.reshape(2 * state_dim, 32)
    blf = jnp.sum(bl, axis=0, keepdims=True)

    # layout glue: channels-first feature map with lane-dense HW (free NCHW reshape);
    # bf16 halves the dominant per-step DMA + VMEM tile (free when fused upstream).
    feat = features.reshape(B, C, HW).astype(feat_dtype)
    point = base_point.astype(jnp.float32)                       # (B, N, 2)
    adj = base_normalized_point_adjacent.astype(jnp.float32)     # (B, N, N)
    mask = base_point_mask.reshape(B, N, 1).astype(jnp.float32)  # == squeeze(1)

    weight_bytes = 4 * int(w0f.size + b0f.size + wresf.size + bresf.size +
                           wlf.size + blf.size + wfc.size + bfc.size)
    Bb, vmem_limit = _choose_block_batch(B, N, C, HW, state_dim, K,
                                         jnp.dtype(feat_dtype).itemsize, weight_bytes)
    grid = (B // Bb,)

    kernel = functools.partial(_deform_gnn_kernel, H, W)

    grid_spec = pltpu.PrefetchScalarGridSpec(
        num_scalar_prefetch=0,
        grid=grid,
        in_specs=[
            pl.BlockSpec((Bb, C, HW), lambda g: (g, 0, 0)),      # feature map (lane-dense HW)
            pl.BlockSpec((Bb, N, 2), lambda g: (g, 0, 0)),       # points
            pl.BlockSpec((Bb, N, N), lambda g: (g, 0, 0)),       # normalized adjacency
            pl.BlockSpec((Bb, N, 1), lambda g: (g, 0, 0)),       # point mask
            # grid-invariant fused weights: constant index maps -> DMA'd once
            pl.BlockSpec(w0f.shape, lambda g: (0, 0)),
            pl.BlockSpec(b0f.shape, lambda g: (0, 0)),
            pl.BlockSpec(wresf.shape, lambda g: (0, 0, 0)),
            pl.BlockSpec(bresf.shape, lambda g: (0, 0)),
            pl.BlockSpec(wlf.shape, lambda g: (0, 0)),
            pl.BlockSpec(blf.shape, lambda g: (0, 0)),
            pl.BlockSpec(wfc.shape, lambda g: (0, 0)),
            pl.BlockSpec(bfc.shape, lambda g: (0, 0)),
        ],
        out_specs=pl.BlockSpec((Bb * N, K), lambda g: (g, 0)),
    )

    out = pl.pallas_call(
        kernel,
        out_shape=jax.ShapeDtypeStruct((B * N, K), jnp.float32),
        grid_spec=grid_spec,
        compiler_params=pltpu.CompilerParams(
            dimension_semantics=("parallel",),   # no cross-batch carry; >=2 steps for 2 TCs
            vmem_limit_bytes=vmem_limit,         # chip-aware (64 MiB on v7x, 128 on v5e/v6e)
        ),
    )(feat, point, adj, mask, w0f, b0f, wresf, bresf, wlf, blf, wfc, bfc)

    pred_points = out[:, 0:2].reshape(B, N, 2)
    gcn_pred_points = out[:, 2:2 + out_dim].reshape(B, N, out_dim)
    laplacian_energy = jnp.mean(out[:, 2 + out_dim].reshape(B, N), axis=-1)   # (B,)

    return {
        "laplacian_energy": laplacian_energy,
        "pred_points": pred_points,
        "gcn_pred_points": gcn_pred_points,
    }


if __name__ == "__main__":
    key = jax.random.PRNGKey(0)
    B, C, H, W = 2, 4, 16, 16          # small feature map (feature_channel_num = 4)
    N = 8                              # number of deformable points
    state_dim, out_dim, layer_num = 32, 2, 8

    k1, k2, k3, k4, kp = jax.random.split(key, 5)
    features = jax.random.normal(k1, (B, C, H, W), jnp.float32)
    base_point = jax.random.uniform(k2, (B, N, 2), jnp.float32)              # in [0, 1]
    adj_raw = jax.random.uniform(k3, (B, N, N), jnp.float32) + 0.1
    base_normalized_point_adjacent = adj_raw / jnp.sum(adj_raw, axis=-1, keepdims=True)
    base_point_mask = (jax.random.uniform(k4, (B, 1, N, 1)) > 0.2).astype(jnp.float32)

    params = init_params(kp, feature_channel_num=C, state_dim=state_dim,
                         out_dim=out_dim, layer_num=layer_num)

    out = deform_gnn_forward(features, base_point, base_normalized_point_adjacent,
                             base_point_mask, params)
    jax.tree_util.tree_map(jax.block_until_ready, out)

    assert out["pred_points"].shape == (B, N, 2)
    assert out["gcn_pred_points"].shape == (B, N, out_dim)
    assert out["laplacian_energy"].shape == (B,)
    print("KERNEL_OK")
</pallas_src>

<mosaic_0001>
module attributes {stable_mosaic.version = 11 : i64} {
  func.func @_deform_gnn_kernel(%arg0: i32, %arg1: memref<1x4x256xbf16, #tpu.memory_space<vmem>>, %arg2: memref<1x8x2xf32, #tpu.memory_space<vmem>>, %arg3: memref<1x8x8xf32, #tpu.memory_space<vmem>>, %arg4: memref<1x8x1xf32, #tpu.memory_space<vmem>>, %arg5: memref<12x32xf32, #tpu.memory_space<vmem>>, %arg6: memref<1x32xf32, #tpu.memory_space<vmem>>, %arg7: memref<12x64x32xf32, #tpu.memory_space<vmem>>, %arg8: memref<12x32xf32, #tpu.memory_space<vmem>>, %arg9: memref<64x32xf32, #tpu.memory_space<vmem>>, %arg10: memref<1x32xf32, #tpu.memory_space<vmem>>, %arg11: memref<32x2xf32, #tpu.memory_space<vmem>>, %arg12: memref<1x2xf32, #tpu.memory_space<vmem>>, %arg13: memref<8x5xf32, #tpu.memory_space<vmem>>) attributes {dimension_semantics = [#tpu.dimension_semantics<parallel>], iteration_bounds = array<i64: 2>, scalar_prefetch = 0 : i64, scratch_operands = 0 : i64, tpu.core_type = #tpu.core_type<tc>, window_params = [{transform_indices = @transform_0, window_bounds = array<i64: 1, 4, 256>}, {transform_indices = @transform_1, window_bounds = array<i64: 1, 8, 2>}, {transform_indices = @transform_2, window_bounds = array<i64: 1, 8, 8>}, {transform_indices = @transform_3, window_bounds = array<i64: 1, 8, 1>}, {pipeline_mode = #tpu.pipeline_mode<synchronous>, transform_indices = @transform_4, window_bounds = array<i64: 12, 32>}, {pipeline_mode = #tpu.pipeline_mode<synchronous>, transform_indices = @transform_5, window_bounds = array<i64: 1, 32>}, {pipeline_mode = #tpu.pipeline_mode<synchronous>, transform_indices = @transform_6, window_bounds = array<i64: 12, 64, 32>}, {pipeline_mode = #tpu.pipeline_mode<synchronous>, transform_indices = @transform_7, window_bounds = array<i64: 12, 32>}, {pipeline_mode = #tpu.pipeline_mode<synchronous>, transform_indices = @transform_8, window_bounds = array<i64: 64, 32>}, {pipeline_mode = #tpu.pipeline_mode<synchronous>, transform_indices = @transform_9, window_bounds = array<i64: 1, 32>}, {pipeline_mode = #tpu.pipeline_mode<synchronous>, transform_indices = @transform_10, window_bounds = array<i64: 32, 2>}, {pipeline_mode = #tpu.pipeline_mode<synchronous>, transform_indices = @transform_11, window_bounds = array<i64: 1, 2>}, {transform_indices = @transform_12, window_bounds = array<i64: 8, 5>}]} {
    %c0 = arith.constant 0 : index
    %c0_0 = arith.constant 0 : index
    %c0_1 = arith.constant 0 : index
    %0 = vector.load %arg2[%c0, %c0_0, %c0_1] : memref<1x8x2xf32, #tpu.memory_space<vmem>>, vector<1x8x2xf32>
    %1 = vector.extract_strided_slice %0 {offsets = [0, 0, 0], sizes = [1, 8, 1], strides = [1, 1, 1]} : vector<1x8x2xf32> to vector<1x8x1xf32>
    %2 = vector.extract_strided_slice %0 {offsets = [0, 0, 1], sizes = [1, 8, 1], strides = [1, 1, 1]} : vector<1x8x2xf32> to vector<1x8x1xf32>
    %cst = arith.constant 1.600000e+01 : f32
    %3 = vector.broadcast %cst : f32 to vector<1x8x1xf32>
    %4 = arith.mulf %1, %3 : vector<1x8x1xf32>
    %5 = math.floor %4 : vector<1x8x1xf32>
    %cst_2 = arith.constant 1.000000e+00 : f32
    %6 = vector.broadcast %cst_2 : f32 to vector<1x8x1xf32>
    %7 = arith.addf %5, %6 : vector<1x8x1xf32>
    %8 = arith.subf %7, %4 : vector<1x8x1xf32>
    %9 = arith.subf %4, %5 : vector<1x8x1xf32>
    %cst_3 = arith.constant 0.000000e+00 : f32
    %cst_4 = arith.constant 1.500000e+01 : f32
    %10 = vector.broadcast %cst_3 : f32 to vector<1x8x1xf32>
    %11 = arith.maximumf %10, %5 : vector<1x8x1xf32>
    %12 = vector.broadcast %cst_4 : f32 to vector<1x8x1xf32>
    %13 = arith.minimumf %12, %11 : vector<1x8x1xf32>
    %14 = arith.fptosi %13 : vector<1x8x1xf32> to vector<1x8x1xi32>
    %cst_5 = arith.constant 1.000000e+00 : f32
    %15 = vector.broadcast %cst_5 : f32 to vector<1x8x1xf32>
    %16 = arith.addf %5, %15 : vector<1x8x1xf32>
    %cst_6 = arith.constant 0.000000e+00 : f32
    %cst_7 = arith.constant 1.500000e+01 : f32
    %17 = vector.broadcast %cst_6 : f32 to vector<1x8x1xf32>
    %18 = arith.maximumf %17, %16 : vector<1x8x1xf32>
    %19 = vector.broadcast %cst_7 : f32 to vector<1x8x1xf32>
    %20 = arith.minimumf %19, %18 : vector<1x8x1xf32>
    %21 = arith.fptosi %20 : vector<1x8x1xf32> to vector<1x8x1xi32>
    %cst_8 = arith.constant 1.600000e+01 : f32
    %22 = vector.broadcast %cst_8 : f32 to vector<1x8x1xf32>
    %23 = arith.mulf %2, %22 : vector<1x8x1xf32>
    %24 = math.floor %23 : vector<1x8x1xf32>
    %cst_9 = arith.constant 1.000000e+00 : f32
    %25 = vector.broadcast %cst_9 : f32 to vector<1x8x1xf32>
    %26 = arith.addf %24, %25 : vector<1x8x1xf32>
    %27 = arith.subf %26, %23 : vector<1x8x1xf32>
    %28 = arith.subf %23, %24 : vector<1x8x1xf32>
    %cst_10 = arith.constant 0.000000e+00 : f32
    %cst_11 = arith.constant 1.500000e+01 : f32
    %29 = vector.broadcast %cst_10 : f32 to vector<1x8x1xf32>
    %30 = arith.maximumf %29, %24 : vector<1x8x1xf32>
    %31 = vector.broadcast %cst_11 : f32 to vector<1x8x1xf32>
    %32 = arith.minimumf %31, %30 : vector<1x8x1xf32>
    %33 = arith.fptosi %32 : vector<1x8x1xf32> to vector<1x8x1xi32>
    %cst_12 = arith.constant 1.000000e+00 : f32
    %34 = vector.broadcast %cst_12 : f32 to vector<1x8x1xf32>
    %35 = arith.addf %24, %34 : vector<1x8x1xf32>
    %cst_13 = arith.constant 0.000000e+00 : f32
    %cst_14 = arith.constant 1.500000e+01 : f32
    %36 = vector.broadcast %cst_13 : f32 to vector<1x8x1xf32>
    %37 = arith.maximumf %36, %35 : vector<1x8x1xf32>
    %38 = vector.broadcast %cst_14 : f32 to vector<1x8x1xf32>
    %39 = arith.minimumf %38, %37 : vector<1x8x1xf32>
    %40 = arith.fptosi %39 : vector<1x8x1xf32> to vector<1x8x1xi32>
    %41 = arith.mulf %8, %27 : vector<1x8x1xf32>
    %42 = arith.mulf %8, %28 : vector<1x8x1xf32>
    %43 = arith.mulf %9, %27 : vector<1x8x1xf32>
    %44 = arith.mulf %9, %28 : vector<1x8x1xf32>
    %c16_i32 = arith.constant 16 : i32
    %45 = vector.broadcast %c16_i32 : i32 to vector<1x8x1xi32>
    %46 = arith.muli %33, %45 : vector<1x8x1xi32>
    %47 = arith.addi %14, %46 : vector<1x8x1xi32>
    %c16_i32_15 = arith.constant 16 : i32
    %48 = vector.broadcast %c16_i32_15 : i32 to vector<1x8x1xi32>
    %49 = arith.muli %40, %48 : vector<1x8x1xi32>
    %50 = arith.addi %14, %49 : vector<1x8x1xi32>
    %c16_i32_16 = arith.constant 16 : i32
    %51 = vector.broadcast %c16_i32_16 : i32 to vector<1x8x1xi32>
    %52 = arith.muli %33, %51 : vector<1x8x1xi32>
    %53 = arith.addi %21, %52 : vector<1x8x1xi32>
    %c16_i32_17 = arith.constant 16 : i32
    %54 = vector.broadcast %c16_i32_17 : i32 to vector<1x8x1xi32>
    %55 = arith.muli %40, %54 : vector<1x8x1xi32>
    %56 = arith.addi %21, %55 : vector<1x8x1xi32>
    %57 = tpu.iota {dimensions = array<i32: 2>} : vector<1x8x256xi32>
    %58 = vector.broadcast %47 : vector<1x8x1xi32> to vector<1x8x256xi32>
    %59 = arith.cmpi eq, %57, %58 : vector<1x8x256xi32>
    %cst_18 = arith.constant 0.000000e+00 : f32
    %60 = vector.shape_cast %41 : vector<1x8x1xf32> to vector<1x8x1xf32>
    %61 = vector.broadcast %60 : vector<1x8x1xf32> to vector<1x8x256xf32>
    %62 = vector.broadcast %cst_18 : f32 to vector<1x8x256xf32>
    %63 = arith.select %59, %61, %62 : vector<1x8x256xi1>, vector<1x8x256xf32>
    %64 = vector.broadcast %50 : vector<1x8x1xi32> to vector<1x8x256xi32>
    %65 = arith.cmpi eq, %57, %64 : vector<1x8x256xi32>
    %cst_19 = arith.constant 0.000000e+00 : f32
    %66 = vector.shape_cast %42 : vector<1x8x1xf32> to vector<1x8x1xf32>
    %67 = vector.broadcast %66 : vector<1x8x1xf32> to vector<1x8x256xf32>
    %68 = vector.broadcast %cst_19 : f32 to vector<1x8x256xf32>
    %69 = arith.select %65, %67, %68 : vector<1x8x256xi1>, vector<1x8x256xf32>
    %70 = arith.addf %63, %69 : vector<1x8x256xf32>
    %71 = vector.broadcast %53 : vector<1x8x1xi32> to vector<1x8x256xi32>
    %72 = arith.cmpi eq, %57, %71 : vector<1x8x256xi32>
    %cst_20 = arith.constant 0.000000e+00 : f32
    %73 = vector.shape_cast %43 : vector<1x8x1xf32> to vector<1x8x1xf32>
    %74 = vector.broadcast %73 : vector<1x8x1xf32> to vector<1x8x256xf32>
    %75 = vector.broadcast %cst_20 : f32 to vector<1x8x256xf32>
    %76 = arith.select %72, %74, %75 : vector<1x8x256xi1>, vector<1x8x256xf32>
    %77 = arith.addf %70, %76 : vector<1x8x256xf32>
    %78 = vector.broadcast %56 : vector<1x8x1xi32> to vector<1x8x256xi32>
    %79 = arith.cmpi eq, %57, %78 : vector<1x8x256xi32>
    %cst_21 = arith.constant 0.000000e+00 : f32
    %80 = vector.shape_cast %44 : vector<1x8x1xf32> to vector<1x8x1xf32>
    %81 = vector.broadcast %80 : vector<1x8x1xf32> to vector<1x8x256xf32>
    %82 = vector.broadcast %cst_21 : f32 to vector<1x8x256xf32>
    %83 = arith.select %79, %81, %82 : vector<1x8x256xi1>, vector<1x8x256xf32>
    %84 = arith.addf %77, %83 : vector<1x8x256xf32>
    %85 = arith.truncf %84 : vector<1x8x256xf32> to vector<1x8x256xbf16>
    %c0_22 = arith.constant 0 : index
    %c0_23 = arith.constant 0 : index
    %c0_24 = arith.constant 0 : index
    %86 = vector.load %arg1[%c0_22, %c0_23, %c0_24] : memref<1x4x256xbf16, #tpu.memory_space<vmem>>, vector<1x4x256xbf16>
    "tpu.trace_start"() <{level = 10 : i32, message = "bns,bcs->bnc"}> : () -> ()
    %cst_25 = arith.constant dense<0.000000e+00> : vector<1x8x4xf32>
    %87 = tpu.matmul %85, %86, %cst_25 {dimension_numbers = #tpu.dot_dimension_numbers<[2], [2], [1], [1], [0, 0, 0, 1, 1, 1], [0], [0]>} : vector<1x8x256xbf16>, vector<1x4x256xbf16>, vector<1x8x4xf32> -> vector<1x8x4xf32>
    "tpu.trace_stop"() : () -> ()
    %88 = vector.shape_cast %87 : vector<1x8x4xf32> to vector<8x4xf32>
    %89 = vector.shape_cast %0 : vector<1x8x2xf32> to vector<8x2xf32>
    %c0_26 = arith.constant 0 : index
    %c0_27 = arith.constant 0 : index
    %c0_28 = arith.constant 0 : index
    %90 = vector.load %arg4[%c0_26, %c0_27, %c0_28] : memref<1x8x1xf32, #tpu.memory_space<vmem>>, vector<1x8x1xf32>
    %91 = vector.shape_cast %90 : vector<1x8x1xf32> to vector<8x1xf32>
    %c0_29 = arith.constant 0 : index
    %c0_30 = arith.constant 0 : index
    %c0_31 = arith.constant 0 : index
    %92 = vector.load %arg3[%c0_29, %c0_30, %c0_31] : memref<1x8x8xf32, #tpu.memory_space<vmem>>, vector<1x8x8xf32>
    %93 = vector.shape_cast %92 : vector<1x8x8xf32> to vector<8x8xf32>
    %94 = tpu.concatenate %88, %89 in 1 : vector<8x4xf32>, vector<8x2xf32> -> vector<8x6xf32>
    %c0_32 = arith.constant 0 : index
    %c0_33 = arith.constant 0 : index
    %95 = vector.load %arg5[%c0_32, %c0_33] : memref<12x32xf32, #tpu.memory_space<vmem>>, vector<12x32xf32>
    %c0_34 = arith.constant 0 : index
    %c0_35 = arith.constant 0 : index
    %96 = vector.load %arg6[%c0_34, %c0_35] : memref<1x32xf32, #tpu.memory_space<vmem>>, vector<1x32xf32>
    %cst_36 = arith.constant dense<0.000000e+00> : vector<8x6xf32>
    %97 = tpu.matmul %93, %94, %cst_36 {dimension_numbers = #tpu.dot_dimension_numbers<[1], [0], [0], [1], [0, 0, 1, 1], [], []>} : vector<8x8xf32>, vector<8x6xf32>, vector<8x6xf32> -> vector<8x6xf32>
    %98 = tpu.concatenate %94, %97 in 1 : vector<8x6xf32>, vector<8x6xf32> -> vector<8x12xf32>
    %cst_37 = arith.constant dense<0.000000e+00> : vector<8x32xf32>
    %99 = tpu.matmul %98, %95, %cst_37 {dimension_numbers = #tpu.dot_dimension_numbers<[1], [0], [0], [1], [0, 0, 1, 1], [], []>} : vector<8x12xf32>, vector<12x32xf32>, vector<8x32xf32> -> vector<8x32xf32>
    %100 = vector.broadcast %96 : vector<1x32xf32> to vector<8x32xf32>
    %101 = arith.addf %99, %100 : vector<8x32xf32>
    %c0_38 = arith.constant 0 : index
    %c0_39 = arith.constant 0 : index
    %c0_40 = arith.constant 0 : index
    %102 = vector.load %arg7[%c0_38, %c0_39, %c0_40] : memref<12x64x32xf32, #tpu.memory_space<vmem>>, vector<1x64x32xf32>
    %103 = vector.shape_cast %102 : vector<1x64x32xf32> to vector<64x32xf32>
    %c0_41 = arith.constant 0 : index
    %c0_42 = arith.constant 0 : index
    %104 = vector.load %arg8[%c0_41, %c0_42] : memref<12x32xf32, #tpu.memory_space<vmem>>, vector<1x32xf32>
    %cst_43 = arith.constant dense<0.000000e+00> : vector<8x32xf32>
    %105 = tpu.matmul %93, %101, %cst_43 {dimension_numbers = #tpu.dot_dimension_numbers<[1], [0], [0], [1], [0, 0, 1, 1], [], []>} : vector<8x8xf32>, vector<8x32xf32>, vector<8x32xf32> -> vector<8x32xf32>
    %106 = tpu.concatenate %101, %105 in 1 : vector<8x32xf32>, vector<8x32xf32> -> vector<8x64xf32>
    %cst_44 = arith.constant dense<0.000000e+00> : vector<8x32xf32>
    %107 = tpu.matmul %106, %103, %cst_44 {dimension_numbers = #tpu.dot_dimension_numbers<[1], [0], [0], [1], [0, 0, 1, 1], [], []>} : vector<8x64xf32>, vector<64x32xf32>, vector<8x32xf32> -> vector<8x32xf32>
    %108 = vector.broadcast %104 : vector<1x32xf32> to vector<8x32xf32>
    %109 = arith.addf %107, %108 : vector<8x32xf32>
    %cst_45 = arith.constant 0.000000e+00 : f32
    %110 = vector.broadcast %cst_45 : f32 to vector<8x32xf32>
    %111 = arith.maximumf %109, %110 : vector<8x32xf32>
    %c1 = arith.constant 1 : index
    %c0_46 = arith.constant 0 : index
    %c0_47 = arith.constant 0 : index
    %112 = vector.load %arg7[%c1, %c0_46, %c0_47] : memref<12x64x32xf32, #tpu.memory_space<vmem>>, vector<1x64x32xf32>
    %113 = vector.shape_cast %112 : vector<1x64x32xf32> to vector<64x32xf32>
    %c1_48 = arith.constant 1 : index
    %c0_49 = arith.constant 0 : index
    %114 = vector.load %arg8[%c1_48, %c0_49] : memref<12x32xf32, #tpu.memory_space<vmem>>, vector<1x32xf32>
    %cst_50 = arith.constant dense<0.000000e+00> : vector<8x32xf32>
    %115 = tpu.matmul %93, %111, %cst_50 {dimension_numbers = #tpu.dot_dimension_numbers<[1], [0], [0], [1], [0, 0, 1, 1], [], []>} : vector<8x8xf32>, vector<8x32xf32>, vector<8x32xf32> -> vector<8x32xf32>
    %116 = tpu.concatenate %111, %115 in 1 : vector<8x32xf32>, vector<8x32xf32> -> vector<8x64xf32>
    %cst_51 = arith.constant dense<0.000000e+00> : vector<8x32xf32>
    %117 = tpu.matmul %116, %113, %cst_51 {dimension_numbers = #tpu.dot_dimension_numbers<[1], [0], [0], [1], [0, 0, 1, 1], [], []>} : vector<8x64xf32>, vector<64x32xf32>, vector<8x32xf32> -> vector<8x32xf32>
    %118 = vector.broadcast %114 : vector<1x32xf32> to vector<8x32xf32>
    %119 = arith.addf %117, %118 : vector<8x32xf32>
    %120 = arith.addf %119, %101 : vector<8x32xf32>
    %cst_52 = arith.constant 0.000000e+00 : f32
    %121 = vector.broadcast %cst_52 : f32 to vector<8x32xf32>
    %122 = arith.maximumf %120, %121 : vector<8x32xf32>
    %c2 = arith.constant 2 : index
    %c0_53 = arith.constant 0 : index
    %c0_54 = arith.constant 0 : index
    %123 = vector.load %arg7[%c2, %c0_53, %c0_54] : memref<12x64x32xf32, #tpu.memory_space<vmem>>, vector<1x64x32xf32>
    %124 = vector.shape_cast %123 : vector<1x64x32xf32> to vector<64x32xf32>
    %c2_55 = arith.constant 2 : index
    %c0_56 = arith.constant 0 : index
    %125 = vector.load %arg8[%c2_55, %c0_56] : memref<12x32xf32, #tpu.memory_space<vmem>>, vector<1x32xf32>
    %cst_57 = arith.constant dense<0.000000e+00> : vector<8x32xf32>
    %126 = tpu.matmul %93, %122, %cst_57 {dimension_numbers = #tpu.dot_dimension_numbers<[1], [0], [0], [1], [0, 0, 1, 1], [], []>} : vector<8x8xf32>, vector<8x32xf32>, vector<8x32xf32> -> vector<8x32xf32>
    %127 = tpu.concatenate %122, %126 in 1 : vector<8x32xf32>, vector<8x32xf32> -> vector<8x64xf32>
    %cst_58 = arith.constant dense<0.000000e+00> : vector<8x32xf32>
    %128 = tpu.matmul %127, %124, %cst_58 {dimension_numbers = #tpu.dot_dimension_numbers<[1], [0], [0], [1], [0, 0, 1, 1], [], []>} : vector<8x64xf32>, vector<64x32xf32>, vector<8x32xf32> -> vector<8x32xf32>
    %129 = vector.broadcast %125 : vector<1x32xf32> to vector<8x32xf32>
    %130 = arith.addf %128, %129 : vector<8x32xf32>
    %cst_59 = arith.constant 0.000000e+00 : f32
    %131 = vector.broadcast %cst_59 : f32 to vector<8x32xf32>
    %132 = arith.maximumf %130, %131 : vector<8x32xf32>
    %c3 = arith.constant 3 : index
    %c0_60 = arith.constant 0 : index
    %c0_61 = arith.constant 0 : index
    %133 = vector.load %arg7[%c3, %c0_60, %c0_61] : memref<12x64x32xf32, #tpu.memory_space<vmem>>, vector<1x64x32xf32>
    %134 = vector.shape_cast %133 : vector<1x64x32xf32> to vector<64x32xf32>
    %c3_62 = arith.constant 3 : index
    %c0_63 = arith.constant 0 : index
    %135 = vector.load %arg8[%c3_62, %c0_63] : memref<12x32xf32, #tpu.memory_space<vmem>>, vector<1x32xf32>
    %cst_64 = arith.constant dense<0.000000e+00> : vector<8x32xf32>
    %136 = tpu.matmul %93, %132, %cst_64 {dimension_numbers = #tpu.dot_dimension_numbers<[1], [0], [0], [1], [0, 0, 1, 1], [], []>} : vector<8x8xf32>, vector<8x32xf32>, vector<8x32xf32> -> vector<8x32xf32>
    %137 = tpu.concatenate %132, %136 in 1 : vector<8x32xf32>, vector<8x32xf32> -> vector<8x64xf32>
    %cst_65 = arith.constant dense<0.000000e+00> : vector<8x32xf32>
    %138 = tpu.matmul %137, %134, %cst_65 {dimension_numbers = #tpu.dot_dimension_numbers<[1], [0], [0], [1], [0, 0, 1, 1], [], []>} : vector<8x64xf32>, vector<64x32xf32>, vector<8x32xf32> -> vector<8x32xf32>
    %139 = vector.broadcast %135 : vector<1x32xf32> to vector<8x32xf32>
    %140 = arith.addf %138, %139 : vector<8x32xf32>
    %141 = arith.addf %140, %122 : vector<8x32xf32>
    %cst_66 = arith.constant 0.000000e+00 : f32
    %142 = vector.broadcast %cst_66 : f32 to vector<8x32xf32>
    %143 = arith.maximumf %141, %142 : vector<8x32xf32>
    %c4 = arith.constant 4 : index
    %c0_67 = arith.constant 0 : index
    %c0_68 = arith.constant 0 : index
    %144 = vector.load %arg7[%c4, %c0_67, %c0_68] : memref<12x64x32xf32, #tpu.memory_space<vmem>>, vector<1x64x32xf32>
    %145 = vector.shape_cast %144 : vector<1x64x32xf32> to vector<64x32xf32>
    %c4_69 = arith.constant 4 : index
    %c0_70 = arith.constant 0 : index
    %146 = vector.load %arg8[%c4_69, %c0_70] : memref<12x32xf32, #tpu.memory_space<vmem>>, vector<1x32xf32>
    %cst_71 = arith.constant dense<0.000000e+00> : vector<8x32xf32>
    %147 = tpu.matmul %93, %143, %cst_71 {dimension_numbers = #tpu.dot_dimension_numbers<[1], [0], [0], [1], [0, 0, 1, 1], [], []>} : vector<8x8xf32>, vector<8x32xf32>, vector<8x32xf32> -> vector<8x32xf32>
    %148 = tpu.concatenate %143, %147 in 1 : vector<8x32xf32>, vector<8x32xf32> -> vector<8x64xf32>
    %cst_72 = arith.constant dense<0.000000e+00> : vector<8x32xf32>
    %149 = tpu.matmul %148, %145, %cst_72 {dimension_numbers = #tpu.dot_dimension_numbers<[1], [0], [0], [1], [0, 0, 1, 1], [], []>} : vector<8x64xf32>, vector<64x32xf32>, vector<8x32xf32> -> vector<8x32xf32>
    %150 = vector.broadcast %146 : vector<1x32xf32> to vector<8x32xf32>
    %151 = arith.addf %149, %150 : vector<8x32xf32>
    %cst_73 = arith.constant 0.000000e+00 : f32
    %152 = vector.broadcast %cst_73 : f32 to vector<8x32xf32>
    %153 = arith.maximumf %151, %152 : vector<8x32xf32>
    %c5 = arith.constant 5 : index
    %c0_74 = arith.constant 0 : index
    %c0_75 = arith.constant 0 : index
    %154 = vector.load %arg7[%c5, %c0_74, %c0_75] : memref<12x64x32xf32, #tpu.memory_space<vmem>>, vector<1x64x32xf32>
    %155 = vector.shape_cast %154 : vector<1x64x32xf32> to vector<64x32xf32>
    %c5_76 = arith.constant 5 : index
    %c0_77 = arith.constant 0 : index
    %156 = vector.load %arg8[%c5_76, %c0_77] : memref<12x32xf32, #tpu.memory_space<vmem>>, vector<1x32xf32>
    %cst_78 = arith.constant dense<0.000000e+00> : vector<8x32xf32>
    %157 = tpu.matmul %93, %153, %cst_78 {dimension_numbers = #tpu.dot_dimension_numbers<[1], [0], [0], [1], [0, 0, 1, 1], [], []>} : vector<8x8xf32>, vector<8x32xf32>, vector<8x32xf32> -> vector<8x32xf32>
    %158 = tpu.concatenate %153, %157 in 1 : vector<8x32xf32>, vector<8x32xf32> -> vector<8x64xf32>
    %cst_79 = arith.constant dense<0.000000e+00> : vector<8x32xf32>
    %159 = tpu.matmul %158, %155, %cst_79 {dimension_numbers = #tpu.dot_dimension_numbers<[1], [0], [0], [1], [0, 0, 1, 1], [], []>} : vector<8x64xf32>, vector<64x32xf32>, vector<8x32xf32> -> vector<8x32xf32>
    %160 = vector.broadcast %156 : vector<1x32xf32> to vector<8x32xf32>
    %161 = arith.addf %159, %160 : vector<8x32xf32>
    %162 = arith.addf %161, %143 : vector<8x32xf32>
    %cst_80 = arith.constant 0.000000e+00 : f32
    %163 = vector.broadcast %cst_80 : f32 to vector<8x32xf32>
    %164 = arith.maximumf %162, %163 : vector<8x32xf32>
    %c6 = arith.constant 6 : index
    %c0_81 = arith.constant 0 : index
    %c0_82 = arith.constant 0 : index
    %165 = vector.load %arg7[%c6, %c0_81, %c0_82] : memref<12x64x32xf32, #tpu.memory_space<vmem>>, vector<1x64x32xf32>
    %166 = vector.shape_cast %165 : vector<1x64x32xf32> to vector<64x32xf32>
    %c6_83 = arith.constant 6 : index
    %c0_84 = arith.constant 0 : index
    %167 = vector.load %arg8[%c6_83, %c0_84] : memref<12x32xf32, #tpu.memory_space<vmem>>, vector<1x32xf32>
    %cst_85 = arith.constant dense<0.000000e+00> : vector<8x32xf32>
    %168 = tpu.matmul %93, %164, %cst_85 {dimension_numbers = #tpu.dot_dimension_numbers<[1], [0], [0], [1], [0, 0, 1, 1], [], []>} : vector<8x8xf32>, vector<8x32xf32>, vector<8x32xf32> -> vector<8x32xf32>
    %169 = tpu.concatenate %164, %168 in 1 : vector<8x32xf32>, vector<8x32xf32> -> vector<8x64xf32>
    %cst_86 = arith.constant dense<0.000000e+00> : vector<8x32xf32>
    %170 = tpu.matmul %169, %166, %cst_86 {dimension_numbers = #tpu.dot_dimension_numbers<[1], [0], [0], [1], [0, 0, 1, 1], [], []>} : vector<8x64xf32>, vector<64x32xf32>, vector<8x32xf32> -> vector<8x32xf32>
    %171 = vector.broadcast %167 : vector<1x32xf32> to vector<8x32xf32>
    %172 = arith.addf %170, %171 : vector<8x32xf32>
    %cst_87 = arith.constant 0.000000e+00 : f32
    %173 = vector.broadcast %cst_87 : f32 to vector<8x32xf32>
    %174 = arith.maximumf %172, %173 : vector<8x32xf32>
    %c7 = arith.constant 7 : index
    %c0_88 = arith.constant 0 : index
    %c0_89 = arith.constant 0 : index
    %175 = vector.load %arg7[%c7, %c0_88, %c0_89] : memref<12x64x32xf32, #tpu.memory_space<vmem>>, vector<1x64x32xf32>
    %176 = vector.shape_cast %175 : vector<1x64x32xf32> to vector<64x32xf32>
    %c7_90 = arith.constant 7 : index
    %c0_91 = arith.constant 0 : index
    %177 = vector.load %arg8[%c7_90, %c0_91] : memref<12x32xf32, #tpu.memory_space<vmem>>, vector<1x32xf32>
    %cst_92 = arith.constant dense<0.000000e+00> : vector<8x32xf32>
    %178 = tpu.matmul %93, %174, %cst_92 {dimension_numbers = #tpu.dot_dimension_numbers<[1], [0], [0], [1], [0, 0, 1, 1], [], []>} : vector<8x8xf32>, vector<8x32xf32>, vector<8x32xf32> -> vector<8x32xf32>
    %179 = tpu.concatenate %174, %178 in 1 : vector<8x32xf32>, vector<8x32xf32> -> vector<8x64xf32>
    %cst_93 = arith.constant dense<0.000000e+00> : vector<8x32xf32>
    %180 = tpu.matmul %179, %176, %cst_93 {dimension_numbers = #tpu.dot_dimension_numbers<[1], [0], [0], [1], [0, 0, 1, 1], [], []>} : vector<8x64xf32>, vector<64x32xf32>, vector<8x32xf32> -> vector<8x32xf32>
    %181 = vector.broadcast %177 : vector<1x32xf32> to vector<8x32xf32>
    %182 = arith.addf %180, %181 : vector<8x32xf32>
    %183 = arith.addf %182, %164 : vector<8x32xf32>
    %cst_94 = arith.constant 0.000000e+00 : f32
    %184 = vector.broadcast %cst_94 : f32 to vector<8x32xf32>
    %185 = arith.maximumf %183, %184 : vector<8x32xf32>
    %c8 = arith.constant 8 : index
    %c0_95 = arith.constant 0 : index
    %c0_96 = arith.constant 0 : index
    %186 = vector.load %arg7[%c8, %c0_95, %c0_96] : memref<12x64x32xf32, #tpu.memory_space<vmem>>, vector<1x64x32xf32>
    %187 = vector.shape_cast %186 : vector<1x64x32xf32> to vector<64x32xf32>
    %c8_97 = arith.constant 8 : index
    %c0_98 = arith.constant 0 : index
    %188 = vector.load %arg8[%c8_97, %c0_98] : memref<12x32xf32, #tpu.memory_space<vmem>>, vector<1x32xf32>
    %cst_99 = arith.constant dense<0.000000e+00> : vector<8x32xf32>
    %189 = tpu.matmul %93, %185, %cst_99 {dimension_numbers = #tpu.dot_dimension_numbers<[1], [0], [0], [1], [0, 0, 1, 1], [], []>} : vector<8x8xf32>, vector<8x32xf32>, vector<8x32xf32> -> vector<8x32xf32>
    %190 = tpu.concatenate %185, %189 in 1 : vector<8x32xf32>, vector<8x32xf32> -> vector<8x64xf32>
    %cst_100 = arith.constant dense<0.000000e+00> : vector<8x32xf32>
    %191 = tpu.matmul %190, %187, %cst_100 {dimension_numbers = #tpu.dot_dimension_numbers<[1], [0], [0], [1], [0, 0, 1, 1], [], []>} : vector<8x64xf32>, vector<64x32xf32>, vector<8x32xf32> -> vector<8x32xf32>
    %192 = vector.broadcast %188 : vector<1x32xf32> to vector<8x32xf32>
    %193 = arith.addf %191, %192 : vector<8x32xf32>
    %cst_101 = arith.constant 0.000000e+00 : f32
    %194 = vector.broadcast %cst_101 : f32 to vector<8x32xf32>
    %195 = arith.maximumf %193, %194 : vector<8x32xf32>
    %c9 = arith.constant 9 : index
    %c0_102 = arith.constant 0 : index
    %c0_103 = arith.constant 0 : index
    %196 = vector.load %arg7[%c9, %c0_102, %c0_103] : memref<12x64x32xf32, #tpu.memory_space<vmem>>, vector<1x64x32xf32>
    %197 = vector.shape_cast %196 : vector<1x64x32xf32> to vector<64x32xf32>
    %c9_104 = arith.constant 9 : index
    %c0_105 = arith.constant 0 : index
    %198 = vector.load %arg8[%c9_104, %c0_105] : memref<12x32xf32, #tpu.memory_space<vmem>>, vector<1x32xf32>
    %cst_106 = arith.constant dense<0.000000e+00> : vector<8x32xf32>
    %199 = tpu.matmul %93, %195, %cst_106 {dimension_numbers = #tpu.dot_dimension_numbers<[1], [0], [0], [1], [0, 0, 1, 1], [], []>} : vector<8x8xf32>, vector<8x32xf32>, vector<8x32xf32> -> vector<8x32xf32>
    %200 = tpu.concatenate %195, %199 in 1 : vector<8x32xf32>, vector<8x32xf32> -> vector<8x64xf32>
    %cst_107 = arith.constant dense<0.000000e+00> : vector<8x32xf32>
    %201 = tpu.matmul %200, %197, %cst_107 {dimension_numbers = #tpu.dot_dimension_numbers<[1], [0], [0], [1], [0, 0, 1, 1], [], []>} : vector<8x64xf32>, vector<64x32xf32>, vector<8x32xf32> -> vector<8x32xf32>
    %202 = vector.broadcast %198 : vector<1x32xf32> to vector<8x32xf32>
    %203 = arith.addf %201, %202 : vector<8x32xf32>
    %204 = arith.addf %203, %185 : vector<8x32xf32>
    %cst_108 = arith.constant 0.000000e+00 : f32
    %205 = vector.broadcast %cst_108 : f32 to vector<8x32xf32>
    %206 = arith.maximumf %204, %205 : vector<8x32xf32>
    %c10 = arith.constant 10 : index
    %c0_109 = arith.constant 0 : index
    %c0_110 = arith.constant 0 : index
    %207 = vector.load %arg7[%c10, %c0_109, %c0_110] : memref<12x64x32xf32, #tpu.memory_space<vmem>>, vector<1x64x32xf32>
    %208 = vector.shape_cast %207 : vector<1x64x32xf32> to vector<64x32xf32>
    %c10_111 = arith.constant 10 : index
    %c0_112 = arith.constant 0 : index
    %209 = vector.load %arg8[%c10_111, %c0_112] : memref<12x32xf32, #tpu.memory_space<vmem>>, vector<1x32xf32>
    %cst_113 = arith.constant dense<0.000000e+00> : vector<8x32xf32>
    %210 = tpu.matmul %93, %206, %cst_113 {dimension_numbers = #tpu.dot_dimension_numbers<[1], [0], [0], [1], [0, 0, 1, 1], [], []>} : vector<8x8xf32>, vector<8x32xf32>, vector<8x32xf32> -> vector<8x32xf32>
    %211 = tpu.concatenate %206, %210 in 1 : vector<8x32xf32>, vector<8x32xf32> -> vector<8x64xf32>
    %cst_114 = arith.constant dense<0.000000e+00> : vector<8x32xf32>
    %212 = tpu.matmul %211, %208, %cst_114 {dimension_numbers = #tpu.dot_dimension_numbers<[1], [0], [0], [1], [0, 0, 1, 1], [], []>} : vector<8x64xf32>, vector<64x32xf32>, vector<8x32xf32> -> vector<8x32xf32>
    %213 = vector.broadcast %209 : vector<1x32xf32> to vector<8x32xf32>
    %214 = arith.addf %212, %213 : vector<8x32xf32>
    %cst_115 = arith.constant 0.000000e+00 : f32
    %215 = vector.broadcast %cst_115 : f32 to vector<8x32xf32>
    %216 = arith.maximumf %214, %215 : vector<8x32xf32>
    %c11 = arith.constant 11 : index
    %c0_116 = arith.constant 0 : index
    %c0_117 = arith.constant 0 : index
    %217 = vector.load %arg7[%c11, %c0_116, %c0_117] : memref<12x64x32xf32, #tpu.memory_space<vmem>>, vector<1x64x32xf32>
    %218 = vector.shape_cast %217 : vector<1x64x32xf32> to vector<64x32xf32>
    %c11_118 = arith.constant 11 : index
    %c0_119 = arith.constant 0 : index
    %219 = vector.load %arg8[%c11_118, %c0_119] : memref<12x32xf32, #tpu.memory_space<vmem>>, vector<1x32xf32>
    %cst_120 = arith.constant dense<0.000000e+00> : vector<8x32xf32>
    %220 = tpu.matmul %93, %216, %cst_120 {dimension_numbers = #tpu.dot_dimension_numbers<[1], [0], [0], [1], [0, 0, 1, 1], [], []>} : vector<8x8xf32>, vector<8x32xf32>, vector<8x32xf32> -> vector<8x32xf32>
    %221 = tpu.concatenate %216, %220 in 1 : vector<8x32xf32>, vector<8x32xf32> -> vector<8x64xf32>
    %cst_121 = arith.constant dense<0.000000e+00> : vector<8x32xf32>
    %222 = tpu.matmul %221, %218, %cst_121 {dimension_numbers = #tpu.dot_dimension_numbers<[1], [0], [0], [1], [0, 0, 1, 1], [], []>} : vector<8x64xf32>, vector<64x32xf32>, vector<8x32xf32> -> vector<8x32xf32>
    %223 = vector.broadcast %219 : vector<1x32xf32> to vector<8x32xf32>
    %224 = arith.addf %222, %223 : vector<8x32xf32>
    %225 = arith.addf %224, %206 : vector<8x32xf32>
    %cst_122 = arith.constant 0.000000e+00 : f32
    %226 = vector.broadcast %cst_122 : f32 to vector<8x32xf32>
    %227 = arith.maximumf %225, %226 : vector<8x32xf32>
    %c0_123 = arith.constant 0 : index
    %c0_124 = arith.constant 0 : index
    %228 = vector.load %arg9[%c0_123, %c0_124] : memref<64x32xf32, #tpu.memory_space<vmem>>, vector<64x32xf32>
    %c0_125 = arith.constant 0 : index
    %c0_126 = arith.constant 0 : index
    %229 = vector.load %arg10[%c0_125, %c0_126] : memref<1x32xf32, #tpu.memory_space<vmem>>, vector<1x32xf32>
    %cst_127 = arith.constant dense<0.000000e+00> : vector<8x32xf32>
    %230 = tpu.matmul %93, %227, %cst_127 {dimension_numbers = #tpu.dot_dimension_numbers<[1], [0], [0], [1], [0, 0, 1, 1], [], []>} : vector<8x8xf32>, vector<8x32xf32>, vector<8x32xf32> -> vector<8x32xf32>
    %231 = tpu.concatenate %227, %230 in 1 : vector<8x32xf32>, vector<8x32xf32> -> vector<8x64xf32>
    %cst_128 = arith.constant dense<0.000000e+00> : vector<8x32xf32>
    %232 = tpu.matmul %231, %228, %cst_128 {dimension_numbers = #tpu.dot_dimension_numbers<[1], [0], [0], [1], [0, 0, 1, 1], [], []>} : vector<8x64xf32>, vector<64x32xf32>, vector<8x32xf32> -> vector<8x32xf32>
    %233 = vector.broadcast %229 : vector<1x32xf32> to vector<8x32xf32>
    %234 = arith.addf %232, %233 : vector<8x32xf32>
    %c0_129 = arith.constant 0 : index
    %c0_130 = arith.constant 0 : index
    %235 = vector.load %arg11[%c0_129, %c0_130] : memref<32x2xf32, #tpu.memory_space<vmem>>, vector<32x2xf32>
    %cst_131 = arith.constant dense<0.000000e+00> : vector<8x2xf32>
    %236 = tpu.matmul %234, %235, %cst_131 {dimension_numbers = #tpu.dot_dimension_numbers<[1], [0], [0], [1], [0, 0, 1, 1], [], []>} : vector<8x32xf32>, vector<32x2xf32>, vector<8x2xf32> -> vector<8x2xf32>
    %c0_132 = arith.constant 0 : index
    %c0_133 = arith.constant 0 : index
    %237 = vector.load %arg12[%c0_132, %c0_133] : memref<1x2xf32, #tpu.memory_space<vmem>>, vector<1x2xf32>
    %238 = vector.broadcast %237 : vector<1x2xf32> to vector<8x2xf32>
    %239 = arith.addf %236, %238 : vector<8x2xf32>
    %240 = vector.broadcast %91 : vector<8x1xf32> to vector<8x2xf32>
    %241 = arith.mulf %239, %240 : vector<8x2xf32>
    %242 = arith.addf %89, %241 : vector<8x2xf32>
    %cst_134 = arith.constant dense<0.000000e+00> : vector<8x2xf32>
    %243 = tpu.matmul %93, %241, %cst_134 {dimension_numbers = #tpu.dot_dimension_numbers<[1], [0], [0], [1], [0, 0, 1, 1], [], []>} : vector<8x8xf32>, vector<8x2xf32>, vector<8x2xf32> -> vector<8x2xf32>
    %244 = arith.subf %241, %243 : vector<8x2xf32>
    %245 = arith.mulf %244, %244 : vector<8x2xf32>
    %cst_135 = arith.constant 1.000000e-10 : f32
    %246 = vector.broadcast %cst_135 : f32 to vector<8x2xf32>
    %247 = arith.addf %245, %246 : vector<8x2xf32>
    %cst_136 = arith.constant dense<0.000000e+00> : vector<8xf32>
    %248 = vector.multi_reduction <add>, %247, %cst_136 [1] : vector<8x2xf32> to vector<8xf32>
    %249 = vector.shape_cast %248 : vector<8xf32> to vector<8x1xf32>
    %250 = math.sqrt %249 : vector<8x1xf32>
    %251 = tpu.concatenate %242, %239, %250 in 1 : vector<8x2xf32>, vector<8x2xf32>, vector<8x1xf32> -> vector<8x5xf32>
    %c0_137 = arith.constant 0 : index
    %c0_138 = arith.constant 0 : index
    %252 = vector.load %arg13[%c0_137, %c0_138] : memref<8x5xf32, #tpu.memory_space<vmem>>, vector<8x5xf32>
    tpu.vector_store %arg13[%c0_137, %c0_138], %251 {strides = array<i32>} : memref<8x5xf32, #tpu.memory_space<vmem>>, vector<8x5xf32>,
    return
  }
  func.func @transform_0(%arg0: i32) -> (i32, i32, i32) {
    %c0_i32 = arith.constant 0 : i32
    %c0_i32_0 = arith.constant 0 : i32
    %c0_i32_1 = arith.constant 0 : i32
    return %arg0, %c0_i32, %c0_i32_0 : i32, i32, i32
  }
  func.func @transform_1(%arg0: i32) -> (i32, i32, i32) {
    %c0_i32 = arith.constant 0 : i32
    %c0_i32_0 = arith.constant 0 : i32
    %c0_i32_1 = arith.constant 0 : i32
    return %arg0, %c0_i32, %c0_i32_0 : i32, i32, i32
  }
  func.func @transform_2(%arg0: i32) -> (i32, i32, i32) {
    %c0_i32 = arith.constant 0 : i32
    %c0_i32_0 = arith.constant 0 : i32
    %c0_i32_1 = arith.constant 0 : i32
    return %arg0, %c0_i32, %c0_i32_0 : i32, i32, i32
  }
  func.func @transform_3(%arg0: i32) -> (i32, i32, i32) {
    %c0_i32 = arith.constant 0 : i32
    %c0_i32_0 = arith.constant 0 : i32
    %c0_i32_1 = arith.constant 0 : i32
    return %arg0, %c0_i32, %c0_i32_0 : i32, i32, i32
  }
  func.func @transform_4(%arg0: i32) -> (i32, i32) {
    %c0_i32 = arith.constant 0 : i32
    %c0_i32_0 = arith.constant 0 : i32
    %c0_i32_1 = arith.constant 0 : i32
    return %c0_i32, %c0_i32_0 : i32, i32
  }
  func.func @transform_5(%arg0: i32) -> (i32, i32) {
    %c0_i32 = arith.constant 0 : i32
    %c0_i32_0 = arith.constant 0 : i32
    %c0_i32_1 = arith.constant 0 : i32
    return %c0_i32, %c0_i32_0 : i32, i32
  }
  func.func @transform_6(%arg0: i32) -> (i32, i32, i32) {
    %c0_i32 = arith.constant 0 : i32
    %c0_i32_0 = arith.constant 0 : i32
    %c0_i32_1 = arith.constant 0 : i32
    %c0_i32_2 = arith.constant 0 : i32
    return %c0_i32, %c0_i32_0, %c0_i32_1 : i32, i32, i32
  }
  func.func @transform_7(%arg0: i32) -> (i32, i32) {
    %c0_i32 = arith.constant 0 : i32
    %c0_i32_0 = arith.constant 0 : i32
    %c0_i32_1 = arith.constant 0 : i32
    return %c0_i32, %c0_i32_0 : i32, i32
  }
  func.func @transform_8(%arg0: i32) -> (i32, i32) {
    %c0_i32 = arith.constant 0 : i32
    %c0_i32_0 = arith.constant 0 : i32
    %c0_i32_1 = arith.constant 0 : i32
    return %c0_i32, %c0_i32_0 : i32, i32
  }
  func.func @transform_9(%arg0: i32) -> (i32, i32) {
    %c0_i32 = arith.constant 0 : i32
    %c0_i32_0 = arith.constant 0 : i32
    %c0_i32_1 = arith.constant 0 : i32
    return %c0_i32, %c0_i32_0 : i32, i32
  }
  func.func @transform_10(%arg0: i32) -> (i32, i32) {
    %c0_i32 = arith.constant 0 : i32
    %c0_i32_0 = arith.constant 0 : i32
    %c0_i32_1 = arith.constant 0 : i32
    return %c0_i32, %c0_i32_0 : i32, i32
  }
  func.func @transform_11(%arg0: i32) -> (i32, i32) {
    %c0_i32 = arith.constant 0 : i32
    %c0_i32_0 = arith.constant 0 : i32
    %c0_i32_1 = arith.constant 0 : i32
    return %c0_i32, %c0_i32_0 : i32, i32
  }
  func.func @transform_12(%arg0: i32) -> (i32, i32) {
    %c0_i32 = arith.constant 0 : i32
    %c0_i32_0 = arith.constant 0 : i32
    return %arg0, %c0_i32 : i32, i32
  }
}

</mosaic_0001>

<llo_original>
// kernel: tpu_custom_call.1
$region0: #{tpu_custom_call.1}
  #allocation0 [shape = 'u32[]', space=smem, size = 0x4, offset = 0x4, fixed_abs, tag = 'smem constant byte address 0x4 - core index']
  #allocation1 [shape = 'u32[144,128]{1,0:T(1,128)}', space=vmem, size = 0x12000, scoped, tag = 'internal scratch']
  %s0 = inlined_call_operand.vmem [shape: bf16[2,4,256], index: 0, kind: input, shape index: {}]
  %s1 = inlined_call_operand.vmem [shape: f32[2,8,2], index: 1, kind: input, shape index: {}]
  %s2 = inlined_call_operand.vmem [shape: f32[2,8,8], index: 2, kind: input, shape index: {}]
  %s3 = inlined_call_operand.vmem [shape: f32[2,8,1], index: 3, kind: input, shape index: {}]
  %s4 = inlined_call_operand.vmem [shape: f32[12,32], index: 4, kind: input, shape index: {}]
  %s5 = inlined_call_operand.vmem [shape: f32[1,32], index: 5, kind: input, shape index: {}]
  %s6 = inlined_call_operand.vmem [shape: f32[12,64,32], index: 6, kind: input, shape index: {}]
  %s7 = inlined_call_operand.vmem [shape: f32[12,32], index: 7, kind: input, shape index: {}]
  %s8 = inlined_call_operand.vmem [shape: f32[64,32], index: 8, kind: input, shape index: {}]
  %s9 = inlined_call_operand.vmem [shape: f32[1,32], index: 9, kind: input, shape index: {}]
  %s10 = inlined_call_operand.vmem [shape: f32[32,2], index: 10, kind: input, shape index: {}]
  %s11 = inlined_call_operand.vmem [shape: f32[1,2], index: 11, kind: input, shape index: {}]
  %s12 = inlined_call_operand.vmem [shape: f32[16,5], index: 12, kind: output, shape index: {}]
  %s13 = sld [smem:[#allocation0]]
  $region81: #{tpu_custom_call.1} parent=0
    _
  %s15 = ssub.s32 1, %s13
  %s16 = scalar_select 0, %s15, %s13
  loop: start=0, step=1, limit=4
  $region2: #{tpu_custom_call.1} parent=0 // loop_pre_header
    _
  $region3: #{tpu_custom_call.1} parent=0 // loop_header
    %s18 = sphi 0, %s22
    %p19 = scmp.ge.s32.totalorder %s18, 4
    %s28 = sphi 0, %s30
    %s31 = sphi 0, %s28
    %s32 = sphi 0, %s31
    %s48 = sphi 0, %s32
    %s54 = sphi 0, %s56
    %s57 = sphi 0, %s54
    %s58 = sphi 0, %s57
    %s74 = sphi 0, %s58
    %s80 = sphi 0, %s82
    %s83 = sphi 0, %s80
    %s84 = sphi 0, %s83
    %s100 = sphi 0, %s84
    %s106 = sphi 0, %s108
    %s109 = sphi 0, %s106
    %s110 = sphi 0, %s109
    %s126 = sphi 0, %s110
    %s130 = sphi 0, %s130
    %s132 = sphi 0, %s130
    %s133 = sphi 0, %s132
    %s147 = sphi 0, %s133
    %s151 = sphi 0, %s151
    %s153 = sphi 0, %s151
    %s154 = sphi 0, %s153
    %s168 = sphi 0, %s154
    %s172 = sphi 0, %s172
    %s174 = sphi 0, %s172
    %s175 = sphi 0, %s174
    %s189 = sphi 0, %s175
    %s193 = sphi 0, %s193
    %s195 = sphi 0, %s193
    %s196 = sphi 0, %s195
    %s210 = sphi 0, %s196
    %s214 = sphi 0, %s214
    %s216 = sphi 0, %s214
    %s217 = sphi 0, %s216
    %s231 = sphi 0, %s217
    %s235 = sphi 0, %s235
    %s237 = sphi 0, %s235
    %s238 = sphi 0, %s237
    %s252 = sphi 0, %s238
    %s256 = sphi 0, %s256
    %s258 = sphi 0, %s256
    %s259 = sphi 0, %s258
    %s273 = sphi 0, %s259
    %s277 = sphi 0, %s277
    %s279 = sphi 0, %s277
    %s280 = sphi 0, %s279
    %s294 = sphi 0, %s280
    %s300 = sphi 0, %s302
    %s303 = sphi 0, %s300
    %s304 = sphi 0, %s303
    %s320 = sphi 0, %s304
  $region4: #{tpu_custom_call.1} parent=0 // loop_header_branch
    %21 = sbr.rel (%p19) target = $region8
  $region5: #{tpu_custom_call.1} parent=0 // loop_body
    %s23 = ssub.s32 %s18, 1
    %s24 = ssub.s32 %s18, 2
    %s25 = sadd.s32 %s18, 1
    %s26 = ssub.s32 %s18, %s25
    %p27 = scmp.eq.s32.totalorder %s26, 0
    %s29 = sadd.s32 %s28, 1
    %s30 = scalar_select %p27, %s28, %s29
    %p33 = pneg %p27
    %p34 = scmp.eq.s32.totalorder %s18, 1
    %p35 = por %p33, %p34
    %p36 = scmp.ne.s32.totalorder %s28, %s31
    %p37 = scmp.eq.s32.totalorder %s18, 0
    %p38 = por %p36, %p37
    %p39 = scmp.ne.s32.totalorder %s28, %s31
    %p40 = scmp.eq.s32.totalorder %s23, 1
    %p41 = por %p39, %p40
    %p42 = scmp.ne.s32.totalorder %s31, %s32
    %p43 = scmp.eq.s32.totalorder %s23, 0
    %p44 = por %p42, %p43
    %p45 = scmp.ne.s32.totalorder %s31, %s32
    %p46 = scmp.eq.s32.totalorder %s24, 1
    %p47 = por %p45, %p46
    %p49 = scmp.ne.s32.totalorder %s32, %s48
    %p50 = scmp.eq.s32.totalorder %s24, 0
    %p51 = por %p49, %p50
    %s52 = ssub.s32 %s18, %s25
    %p53 = scmp.eq.s32.totalorder %s52, 0
    %s55 = sadd.s32 %s54, 1
    %s56 = scalar_select %p53, %s54, %s55
    %p59 = pneg %p53
    %p60 = scmp.eq.s32.totalorder %s18, 1
    %p61 = por %p59, %p60
    %p62 = scmp.ne.s32.totalorder %s54, %s57
    %p63 = scmp.eq.s32.totalorder %s18, 0
    %p64 = por %p62, %p63
    %p65 = scmp.ne.s32.totalorder %s54, %s57
    %p66 = scmp.eq.s32.totalorder %s23, 1
    %p67 = por %p65, %p66
    %p68 = scmp.ne.s32.totalorder %s57, %s58
    %p69 = scmp.eq.s32.totalorder %s23, 0
    %p70 = por %p68, %p69
    %p71 = scmp.ne.s32.totalorder %s57, %s58
    %p72 = scmp.eq.s32.totalorder %s24, 1
    %p73 = por %p71, %p72
    %p75 = scmp.ne.s32.totalorder %s58, %s74
    %p76 = scmp.eq.s32.totalorder %s24, 0
    %p77 = por %p75, %p76
    %s78 = ssub.s32 %s18, %s25
    %p79 = scmp.eq.s32.totalorder %s78, 0
    %s81 = sadd.s32 %s80, 1
    %s82 = scalar_select %p79, %s80, %s81
    %p85 = pneg %p79
    %p86 = scmp.eq.s32.totalorder %s18, 1
    %p87 = por %p85, %p86
    %p88 = scmp.ne.s32.totalorder %s80, %s83
    %p89 = scmp.eq.s32.totalorder %s18, 0
    %p90 = por %p88, %p89
    %p91 = scmp.ne.s32.totalorder %s80, %s83
    %p92 = scmp.eq.s32.totalorder %s23, 1
    %p93 = por %p91, %p92
    %p94 = scmp.ne.s32.totalorder %s83, %s84
    %p95 = scmp.eq.s32.totalorder %s23, 0
    %p96 = por %p94, %p95
    %p97 = scmp.ne.s32.totalorder %s83, %s84
    %p98 = scmp.eq.s32.totalorder %s24, 1
    %p99 = por %p97, %p98
    %p101 = scmp.ne.s32.totalorder %s84, %s100
    %p102 = scmp.eq.s32.totalorder %s24, 0
    %p103 = por %p101, %p102
    %s104 = ssub.s32 %s18, %s25
    %p105 = scmp.eq.s32.totalorder %s104, 0
    %s107 = sadd.s32 %s106, 1
    %s108 = scalar_select %p105, %s106, %s107
    %p111 = pneg %p105
    %p112 = scmp.eq.s32.totalorder %s18, 1
    %p113 = por %p111, %p112
    %p114 = scmp.ne.s32.totalorder %s106, %s109
    %p115 = scmp.eq.s32.totalorder %s18, 0
    %p116 = por %p114, %p115
    %p117 = scmp.ne.s32.totalorder %s106, %s109
    %p118 = scmp.eq.s32.totalorder %s23, 1
    %p119 = por %p117, %p118
    %p120 = scmp.ne.s32.totalorder %s109, %s110
    %p121 = scmp.eq.s32.totalorder %s23, 0
    %p122 = por %p120, %p121
    %p123 = scmp.ne.s32.totalorder %s109, %s110
    %p124 = scmp.eq.s32.totalorder %s24, 1
    %p125 = por %p123, %p124
    %p127 = scmp.ne.s32.totalorder %s110, %s126
    %p128 = scmp.eq.s32.totalorder %s24, 0
    %p129 = por %p127, %p128
    %s131 = sadd.s32 %s130, 1
    %p134 = scmp.eq.s32.totalorder %s18, 1
    %p135 = scmp.ne.s32.totalorder %s130, %s132
    %p136 = scmp.eq.s32.totalorder %s18, 0
    %p137 = por %p135, %p136
    %p138 = scmp.ne.s32.totalorder %s130, %s132
    %p139 = scmp.eq.s32.totalorder %s23, 1
    %p140 = por %p138, %p139
    %p141 = scmp.ne.s32.totalorder %s132, %s133
    %p142 = scmp.eq.s32.totalorder %s23, 0
    %p143 = por %p141, %p142
    %p144 = scmp.ne.s32.totalorder %s132, %s133
    %p145 = scmp.eq.s32.totalorder %s24, 1
    %p146 = por %p144, %p145
    %p148 = scmp.ne.s32.totalorder %s133, %s147
    %p149 = scmp.eq.s32.totalorder %s24, 0
    %p150 = por %p148, %p149
    %s152 = sadd.s32 %s151, 1
    %p155 = scmp.eq.s32.totalorder %s18, 1
    %p156 = scmp.ne.s32.totalorder %s151, %s153
    %p157 = scmp.eq.s32.totalorder %s18, 0
    %p158 = por %p156, %p157
    %p159 = scmp.ne.s32.totalorder %s151, %s153
    %p160 = scmp.eq.s32.totalorder %s23, 1
    %p161 = por %p159, %p160
    %p162 = scmp.ne.s32.totalorder %s153, %s154
    %p163 = scmp.eq.s32.totalorder %s23, 0
    %p164 = por %p162, %p163
    %p165 = scmp.ne.s32.totalorder %s153, %s154
    %p166 = scmp.eq.s32.totalorder %s24, 1
    %p167 = por %p165, %p166
    %p169 = scmp.ne.s32.totalorder %s154, %s168
    %p170 = scmp.eq.s32.totalorder %s24, 0
    %p171 = por %p169, %p170
    %s173 = sadd.s32 %s172, 1
    %p176 = scmp.eq.s32.totalorder %s18, 1
    %p177 = scmp.ne.s32.totalorder %s172, %s174
    %p178 = scmp.eq.s32.totalorder %s18, 0
    %p179 = por %p177, %p178
    %p180 = scmp.ne.s32.totalorder %s172, %s174
    %p181 = scmp.eq.s32.totalorder %s23, 1
    %p182 = por %p180, %p181
    %p183 = scmp.ne.s32.totalorder %s174, %s175
    %p184 = scmp.eq.s32.totalorder %s23, 0
    %p185 = por %p183, %p184
    %p186 = scmp.ne.s32.totalorder %s174, %s175
    %p187 = scmp.eq.s32.totalorder %s24, 1
    %p188 = por %p186, %p187
    %p190 = scmp.ne.s32.totalorder %s175, %s189
    %p191 = scmp.eq.s32.totalorder %s24, 0
    %p192 = por %p190, %p191
    %s194 = sadd.s32 %s193, 1
    %p197 = scmp.eq.s32.totalorder %s18, 1
    %p198 = scmp.ne.s32.totalorder %s193, %s195
    %p199 = scmp.eq.s32.totalorder %s18, 0
    %p200 = por %p198, %p199
    %p201 = scmp.ne.s32.totalorder %s193, %s195
    %p202 = scmp.eq.s32.totalorder %s23, 1
    %p203 = por %p201, %p202
    %p204 = scmp.ne.s32.totalorder %s195, %s196
    %p205 = scmp.eq.s32.totalorder %s23, 0
    %p206 = por %p204, %p205
    %p207 = scmp.ne.s32.totalorder %s195, %s196
    %p208 = scmp.eq.s32.totalorder %s24, 1
    %p209 = por %p207, %p208
    %p211 = scmp.ne.s32.totalorder %s196, %s210
    %p212 = scmp.eq.s32.totalorder %s24, 0
    %p213 = por %p211, %p212
    %s215 = sadd.s32 %s214, 1
    %p218 = scmp.eq.s32.totalorder %s18, 1
    %p219 = scmp.ne.s32.totalorder %s214, %s216
    %p220 = scmp.eq.s32.totalorder %s18, 0
    %p221 = por %p219, %p220
    %p222 = scmp.ne.s32.totalorder %s214, %s216
    %p223 = scmp.eq.s32.totalorder %s23, 1
    %p224 = por %p222, %p223
    %p225 = scmp.ne.s32.totalorder %s216, %s217
    %p226 = scmp.eq.s32.totalorder %s23, 0
    %p227 = por %p225, %p226
    %p228 = scmp.ne.s32.totalorder %s216, %s217
    %p229 = scmp.eq.s32.totalorder %s24, 1
    %p230 = por %p228, %p229
    %p232 = scmp.ne.s32.totalorder %s217, %s231
    %p233 = scmp.eq.s32.totalorder %s24, 0
    %p234 = por %p232, %p233
    %s236 = sadd.s32 %s235, 1
    %p239 = scmp.eq.s32.totalorder %s18, 1
    %p240 = scmp.ne.s32.totalorder %s235, %s237
    %p241 = scmp.eq.s32.totalorder %s18, 0
    %p242 = por %p240, %p241
    %p243 = scmp.ne.s32.totalorder %s235, %s237
    %p244 = scmp.eq.s32.totalorder %s23, 1
    %p245 = por %p243, %p244
    %p246 = scmp.ne.s32.totalorder %s237, %s238
    %p247 = scmp.eq.s32.totalorder %s23, 0
    %p248 = por %p246, %p247
    %p249 = scmp.ne.s32.totalorder %s237, %s238
    %p250 = scmp.eq.s32.totalorder %s24, 1
    %p251 = por %p249, %p250
    %p253 = scmp.ne.s32.totalorder %s238, %s252
    %p254 = scmp.eq.s32.totalorder %s24, 0
    %p255 = por %p253, %p254
    %s257 = sadd.s32 %s256, 1
    %p260 = scmp.eq.s32.totalorder %s18, 1
    %p261 = scmp.ne.s32.totalorder %s256, %s258
    %p262 = scmp.eq.s32.totalorder %s18, 0
    %p263 = por %p261, %p262
    %p264 = scmp.ne.s32.totalorder %s256, %s258
    %p265 = scmp.eq.s32.totalorder %s23, 1
    %p266 = por %p264, %p265
    %p267 = scmp.ne.s32.totalorder %s258, %s259
    %p268 = scmp.eq.s32.totalorder %s23, 0
    %p269 = por %p267, %p268
    %p270 = scmp.ne.s32.totalorder %s258, %s259
    %p271 = scmp.eq.s32.totalorder %s24, 1
    %p272 = por %p270, %p271
    %p274 = scmp.ne.s32.totalorder %s259, %s273
    %p275 = scmp.eq.s32.totalorder %s24, 0
    %p276 = por %p274, %p275
    %s278 = sadd.s32 %s277, 1
    %p281 = scmp.eq.s32.totalorder %s18, 1
    %p282 = scmp.ne.s32.totalorder %s277, %s279
    %p283 = scmp.eq.s32.totalorder %s18, 0
    %p284 = por %p282, %p283
    %p285 = scmp.ne.s32.totalorder %s277, %s279
    %p286 = scmp.eq.s32.totalorder %s23, 1
    %p287 = por %p285, %p286
    %p288 = scmp.ne.s32.totalorder %s279, %s280
    %p289 = scmp.eq.s32.totalorder %s23, 0
    %p290 = por %p288, %p289
    %p291 = scmp.ne.s32.totalorder %s279, %s280
    %p292 = scmp.eq.s32.totalorder %s24, 1
    %p293 = por %p291, %p292
    %p295 = scmp.ne.s32.totalorder %s280, %s294
    %p296 = scmp.eq.s32.totalorder %s24, 0
    %p297 = por %p295, %p296
    %s298 = ssub.s32 %s18, %s25
    %p299 = scmp.eq.s32.totalorder %s298, 0
    %s301 = sadd.s32 %s300, 1
    %s302 = scalar_select %p299, %s300, %s301
    %p305 = pneg %p299
    %p306 = scmp.eq.s32.totalorder %s18, 1
    %p307 = por %p305, %p306
    %p308 = scmp.ne.s32.totalorder %s300, %s303
    %p309 = scmp.eq.s32.totalorder %s18, 0
    %p310 = por %p308, %p309
    %p311 = scmp.ne.s32.totalorder %s300, %s303
    %p312 = scmp.eq.s32.totalorder %s23, 1
    %p313 = por %p311, %p312
    %p314 = scmp.ne.s32.totalorder %s303, %s304
    %p315 = scmp.eq.s32.totalorder %s23, 0
    %p316 = por %p314, %p315
    %p317 = scmp.ne.s32.totalorder %s303, %s304
    %p318 = scmp.eq.s32.totalorder %s24, 1
    %p319 = por %p317, %p318
    %p321 = scmp.ne.s32.totalorder %s304, %s320
    %p322 = scmp.eq.s32.totalorder %s24, 0
    %p323 = por %p321, %p322
    %p324 = scmp.le.s32.totalorder 1, %s18
    %p325 = scmp.lt.s32.totalorder %s18, 3
    %p326 = pnand %p324, %p325
    %p327 = pneg %p326
    // Predicated region
    $region9: #{tpu_custom_call.1} parent=5 // pred_check
      _
    $region10: #{tpu_custom_call.1} parent=5 // pred_check_branch
      %329 = sbr.rel (%p326) target = $region12
    $region11: #{tpu_custom_call.1} parent=5 // pred_region
      %s330 = ssub.s32 %s18, 1
      // Predicated region
      $region13: #{tpu_custom_call.1} parent=11 // pred_check
        %p331 = pneg %p143
      $region14: #{tpu_custom_call.1} parent=11 // pred_check_branch
        %333 = sbr.rel (%p331) target = $region16
      $region15: #{tpu_custom_call.1} parent=11 // pred_region
        _
      $region16: #{tpu_custom_call.1} parent=11 // pred_fallthru
        _
      // Predicated region
      $region17: #{tpu_custom_call.1} parent=11 // pred_check
        %p334 = pneg %p164
      $region18: #{tpu_custom_call.1} parent=11 // pred_check_branch
        %336 = sbr.rel (%p334) target = $region20
      $region19: #{tpu_custom_call.1} parent=11 // pred_region
        _
      $region20: #{tpu_custom_call.1} parent=11 // pred_fallthru
        _
      // Predicated region
      $region21: #{tpu_custom_call.1} parent=11 // pred_check
        %p337 = pneg %p185
      $region22: #{tpu_custom_call.1} parent=11 // pred_check_branch
        %339 = sbr.rel (%p337) target = $region24
      $region23: #{tpu_custom_call.1} parent=11 // pred_region
        _
      $region24: #{tpu_custom_call.1} parent=11 // pred_fallthru
        _
      // Predicated region
      $region25: #{tpu_custom_call.1} parent=11 // pred_check
        %p340 = pneg %p206
      $region26: #{tpu_custom_call.1} parent=11 // pred_check_branch
        %342 = sbr.rel (%p340) target = $region28
      $region27: #{tpu_custom_call.1} parent=11 // pred_region
        _
      $region28: #{tpu_custom_call.1} parent=11 // pred_fallthru
        _
      // Predicated region
      $region29: #{tpu_custom_call.1} parent=11 // pred_check
        %p343 = pneg %p227
      $region30: #{tpu_custom_call.1} parent=11 // pred_check_branch
        %345 = sbr.rel (%p343) target = $region32
      $region31: #{tpu_custom_call.1} parent=11 // pred_region
        _
      $region32: #{tpu_custom_call.1} parent=11 // pred_fallthru
        _
      // Predicated region
      $region33: #{tpu_custom_call.1} parent=11 // pred_check
        %p346 = pneg %p248
      $region34: #{tpu_custom_call.1} parent=11 // pred_check_branch
        %348 = sbr.rel (%p346) target = $region36
      $region35: #{tpu_custom_call.1} parent=11 // pred_region
        _
      $region36: #{tpu_custom_call.1} parent=11 // pred_fallthru
        _
      // Predicated region
      $region37: #{tpu_custom_call.1} parent=11 // pred_check
        %p349 = pneg %p269
      $region38: #{tpu_custom_call.1} parent=11 // pred_check_branch
        %351 = sbr.rel (%p349) target = $region40
      $region39: #{tpu_custom_call.1} parent=11 // pred_region
        _
      $region40: #{tpu_custom_call.1} parent=11 // pred_fallthru
        _
      // Predicated region
      $region41: #{tpu_custom_call.1} parent=11 // pred_check
        %p352 = pneg %p290
      $region42: #{tpu_custom_call.1} parent=11 // pred_check_branch
        %354 = sbr.rel (%p352) target = $region44
      $region43: #{tpu_custom_call.1} parent=11 // pred_region
        _
      $region44: #{tpu_custom_call.1} parent=11 // pred_fallthru
        _
    $region12: #{tpu_custom_call.1} parent=5 // pred_fallthru
      _
    %p355 = scmp.lt.s32.totalorder %s18, 2
    // Predicated region
    $region45: #{tpu_custom_call.1} parent=5 // pred_check
      %p356 = pneg %p355
    $region46: #{tpu_custom_call.1} parent=5 // pred_check_branch
      %358 = sbr.rel (%p356) target = $region48
    $region47: #{tpu_custom_call.1} parent=5 // pred_region
      // Predicated region
      $region49: #{tpu_custom_call.1} parent=47 // pred_check
        %p359 = pneg %p38
      $region50: #{tpu_custom_call.1} parent=47 // pred_check_branch
        %361 = sbr.rel (%p359) target = $region52
      $region51: #{tpu_custom_call.1} parent=47 // pred_region
        %p362 = scmp.lt.s32.totalorder %s18, 1
        %s363 = scalar_select %p362, %s18, 1
        %s364 = smul.addr %s363, 2
        %s365 = smul.addr %s364, 2
        %s366 = scalar_lea.vmem %s0, %s365
      $region52: #{tpu_custom_call.1} parent=47 // pred_fallthru
        _
      // Predicated region
      $region53: #{tpu_custom_call.1} parent=47 // pred_check
        %p367 = pneg %p64
      $region54: #{tpu_custom_call.1} parent=47 // pred_check_branch
        %369 = sbr.rel (%p367) target = $region56
      $region55: #{tpu_custom_call.1} parent=47 // pred_region
        %p370 = scmp.lt.s32.totalorder %s18, 1
        %s371 = scalar_select %p370, %s18, 1
        %s372 = smul.addr %s371, 8
        %s373 = scalar_lea.vmem %s1, %s372
      $region56: #{tpu_custom_call.1} parent=47 // pred_fallthru
        _
      // Predicated region
      $region57: #{tpu_custom_call.1} parent=47 // pred_check
        %p374 = pneg %p90
      $region58: #{tpu_custom_call.1} parent=47 // pred_check_branch
        %376 = sbr.rel (%p374) target = $region60
      $region59: #{tpu_custom_call.1} parent=47 // pred_region
        %p377 = scmp.lt.s32.totalorder %s18, 1
        %s378 = scalar_select %p377, %s18, 1
        %s379 = smul.addr %s378, 8
        %s380 = scalar_lea.vmem %s2, %s379
      $region60: #{tpu_custom_call.1} parent=47 // pred_fallthru
        _
      // Predicated region
      $region61: #{tpu_custom_call.1} parent=47 // pred_check
        %p381 = pneg %p116
      $region62: #{tpu_custom_call.1} parent=47 // pred_check_branch
        %383 = sbr.rel (%p381) target = $region64
      $region63: #{tpu_custom_call.1} parent=47 // pred_region
        %p384 = scmp.lt.s32.totalorder %s18, 1
        %s385 = scalar_select %p384, %s18, 1
        %s386 = smul.addr %s385, 8
        %s387 = scalar_lea.vmem %s3, %s386
      $region64: #{tpu_custom_call.1} parent=47 // pred_fallthru
        _
    $region48: #{tpu_custom_call.1} parent=5 // pred_fallthru
      _
    %p388 = scmp.le.s32.totalorder 1, %s18
    %p389 = scmp.lt.s32.totalorder %s18, 3
    %p390 = pnand %p388, %p389
    %p391 = pneg %p390
    // Predicated region
    $region65: #{tpu_custom_call.1} parent=5 // pred_check
      _
    $region66: #{tpu_custom_call.1} parent=5 // pred_check_branch
      %393 = sbr.rel (%p390) target = $region68
    $region67: #{tpu_custom_call.1} parent=5 // pred_region
      %s394 = ssub.s32 %s18, 1
      %p395 = scmp.lt.s32.totalorder %s23, 1
      %s396 = scalar_select %p395, %s23, 1
      %s397 = smul.addr %s396, 2
      %s398 = smul.addr %s397, 2
      %s399 = scalar_lea.vmem %s0, %s398
      %p400 = pneg %p44
      %p401 = pneg %p41
      %p402 = scmp.lt.s32.totalorder %s23, 1
      %s403 = scalar_select %p402, %s23, 1
      %s404 = smul.addr %s403, 8
      %s405 = scalar_lea.vmem %s1, %s404
      %p406 = pneg %p70
      %p407 = pneg %p67
      %p408 = scmp.lt.s32.totalorder %s23, 1
      %s409 = scalar_select %p408, %s23, 1
      %s410 = smul.addr %s409, 8
      %s411 = scalar_lea.vmem %s2, %s410
      %p412 = pneg %p96
      %p413 = pneg %p93
      %p414 = scmp.lt.s32.totalorder %s23, 1
      %s415 = scalar_select %p414, %s23, 1
      %s416 = smul.addr %s415, 8
      %s417 = scalar_lea.vmem %s3, %s416
      %p418 = pneg %p122
      %p419 = pneg %p119
      %p420 = pneg %p143
      %p421 = pneg %p140
      %p422 = pneg %p164
      %p423 = pneg %p161
      %p424 = pneg %p185
      %p425 = pneg %p182
      %p426 = pneg %p206
      %p427 = pneg %p203
      %p428 = pneg %p227
      %p429 = pneg %p224
      %p430 = pneg %p248
      %p431 = pneg %p245
      %p432 = pneg %p269
      %p433 = pneg %p266
      %p434 = pneg %p290
      %p435 = pneg %p287
      %p436 = pneg %p316
      %p437 = pneg %p313
      %p438 = scmp.lt.s32.totalorder %s23, 1
      %s439 = scalar_select %p438, %s23, 1
      %s440 = smul.addr %s439, 8
      %s441 = scalar_lea.vmem %s12, %s440
      %p442 = scmp.lt.s32.totalorder %s23, 1
      %s443 = scalar_select %p442, %s23, 1
      %s444 = smul.addr %s443, 2
      %s445 = smul.addr %s444, 2
      %s446 = scalar_lea.vmem %s0, %s445
      %p447 = scmp.lt.s32.totalorder %s23, 1
      %s448 = scalar_select %p447, %s23, 1
      %s449 = smul.addr %s448, 8
      %s450 = scalar_lea.vmem %s1, %s449
      %p451 = scmp.lt.s32.totalorder %s23, 1
      %s452 = scalar_select %p451, %s23, 1
      %s453 = smul.addr %s452, 8
      %s454 = scalar_lea.vmem %s2, %s453
      %p455 = scmp.lt.s32.totalorder %s23, 1
      %s456 = scalar_select %p455, %s23, 1
      %s457 = smul.addr %s456, 8
      %s458 = scalar_lea.vmem %s3, %s457
      %p459 = scmp.lt.s32.totalorder %s23, 1
      %s460 = scalar_select %p459, %s23, 1
      %s461 = smul.addr %s460, 8
      %s462 = scalar_lea.vmem %s12, %s461
      %v464 = vld [vmem:[%s450] sm:$0xff]
      %v465 = vmul.f32 %v464, 16.0
      %v466 = vfloor.f32 %v465
      %v467 = vadd.f32 %v466, 1.0
      %v468 = vsub.f32 %v467, %v465
      %v469 = vsub.f32 %v465, %v466
      %v470 = vmax.f32 %v466, 0.0
      %v471 = vmin.f32 %v470, 15.0
      %v472 = vcvt.f32.s32.to.zero.pseudo %v471
      %v473 = vmax.f32 %v467, 0.0
      %v474 = vmin.f32 %v473, 15.0
      %v475 = vcvt.f32.s32.to.zero.pseudo %v474
      %477 = vrot.lane.b32.xlu0 %v468, 127
      %v478 = vpop.permute.xlu0 %477
      %v480 = vmul.f32 %v468, %v478
      %482 = vrot.lane.b32.xlu0 %v469, 127
      %v483 = vpop.permute.xlu0 %482
      %v485 = vmul.f32 %v468, %v483
      %v486 = vmul.f32 %v469, %v478
      %v487 = vmul.f32 %v469, %v483
      %v488 = vmul.u32 %v472, 16
      %489 = vrot.lane.b32.xlu0 %v488, 127
      %v490 = vpop.permute.xlu0 %489
      %v491 = vadd.s32 %v472, %v490
      %v492 = vmul.u32 %v475, 16
      %493 = vrot.lane.b32.xlu0 %v492, 127
      %v494 = vpop.permute.xlu0 %493
      %v495 = vadd.s32 %v472, %v494
      %v496 = vadd.s32 %v475, %v490
      %v497 = vadd.s32 %v475, %v494
      %v498 = vlaneseq
      %v499 = vand.u32 %v498, 127
      %v500 = vadd.s32 %v499, 128
      %501 = vset.pattern.permute.xlu0 0
      %502 = vperm.xlu0 %501, %v491
      %v503 = vpop.permute.xlu0 %502
      %vm504 = vcmp.eq.s32.totalorder %v499, %v503
      %vm505 = vcmp.eq.s32.totalorder %v500, %v503
      %507 = vset.pattern.permute.xlu0 0
      %508 = vperm.xlu0 %507, %v480
      %v509 = vpop.permute.xlu0 %508
      %v511 = vsel %vm504, %v509, 0.0
      %v512 = vsel %vm505, %v509, 0.0
      %513 = vset.pattern.permute.xlu0 0
      %514 = vperm.xlu0 %513, %v495
      %v515 = vpop.permute.xlu0 %514
      %vm516 = vcmp.eq.s32.totalorder %v499, %v515
      %vm517 = vcmp.eq.s32.totalorder %v500, %v515
      %519 = vset.pattern.permute.xlu0 0
      %520 = vperm.xlu0 %519, %v485
      %v521 = vpop.permute.xlu0 %520
      %v523 = vsel %vm516, %v521, 0.0
      %v524 = vsel %vm517, %v521, 0.0
      %v525 = vadd.f32 %v511, %v523
      %v526 = vadd.f32 %v512, %v524
      %527 = vset.pattern.permute.xlu0 0
      %528 = vperm.xlu0 %527, %v496
      %v529 = vpop.permute.xlu0 %528
      %vm530 = vcmp.eq.s32.totalorder %v499, %v529
      %vm531 = vcmp.eq.s32.totalorder %v500, %v529
      %533 = vset.pattern.permute.xlu0 0
      %534 = vperm.xlu0 %533, %v486
      %v535 = vpop.permute.xlu0 %534
      %v537 = vsel %vm530, %v535, 0.0
      %v538 = vsel %vm531, %v535, 0.0
      %v539 = vadd.f32 %v525, %v537
      %v540 = vadd.f32 %v526, %v538
      %541 = vset.pattern.permute.xlu0 0
      %542 = vperm.xlu0 %541, %v497
      %v543 = vpop.permute.xlu0 %542
      %vm544 = vcmp.eq.s32.totalorder %v499, %v543
      %vm545 = vcmp.eq.s32.totalorder %v500, %v543
      %547 = vset.pattern.permute.xlu0 0
      %548 = vperm.xlu0 %547, %v487
      %v549 = vpop.permute.xlu0 %548
      %v551 = vsel %vm544, %v549, 0.0
      %v552 = vsel %vm545, %v549, 0.0
      %v553 = vadd.f32 %v539, %v551
      %v554 = vadd.f32 %v540, %v552
      %v555 = vpack.c.bf16 %v553, %v553
      %v556 = vpack.c.bf16 %v554, %v554
      %v557 = vld [vmem:[%s446] sm:$0xf]
      %v560 = vunpack.c.l.s4 1983009808
      %v561 = vunpack.c.0.s8 %v560
      %v562 = vlaneseq
      %v563 = vshrl.u32 %v562, 7
      %v564 = vsub.s32 %v561, %v563
      %v565 = vrot.slane %v557, %v564
      %v566 = vcombine.high %v565, %v565
      %569 = vmatprep.subr.bf16.mxu0 0
      %570 = vmatpush1.bf16.xpose.msra.mxu0 0
      %571 = vmatprep.subr.bf16.mxu0 0
      %572 = vmatpush1.bf16.xpose.msra.mxu0 0
      %573 = vmatprep.subr.bf16.mxu0 0
      %574 = vmatpush1.bf16.xpose.msra.mxu0 0
      %575 = vmatprep.subr.bf16.mxu0 0
      %576 = vmatpush1.bf16.xpose.msra.mxu0 0
      %577 = vmatprep.subr.bf16.mxu0 0
      %578 = vmatpush1.bf16.xpose.msra.mxu0 0
      %579 = vmatprep.subr.bf16.mxu0 0
      %580 = vmatpush1.bf16.xpose.msra.mxu0 0
      %581 = vmatprep.subr.bf16.mxu0 0
      %582 = vmatpush1.bf16.xpose.msra.mxu0 0
      %583 = vmatprep.subr.bf16.mxu0 %v566
      %584 = vmatpush1.bf16.xpose.msra.mxu0 %v565
      %585 = vmatprep.subr.bf16.mxu0 0
      %586 = vmatpush2.bf16.xpose.msra.mxu0 0
      %587 = vmatprep.subr.bf16.mxu0 0
      %588 = vmatpush2.bf16.xpose.msra.mxu0 0
      %589 = vmatprep.subr.bf16.mxu0 0
      %590 = vmatpush2.bf16.xpose.msra.mxu0 0
      %591 = vmatprep.subr.bf16.mxu0 0
      %592 = vmatpush2.bf16.xpose.msra.mxu0 0
      %593 = vmatprep.subr.bf16.mxu0 0
      %594 = vmatpush2.bf16.xpose.msra.mxu0 0
      %595 = vmatprep.subr.bf16.mxu0 0
      %596 = vmatpush2.bf16.xpose.msra.mxu0 0
      %597 = vmatprep.subr.bf16.mxu0 0
      %598 = vmatpush2.bf16.xpose.msra.mxu0 0
      %599 = vmatprep.subr.bf16.mxu0 0
      %600 = vmatpush2.bf16.xpose.msra.mxu0 0
      %601 = vmatprep.mubr.bf16.mxu0 %v556
      %602 = vmatmul.mubr.bf16.gmra.mxu0 %v555
      %v603 = vpop.f32.mrf.mxu0
      %v604 = vadd.f32 0.0, %v603
      %v605 = vpop.f32.mrf.mxu0
      %v606 = vpop.f32.mrf.mxu0
      %v607 = vpop.f32.mrf.mxu0
      %608 = vdwg.mxu0
      %v609 = vld [vmem:[%s458] sm:$0xff]
      %v610 = vld [vmem:[%s454] sm:$0xff]
      %612 = vrot.lane.b32.xlu0 %v464, 4
      %v613 = vpop.permute.xlu0 %612
      %vm615 = vcmask 31744
      %v616 = vsel %vm615, %v604, %v613
      %v617 = vld [vmem:[%s4] sm:$0xff]
      %v618 = vld [vmem:[%s4 + $0x8] sm:$0xf]
      %v619 = vld [vmem:[%s5] sm:$0x1]
      %vm620 = vcmask 64512
      %v622 = vsel %vm620, %v610, 0
      %624 = vmatprep.subr.mxu0 0.0
      %625 = vmatpush1.msra.mxu0 0.0
      %626 = vmatprep.subr.mxu0 0.0
      %627 = vmatpush1.msra.mxu0 0.0
      %628 = vmatprep.subr.mxu0 0.0
      %629 = vmatpush1.msra.mxu0 0.0
      %630 = vmatprep.subr.mxu0 0.0
      %631 = vmatpush1.msra.mxu0 0.0
      %632 = vmatprep.subr.mxu0 0.0
      %633 = vmatpush1.msra.mxu0 0.0
      %634 = vmatprep.subr.mxu0 0.0
      %635 = vmatpush1.msra.mxu0 0.0
      %636 = vmatprep.subr.mxu0 0.0
      %637 = vmatpush1.msra.mxu0 0.0
      %638 = vmatprep.subr.mxu0 0.0
      %639 = vmatpush1.msra.mxu0 0.0
      %640 = vmatprep.subr.mxu0 0.0
      %641 = vmatpush1.msra.mxu0 0.0
      %642 = vmatprep.subr.mxu0 0.0
      %643 = vmatpush1.msra.mxu0 0.0
      %644 = vmatprep.subr.mxu0 0.0
      %645 = vmatpush1.msra.mxu0 0.0
      %646 = vmatprep.subr.mxu0 0.0
      %647 = vmatpush1.msra.mxu0 0.0
      %648 = vmatprep.subr.mxu0 0.0
      %649 = vmatpush1.msra.mxu0 0.0
      %650 = vmatprep.subr.mxu0 0.0
      %651 = vmatpush1.msra.mxu0 0.0
      %652 = vmatprep.subr.mxu0 0.0
      %653 = vmatpush1.msra.mxu0 0.0
      %654 = vmatprep.subr.mxu0 0.0
      %655 = vmatpush1.msra.mxu0 %v616
      %656 = vmatprep.subr.mxu0 0.0
      %657 = vmatpush2.msra.mxu0 0.0
      %658 = vmatprep.subr.mxu0 0.0
      %659 = vmatpush2.msra.mxu0 0.0
      %660 = vmatprep.subr.mxu0 0.0
      %661 = vmatpush2.msra.mxu0 0.0
      %662 = vmatprep.subr.mxu0 0.0
      %663 = vmatpush2.msra.mxu0 0.0
      %664 = vmatprep.subr.mxu0 0.0
      %665 = vmatpush2.msra.mxu0 0.0
      %666 = vmatprep.subr.mxu0 0.0
      %667 = vmatpush2.msra.mxu0 0.0
      %668 = vmatprep.subr.mxu0 0.0
      %669 = vmatpush2.msra.mxu0 0.0
      %670 = vmatprep.subr.mxu0 0.0
      %671 = vmatpush2.msra.mxu0 0.0
      %672 = vmatprep.subr.mxu0 0.0
      %673 = vmatpush2.msra.mxu0 0.0
      %674 = vmatprep.subr.mxu0 0.0
      %675 = vmatpush2.msra.mxu0 0.0
      %676 = vmatprep.subr.mxu0 0.0
      %677 = vmatpush2.msra.mxu0 0.0
      %678 = vmatprep.subr.mxu0 0.0
      %679 = vmatpush2.msra.mxu0 0.0
      %680 = vmatprep.subr.mxu0 0.0
      %681 = vmatpush2.msra.mxu0 0.0
      %682 = vmatprep.subr.mxu0 0.0
      %683 = vmatpush2.msra.mxu0 0.0
      %684 = vmatprep.subr.mxu0 0.0
      %685 = vmatpush2.msra.mxu0 0.0
      %686 = vmatprep.subr.mxu0 0.0
      %687 = vmatpush2.msra.mxu0 0.0
      %688 = vmatprep.mubr.f32.mxu0 0.0
      %689 = vmatmul.mubr.f32.gmra.mxu0 %v622
      %v690 = vpop.f32.mrf.mxu0
      %v691 = vadd.f32 0.0, %v690
      %v692 = vpop.f32.mrf.mxu0
      %693 = vdwg.mxu0
      %695 = vrot.lane.b32.xlu0 %v691, 6
      %v696 = vpop.permute.xlu0 %695
      %vm698 = vcmask 48128
      %v699 = vsel %vm698, %v616, %v696
      %v701 = vlaneseq
      %v702 = vshrl.u32 %v701, 7
      %v703 = vsub.s32 0, %v702
      %v704 = vrot.slane %v619, %v703
      %vm706 = vcmask 97280
      %v708 = vsel %vm706, %v699, 0
      %vm710 = vcmask 1043456
      %v712 = vsel %vm710, %v618, 0
      %714 = vmatprep.subr.mxu0 0.0
      %715 = vmatpush1.msra.mxu0 0.0
      %716 = vmatprep.subr.mxu0 0.0
      %717 = vmatpush1.msra.mxu0 0.0
      %718 = vmatprep.subr.mxu0 0.0
      %719 = vmatpush1.msra.mxu0 0.0
      %720 = vmatprep.subr.mxu0 0.0
      %721 = vmatpush1.msra.mxu0 0.0
      %722 = vmatprep.subr.mxu0 0.0
      %723 = vmatpush1.msra.mxu0 0.0
      %724 = vmatprep.subr.mxu0 0.0
      %725 = vmatpush1.msra.mxu0 0.0
      %726 = vmatprep.subr.mxu0 0.0
      %727 = vmatpush1.msra.mxu0 0.0
      %728 = vmatprep.subr.mxu0 0.0
      %729 = vmatpush1.msra.mxu0 0.0
      %730 = vmatprep.subr.mxu0 0.0
      %731 = vmatpush1.msra.mxu0 0.0
      %732 = vmatprep.subr.mxu0 0.0
      %733 = vmatpush1.msra.mxu0 0.0
      %734 = vmatprep.subr.mxu0 0.0
      %735 = vmatpush1.msra.mxu0 0.0
      %736 = vmatprep.subr.mxu0 0.0
      %737 = vmatpush1.msra.mxu0 0.0
      %738 = vmatprep.subr.mxu0 0.0
      %739 = vmatpush1.msra.mxu0 0.0
      %740 = vmatprep.subr.mxu0 0.0
      %741 = vmatpush1.msra.mxu0 0.0
      %742 = vmatprep.subr.mxu0 0.0
      %743 = vmatpush1.msra.mxu0 %v712
      %744 = vmatprep.subr.mxu0 0.0
      %745 = vmatpush1.msra.mxu0 %v617
      %746 = vmatprep.subr.mxu0 0.0
      %747 = vmatpush2.msra.mxu0 0.0
      %748 = vmatprep.subr.mxu0 0.0
      %749 = vmatpush2.msra.mxu0 0.0
      %750 = vmatprep.subr.mxu0 0.0
      %751 = vmatpush2.msra.mxu0 0.0
      %752 = vmatprep.subr.mxu0 0.0
      %753 = vmatpush2.msra.mxu0 0.0
      %754 = vmatprep.subr.mxu0 0.0
      %755 = vmatpush2.msra.mxu0 0.0
      %756 = vmatprep.subr.mxu0 0.0
      %757 = vmatpush2.msra.mxu0 0.0
      %758 = vmatprep.subr.mxu0 0.0
      %759 = vmatpush2.msra.mxu0 0.0
      %760 = vmatprep.subr.mxu0 0.0
      %761 = vmatpush2.msra.mxu0 0.0
      %762 = vmatprep.subr.mxu0 0.0
      %763 = vmatpush2.msra.mxu0 0.0
      %764 = vmatprep.subr.mxu0 0.0
      %765 = vmatpush2.msra.mxu0 0.0
      %766 = vmatprep.subr.mxu0 0.0
      %767 = vmatpush2.msra.mxu0 0.0
      %768 = vmatprep.subr.mxu0 0.0
      %769 = vmatpush2.msra.mxu0 0.0
      %770 = vmatprep.subr.mxu0 0.0
      %771 = vmatpush2.msra.mxu0 0.0
      %772 = vmatprep.subr.mxu0 0.0
      %773 = vmatpush2.msra.mxu0 0.0
      %774 = vmatprep.subr.mxu0 0.0
      %775 = vmatpush2.msra.mxu0 0.0
      %776 = vmatprep.subr.mxu0 0.0
      %777 = vmatpush2.msra.mxu0 0.0
      %778 = vmatprep.mubr.f32.mxu0 0.0
      %779 = vmatmul.mubr.f32.gmra.mxu0 %v708
      %v780 = vpop.f32.mrf.mxu0
      %v781 = vadd.f32 %v704, %v780
      %v782 = vpop.f32.mrf.mxu0
      %783 = vdwg.mxu0
      %v784 = vld [vmem:[%s6] sm:$0xff]
      %v785 = vld [vmem:[%s6 + $0x8] sm:$0xff]
      %v786 = vld [vmem:[%s6 + $0x10] sm:$0xff]
      %v787 = vld [vmem:[%s6 + $0x18] sm:$0xff]
      %v788 = vld [vmem:[%s6 + $0x20] sm:$0xff]
      %v789 = vld [vmem:[%s6 + $0x28] sm:$0xff]
      %v790 = vld [vmem:[%s6 + $0x30] sm:$0xff]
      %v791 = vld [vmem:[%s6 + $0x38] sm:$0xff]
      %v792 = vld [vmem:[%s7] sm:$0x1]
      %793 = vmatprep.subr.mxu0 0.0
      %794 = vmatpush1.msra.mxu0 0.0
      %795 = vmatprep.subr.mxu0 0.0
      %796 = vmatpush1.msra.mxu0 0.0
      %797 = vmatprep.subr.mxu0 0.0
      %798 = vmatpush1.msra.mxu0 0.0
      %799 = vmatprep.subr.mxu0 0.0
      %800 = vmatpush1.msra.mxu0 0.0
      %801 = vmatprep.subr.mxu0 0.0
      %802 = vmatpush1.msra.mxu0 0.0
      %803 = vmatprep.subr.mxu0 0.0
      %804 = vmatpush1.msra.mxu0 0.0
      %805 = vmatprep.subr.mxu0 0.0
      %806 = vmatpush1.msra.mxu0 0.0
      %807 = vmatprep.subr.mxu0 0.0
      %808 = vmatpush1.msra.mxu0 0.0
      %809 = vmatprep.subr.mxu0 0.0
      %810 = vmatpush1.msra.mxu0 0.0
      %811 = vmatprep.subr.mxu0 0.0
      %812 = vmatpush1.msra.mxu0 0.0
      %813 = vmatprep.subr.mxu0 0.0
      %814 = vmatpush1.msra.mxu0 0.0
      %815 = vmatprep.subr.mxu0 0.0
      %816 = vmatpush1.msra.mxu0 0.0
      %817 = vmatprep.subr.mxu0 0.0
      %818 = vmatpush1.msra.mxu0 0.0
      %819 = vmatprep.subr.mxu0 0.0
      %820 = vmatpush1.msra.mxu0 0.0
      %821 = vmatprep.subr.mxu0 0.0
      %822 = vmatpush1.msra.mxu0 0.0
      %823 = vmatprep.subr.mxu0 0.0
      %824 = vmatpush1.msra.mxu0 %v781
      %825 = vmatprep.subr.mxu0 0.0
      %826 = vmatpush2.msra.mxu0 0.0
      %827 = vmatprep.subr.mxu0 0.0
      %828 = vmatpush2.msra.mxu0 0.0
      %829 = vmatprep.subr.mxu0 0.0
      %830 = vmatpush2.msra.mxu0 0.0
      %831 = vmatprep.subr.mxu0 0.0
      %832 = vmatpush2.msra.mxu0 0.0
      %833 = vmatprep.subr.mxu0 0.0
      %834 = vmatpush2.msra.mxu0 0.0
      %835 = vmatprep.subr.mxu0 0.0
      %836 = vmatpush2.msra.mxu0 0.0
      %837 = vmatprep.subr.mxu0 0.0
      %838 = vmatpush2.msra.mxu0 0.0
      %839 = vmatprep.subr.mxu0 0.0
      %840 = vmatpush2.msra.mxu0 0.0
      %841 = vmatprep.subr.mxu0 0.0
      %842 = vmatpush2.msra.mxu0 0.0
      %843 = vmatprep.subr.mxu0 0.0
      %844 = vmatpush2.msra.mxu0 0.0
      %845 = vmatprep.subr.mxu0 0.0
      %846 = vmatpush2.msra.mxu0 0.0
      %847 = vmatprep.subr.mxu0 0.0
      %848 = vmatpush2.msra.mxu0 0.0
      %849 = vmatprep.subr.mxu0 0.0
      %850 = vmatpush2.msra.mxu0 0.0
      %851 = vmatprep.subr.mxu0 0.0
      %852 = vmatpush2.msra.mxu0 0.0
      %853 = vmatprep.subr.mxu0 0.0
      %854 = vmatpush2.msra.mxu0 0.0
      %855 = vmatprep.subr.mxu0 0.0
      %856 = vmatpush2.msra.mxu0 0.0
      %857 = vmatprep.mubr.f32.mxu0 0.0
      %858 = vmatmul.mubr.f32.gmra.mxu0 %v622
      %v859 = vpop.f32.mrf.mxu0
      %v860 = vadd.f32 0.0, %v859
      %v861 = vpop.f32.mrf.mxu0
      %862 = vdwg.mxu0
      %864 = vrot.lane.b32.xlu0 %v860, 32
      %v865 = vpop.permute.xlu0 %864
      %vm867 = vcmask 261120
      %v868 = vsel %vm867, %v781, %v865
      %v869 = vlaneseq
      %v870 = vshrl.u32 %v869, 7
      %v871 = vsub.s32 0, %v870
      %v872 = vrot.slane %v792, %v871
      %vm873 = vcmask 523264
      %v875 = vsel %vm873, %v868, 0
      %877 = vmatprep.subr.mxu0 0.0
      %878 = vmatpush1.msra.mxu0 0.0
      %879 = vmatprep.subr.mxu0 0.0
      %880 = vmatpush1.msra.mxu0 0.0
      %881 = vmatprep.subr.mxu0 0.0
      %882 = vmatpush1.msra.mxu0 0.0
      %883 = vmatprep.subr.mxu0 0.0
      %884 = vmatpush1.msra.mxu0 0.0
      %885 = vmatprep.subr.mxu0 0.0
      %886 = vmatpush1.msra.mxu0 0.0
      %887 = vmatprep.subr.mxu0 0.0
      %888 = vmatpush1.msra.mxu0 0.0
      %889 = vmatprep.subr.mxu0 0.0
      %890 = vmatpush1.msra.mxu0 0.0
      %891 = vmatprep.subr.mxu0 0.0
      %892 = vmatpush1.msra.mxu0 0.0
      %893 = vmatprep.subr.mxu0 0.0
      %894 = vmatpush1.msra.mxu0 %v791
      %895 = vmatprep.subr.mxu0 0.0
      %896 = vmatpush1.msra.mxu0 %v790
      %897 = vmatprep.subr.mxu0 0.0
      %898 = vmatpush1.msra.mxu0 %v789
      %899 = vmatprep.subr.mxu0 0.0
      %900 = vmatpush1.msra.mxu0 %v788
      %901 = vmatprep.subr.mxu0 0.0
      %902 = vmatpush1.msra.mxu0 %v787
      %903 = vmatprep.subr.mxu0 0.0
      %904 = vmatpush1.msra.mxu0 %v786
      %905 = vmatprep.subr.mxu0 0.0
      %906 = vmatpush1.msra.mxu0 %v785
      %907 = vmatprep.subr.mxu0 0.0
      %908 = vmatpush1.msra.mxu0 %v784
      %909 = vmatprep.subr.mxu0 0.0
      %910 = vmatpush2.msra.mxu0 0.0
      %911 = vmatprep.subr.mxu0 0.0
      %912 = vmatpush2.msra.mxu0 0.0
      %913 = vmatprep.subr.mxu0 0.0
      %914 = vmatpush2.msra.mxu0 0.0
      %915 = vmatprep.subr.mxu0 0.0
      %916 = vmatpush2.msra.mxu0 0.0
      %917 = vmatprep.subr.mxu0 0.0
      %918 = vmatpush2.msra.mxu0 0.0
      %919 = vmatprep.subr.mxu0 0.0
      %920 = vmatpush2.msra.mxu0 0.0
      %921 = vmatprep.subr.mxu0 0.0
      %922 = vmatpush2.msra.mxu0 0.0
      %923 = vmatprep.subr.mxu0 0.0
      %924 = vmatpush2.msra.mxu0 0.0
      %925 = vmatprep.subr.mxu0 0.0
      %926 = vmatpush2.msra.mxu0 0.0
      %927 = vmatprep.subr.mxu0 0.0
      %928 = vmatpush2.msra.mxu0 0.0
      %929 = vmatprep.subr.mxu0 0.0
      %930 = vmatpush2.msra.mxu0 0.0
      %931 = vmatprep.subr.mxu0 0.0
      %932 = vmatpush2.msra.mxu0 0.0
      %933 = vmatprep.subr.mxu0 0.0
      %934 = vmatpush2.msra.mxu0 0.0
      %935 = vmatprep.subr.mxu0 0.0
      %936 = vmatpush2.msra.mxu0 0.0
      %937 = vmatprep.subr.mxu0 0.0
      %938 = vmatpush2.msra.mxu0 0.0
      %939 = vmatprep.subr.mxu0 0.0
      %940 = vmatpush2.msra.mxu0 0.0
      %941 = vmatprep.mubr.f32.mxu0 0.0
      %942 = vmatmul.mubr.f32.gmra.mxu0 %v875
      %v943 = vpop.f32.mrf.mxu0
      %v944 = vadd.f32 %v872, %v943
      %v945 = vpop.f32.mrf.mxu0
      %946 = vdwg.mxu0
      %v947 = vmax.f32 %v944, 0.0
      %s948 = scalar_lea.vmem %s6, 64
      %v949 = vld [vmem:[%s948] sm:$0xff]
      %v950 = vld [vmem:[%s948 + $0x8] sm:$0xff]
      %v951 = vld [vmem:[%s948 + $0x10] sm:$0xff]
      %v952 = vld [vmem:[%s948 + $0x18] sm:$0xff]
      %v953 = vld [vmem:[%s948 + $0x20] sm:$0xff]
      %v954 = vld [vmem:[%s948 + $0x28] sm:$0xff]
      %v955 = vld [vmem:[%s948 + $0x30] sm:$0xff]
      %v956 = vld [vmem:[%s948 + $0x38] sm:$0xff]
      %v957 = vld [vmem:[%s7 + $0x1] sm:$0x1]
      %958 = vmatprep.subr.mxu0 0.0
      %959 = vmatpush1.msra.mxu0 0.0
      %960 = vmatprep.subr.mxu0 0.0
      %961 = vmatpush1.msra.mxu0 0.0
      %962 = vmatprep.subr.mxu0 0.0
      %963 = vmatpush1.msra.mxu0 0.0
      %964 = vmatprep.subr.mxu0 0.0
      %965 = vmatpush1.msra.mxu0 0.0
      %966 = vmatprep.subr.mxu0 0.0
      %967 = vmatpush1.msra.mxu0 0.0
      %968 = vmatprep.subr.mxu0 0.0
      %969 = vmatpush1.msra.mxu0 0.0
      %970 = vmatprep.subr.mxu0 0.0
      %971 = vmatpush1.msra.mxu0 0.0
      %972 = vmatprep.subr.mxu0 0.0
      %973 = vmatpush1.msra.mxu0 0.0
      %974 = vmatprep.subr.mxu0 0.0
      %975 = vmatpush1.msra.mxu0 0.0
      %976 = vmatprep.subr.mxu0 0.0
      %977 = vmatpush1.msra.mxu0 0.0
      %978 = vmatprep.subr.mxu0 0.0
      %979 = vmatpush1.msra.mxu0 0.0
      %980 = vmatprep.subr.mxu0 0.0
      %981 = vmatpush1.msra.mxu0 0.0
      %982 = vmatprep.subr.mxu0 0.0
      %983 = vmatpush1.msra.mxu0 0.0
      %984 = vmatprep.subr.mxu0 0.0
      %985 = vmatpush1.msra.mxu0 0.0
      %986 = vmatprep.subr.mxu0 0.0
      %987 = vmatpush1.msra.mxu0 0.0
      %988 = vmatprep.subr.mxu0 0.0
      %989 = vmatpush1.msra.mxu0 %v947
      %990 = vmatprep.subr.mxu0 0.0
      %991 = vmatpush2.msra.mxu0 0.0
      %992 = vmatprep.subr.mxu0 0.0
      %993 = vmatpush2.msra.mxu0 0.0
      %994 = vmatprep.subr.mxu0 0.0
      %995 = vmatpush2.msra.mxu0 0.0
      %996 = vmatprep.subr.mxu0 0.0
      %997 = vmatpush2.msra.mxu0 0.0
      %998 = vmatprep.subr.mxu0 0.0
      %999 = vmatpush2.msra.mxu0 0.0
      %1000 = vmatprep.subr.mxu0 0.0
      %1001 = vmatpush2.msra.mxu0 0.0
      %1002 = vmatprep.subr.mxu0 0.0
      %1003 = vmatpush2.msra.mxu0 0.0
      %1004 = vmatprep.subr.mxu0 0.0
      %1005 = vmatpush2.msra.mxu0 0.0
      %1006 = vmatprep.subr.mxu0 0.0
      %1007 = vmatpush2.msra.mxu0 0.0
      %1008 = vmatprep.subr.mxu0 0.0
      %1009 = vmatpush2.msra.mxu0 0.0
      %1010 = vmatprep.subr.mxu0 0.0
      %1011 = vmatpush2.msra.mxu0 0.0
      %1012 = vmatprep.subr.mxu0 0.0
      %1013 = vmatpush2.msra.mxu0 0.0
      %1014 = vmatprep.subr.mxu0 0.0
      %1015 = vmatpush2.msra.mxu0 0.0
      %1016 = vmatprep.subr.mxu0 0.0
      %1017 = vmatpush2.msra.mxu0 0.0
      %1018 = vmatprep.subr.mxu0 0.0
      %1019 = vmatpush2.msra.mxu0 0.0
      %1020 = vmatprep.subr.mxu0 0.0
      %1021 = vmatpush2.msra.mxu0 0.0
      %1022 = vmatprep.mubr.f32.mxu0 0.0
      %1023 = vmatmul.mubr.f32.gmra.mxu0 %v622
      %v1024 = vpop.f32.mrf.mxu0
      %v1025 = vadd.f32 0.0, %v1024
      %v1026 = vpop.f32.mrf.mxu0
      %1027 = vdwg.mxu0
      %1029 = vrot.lane.b32.xlu0 %v1025, 32
      %v1030 = vpop.permute.xlu0 %1029
      %v1032 = vsel %vm867, %v947, %v1030
      %v1033 = vlaneseq
      %v1034 = vshrl.u32 %v1033, 7
      %v1035 = vsub.s32 0, %v1034
      %v1036 = vrot.slane %v957, %v1035
      %v1038 = vsel %vm873, %v1032, 0
      %1040 = vmatprep.subr.mxu0 0.0
      %1041 = vmatpush1.msra.mxu0 0.0
      %1042 = vmatprep.subr.mxu0 0.0
      %1043 = vmatpush1.msra.mxu0 0.0
      %1044 = vmatprep.subr.mxu0 0.0
      %1045 = vmatpush1.msra.mxu0 0.0
      %1046 = vmatprep.subr.mxu0 0.0
      %1047 = vmatpush1.msra.mxu0 0.0
      %1048 = vmatprep.subr.mxu0 0.0
      %1049 = vmatpush1.msra.mxu0 0.0
      %1050 = vmatprep.subr.mxu0 0.0
      %1051 = vmatpush1.msra.mxu0 0.0
      %1052 = vmatprep.subr.mxu0 0.0
      %1053 = vmatpush1.msra.mxu0 0.0
      %1054 = vmatprep.subr.mxu0 0.0
      %1055 = vmatpush1.msra.mxu0 0.0
      %1056 = vmatprep.subr.mxu0 0.0
      %1057 = vmatpush1.msra.mxu0 %v956
      %1058 = vmatprep.subr.mxu0 0.0
      %1059 = vmatpush1.msra.mxu0 %v955
      %1060 = vmatprep.subr.mxu0 0.0
      %1061 = vmatpush1.msra.mxu0 %v954
      %1062 = vmatprep.subr.mxu0 0.0
      %1063 = vmatpush1.msra.mxu0 %v953
      %1064 = vmatprep.subr.mxu0 0.0
      %1065 = vmatpush1.msra.mxu0 %v952
      %1066 = vmatprep.subr.mxu0 0.0
      %1067 = vmatpush1.msra.mxu0 %v951
      %1068 = vmatprep.subr.mxu0 0.0
      %1069 = vmatpush1.msra.mxu0 %v950
      %1070 = vmatprep.subr.mxu0 0.0
      %1071 = vmatpush1.msra.mxu0 %v949
      %1072 = vmatprep.subr.mxu0 0.0
      %1073 = vmatpush2.msra.mxu0 0.0
      %1074 = vmatprep.subr.mxu0 0.0
      %1075 = vmatpush2.msra.mxu0 0.0
      %1076 = vmatprep.subr.mxu0 0.0
      %1077 = vmatpush2.msra.mxu0 0.0
      %1078 = vmatprep.subr.mxu0 0.0
      %1079 = vmatpush2.msra.mxu0 0.0
      %1080 = vmatprep.subr.mxu0 0.0
      %1081 = vmatpush2.msra.mxu0 0.0
      %1082 = vmatprep.subr.mxu0 0.0
      %1083 = vmatpush2.msra.mxu0 0.0
      %1084 = vmatprep.subr.mxu0 0.0
      %1085 = vmatpush2.msra.mxu0 0.0
      %1086 = vmatprep.subr.mxu0 0.0
      %1087 = vmatpush2.msra.mxu0 0.0
      %1088 = vmatprep.subr.mxu0 0.0
      %1089 = vmatpush2.msra.mxu0 0.0
      %1090 = vmatprep.subr.mxu0 0.0
      %1091 = vmatpush2.msra.mxu0 0.0
      %1092 = vmatprep.subr.mxu0 0.0
      %1093 = vmatpush2.msra.mxu0 0.0
      %1094 = vmatprep.subr.mxu0 0.0
      %1095 = vmatpush2.msra.mxu0 0.0
      %1096 = vmatprep.subr.mxu0 0.0
      %1097 = vmatpush2.msra.mxu0 0.0
      %1098 = vmatprep.subr.mxu0 0.0
      %1099 = vmatpush2.msra.mxu0 0.0
      %1100 = vmatprep.subr.mxu0 0.0
      %1101 = vmatpush2.msra.mxu0 0.0
      %1102 = vmatprep.subr.mxu0 0.0
      %1103 = vmatpush2.msra.mxu0 0.0
      %1104 = vmatprep.mubr.f32.mxu0 0.0
      %1105 = vmatmul.mubr.f32.gmra.mxu0 %v1038
      %v1106 = vpop.f32.mrf.mxu0
      %v1107 = vadd.f32 %v1036, %v1106
      %v1108 = vpop.f32.mrf.mxu0
      %1109 = vdwg.mxu0
      %v1110 = vadd.f32 %v1107, %v781
      %v1111 = vmax.f32 %v1110, 0.0
      %s1112 = scalar_lea.vmem %s6, 128
      %v1113 = vld [vmem:[%s1112] sm:$0xff]
      %v1114 = vld [vmem:[%s1112 + $0x8] sm:$0xff]
      %v1115 = vld [vmem:[%s1112 + $0x10] sm:$0xff]
      %v1116 = vld [vmem:[%s1112 + $0x18] sm:$0xff]
      %v1117 = vld [vmem:[%s1112 + $0x20] sm:$0xff]
      %v1118 = vld [vmem:[%s1112 + $0x28] sm:$0xff]
      %v1119 = vld [vmem:[%s1112 + $0x30] sm:$0xff]
      %v1120 = vld [vmem:[%s1112 + $0x38] sm:$0xff]
      %v1121 = vld [vmem:[%s7 + $0x2] sm:$0x1]
      %1122 = vmatprep.subr.mxu0 0.0
      %1123 = vmatpush1.msra.mxu0 0.0
      %1124 = vmatprep.subr.mxu0 0.0
      %1125 = vmatpush1.msra.mxu0 0.0
      %1126 = vmatprep.subr.mxu0 0.0
      %1127 = vmatpush1.msra.mxu0 0.0
      %1128 = vmatprep.subr.mxu0 0.0
      %1129 = vmatpush1.msra.mxu0 0.0
      %1130 = vmatprep.subr.mxu0 0.0
      %1131 = vmatpush1.msra.mxu0 0.0
      %1132 = vmatprep.subr.mxu0 0.0
      %1133 = vmatpush1.msra.mxu0 0.0
      %1134 = vmatprep.subr.mxu0 0.0
      %1135 = vmatpush1.msra.mxu0 0.0
      %1136 = vmatprep.subr.mxu0 0.0
      %1137 = vmatpush1.msra.mxu0 0.0
      %1138 = vmatprep.subr.mxu0 0.0
      %1139 = vmatpush1.msra.mxu0 0.0
      %1140 = vmatprep.subr.mxu0 0.0
      %1141 = vmatpush1.msra.mxu0 0.0
      %1142 = vmatprep.subr.mxu0 0.0
      %1143 = vmatpush1.msra.mxu0 0.0
      %1144 = vmatprep.subr.mxu0 0.0
      %1145 = vmatpush1.msra.mxu0 0.0
      %1146 = vmatprep.subr.mxu0 0.0
      %1147 = vmatpush1.msra.mxu0 0.0
      %1148 = vmatprep.subr.mxu0 0.0
      %1149 = vmatpush1.msra.mxu0 0.0
      %1150 = vmatprep.subr.mxu0 0.0
      %1151 = vmatpush1.msra.mxu0 0.0
      %1152 = vmatprep.subr.mxu0 0.0
      %1153 = vmatpush1.msra.mxu0 %v1111
      %1154 = vmatprep.subr.mxu0 0.0
      %1155 = vmatpush2.msra.mxu0 0.0
      %1156 = vmatprep.subr.mxu0 0.0
      %1157 = vmatpush2.msra.mxu0 0.0
      %1158 = vmatprep.subr.mxu0 0.0
      %1159 = vmatpush2.msra.mxu0 0.0
      %1160 = vmatprep.subr.mxu0 0.0
      %1161 = vmatpush2.msra.mxu0 0.0
      %1162 = vmatprep.subr.mxu0 0.0
      %1163 = vmatpush2.msra.mxu0 0.0
      %1164 = vmatprep.subr.mxu0 0.0
      %1165 = vmatpush2.msra.mxu0 0.0
      %1166 = vmatprep.subr.mxu0 0.0
      %1167 = vmatpush2.msra.mxu0 0.0
      %1168 = vmatprep.subr.mxu0 0.0
      %1169 = vmatpush2.msra.mxu0 0.0
      %1170 = vmatprep.subr.mxu0 0.0
      %1171 = vmatpush2.msra.mxu0 0.0
      %1172 = vmatprep.subr.mxu0 0.0
      %1173 = vmatpush2.msra.mxu0 0.0
      %1174 = vmatprep.subr.mxu0 0.0
      %1175 = vmatpush2.msra.mxu0 0.0
      %1176 = vmatprep.subr.mxu0 0.0
      %1177 = vmatpush2.msra.mxu0 0.0
      %1178 = vmatprep.subr.mxu0 0.0
      %1179 = vmatpush2.msra.mxu0 0.0
      %1180 = vmatprep.subr.mxu0 0.0
      %1181 = vmatpush2.msra.mxu0 0.0
      %1182 = vmatprep.subr.mxu0 0.0
      %1183 = vmatpush2.msra.mxu0 0.0
      %1184 = vmatprep.subr.mxu0 0.0
      %1185 = vmatpush2.msra.mxu0 0.0
      %1186 = vmatprep.mubr.f32.mxu0 0.0
      %1187 = vmatmul.mubr.f32.gmra.mxu0 %v622
      %v1188 = vpop.f32.mrf.mxu0
      %v1189 = vadd.f32 0.0, %v1188
      %v1190 = vpop.f32.mrf.mxu0
      %1191 = vdwg.mxu0
      %1193 = vrot.lane.b32.xlu0 %v1189, 32
      %v1194 = vpop.permute.xlu0 %1193
      %v1196 = vsel %vm867, %v1111, %v1194
      %v1197 = vlaneseq
      %v1198 = vshrl.u32 %v1197, 7
      %v1199 = vsub.s32 0, %v1198
      %v1200 = vrot.slane %v1121, %v1199
      %v1202 = vsel %vm873, %v1196, 0
      %1204 = vmatprep.subr.mxu0 0.0
      %1205 = vmatpush1.msra.mxu0 0.0
      %1206 = vmatprep.subr.mxu0 0.0
      %1207 = vmatpush1.msra.mxu0 0.0
      %1208 = vmatprep.subr.mxu0 0.0
      %1209 = vmatpush1.msra.mxu0 0.0
      %1210 = vmatprep.subr.mxu0 0.0
      %1211 = vmatpush1.msra.mxu0 0.0
      %1212 = vmatprep.subr.mxu0 0.0
      %1213 = vmatpush1.msra.mxu0 0.0
      %1214 = vmatprep.subr.mxu0 0.0
      %1215 = vmatpush1.msra.mxu0 0.0
      %1216 = vmatprep.subr.mxu0 0.0
      %1217 = vmatpush1.msra.mxu0 0.0
      %1218 = vmatprep.subr.mxu0 0.0
      %1219 = vmatpush1.msra.mxu0 0.0
      %1220 = vmatprep.subr.mxu0 0.0
      %1221 = vmatpush1.msra.mxu0 %v1120
      %1222 = vmatprep.subr.mxu0 0.0
      %1223 = vmatpush1.msra.mxu0 %v1119
      %1224 = vmatprep.subr.mxu0 0.0
      %1225 = vmatpush1.msra.mxu0 %v1118
      %1226 = vmatprep.subr.mxu0 0.0
      %1227 = vmatpush1.msra.mxu0 %v1117
      %1228 = vmatprep.subr.mxu0 0.0
      %1229 = vmatpush1.msra.mxu0 %v1116
      %1230 = vmatprep.subr.mxu0 0.0
      %1231 = vmatpush1.msra.mxu0 %v1115
      %1232 = vmatprep.subr.mxu0 0.0
      %1233 = vmatpush1.msra.mxu0 %v1114
      %1234 = vmatprep.subr.mxu0 0.0
      %1235 = vmatpush1.msra.mxu0 %v1113
      %1236 = vmatprep.subr.mxu0 0.0
      %1237 = vmatpush2.msra.mxu0 0.0
      %1238 = vmatprep.subr.mxu0 0.0
      %1239 = vmatpush2.msra.mxu0 0.0
      %1240 = vmatprep.subr.mxu0 0.0
      %1241 = vmatpush2.msra.mxu0 0.0
      %1242 = vmatprep.subr.mxu0 0.0
      %1243 = vmatpush2.msra.mxu0 0.0
      %1244 = vmatprep.subr.mxu0 0.0
      %1245 = vmatpush2.msra.mxu0 0.0
      %1246 = vmatprep.subr.mxu0 0.0
      %1247 = vmatpush2.msra.mxu0 0.0
      %1248 = vmatprep.subr.mxu0 0.0
      %1249 = vmatpush2.msra.mxu0 0.0
      %1250 = vmatprep.subr.mxu0 0.0
      %1251 = vmatpush2.msra.mxu0 0.0
      %1252 = vmatprep.subr.mxu0 0.0
      %1253 = vmatpush2.msra.mxu0 0.0
      %1254 = vmatprep.subr.mxu0 0.0
      %1255 = vmatpush2.msra.mxu0 0.0
      %1256 = vmatprep.subr.mxu0 0.0
      %1257 = vmatpush2.msra.mxu0 0.0
      %1258 = vmatprep.subr.mxu0 0.0
      %1259 = vmatpush2.msra.mxu0 0.0
      %1260 = vmatprep.subr.mxu0 0.0
      %1261 = vmatpush2.msra.mxu0 0.0
      %1262 = vmatprep.subr.mxu0 0.0
      %1263 = vmatpush2.msra.mxu0 0.0
      %1264 = vmatprep.subr.mxu0 0.0
      %1265 = vmatpush2.msra.mxu0 0.0
      %1266 = vmatprep.subr.mxu0 0.0
      %1267 = vmatpush2.msra.mxu0 0.0
      %1268 = vmatprep.mubr.f32.mxu0 0.0
      %1269 = vmatmul.mubr.f32.gmra.mxu0 %v1202
      %v1270 = vpop.f32.mrf.mxu0
      %v1271 = vadd.f32 %v1200, %v1270
      %v1272 = vpop.f32.mrf.mxu0
      %1273 = vdwg.mxu0
      %v1274 = vmax.f32 %v1271, 0.0
      %s1275 = scalar_lea.vmem %s6, 192
      %v1276 = vld [vmem:[%s1275] sm:$0xff]
      %v1277 = vld [vmem:[%s1275 + $0x8] sm:$0xff]
      %v1278 = vld [vmem:[%s1275 + $0x10] sm:$0xff]
      %v1279 = vld [vmem:[%s1275 + $0x18] sm:$0xff]
      %v1280 = vld [vmem:[%s1275 + $0x20] sm:$0xff]
      %v1281 = vld [vmem:[%s1275 + $0x28] sm:$0xff]
      %v1282 = vld [vmem:[%s1275 + $0x30] sm:$0xff]
      %v1283 = vld [vmem:[%s1275 + $0x38] sm:$0xff]
      %v1284 = vld [vmem:[%s7 + $0x3] sm:$0x1]
      %1285 = vmatprep.subr.mxu0 0.0
      %1286 = vmatpush1.msra.mxu0 0.0
      %1287 = vmatprep.subr.mxu0 0.0
      %1288 = vmatpush1.msra.mxu0 0.0
      %1289 = vmatprep.subr.mxu0 0.0
      %1290 = vmatpush1.msra.mxu0 0.0
      %1291 = vmatprep.subr.mxu0 0.0
      %1292 = vmatpush1.msra.mxu0 0.0
      %1293 = vmatprep.subr.mxu0 0.0
      %1294 = vmatpush1.msra.mxu0 0.0
      %1295 = vmatprep.subr.mxu0 0.0
      %1296 = vmatpush1.msra.mxu0 0.0
      %1297 = vmatprep.subr.mxu0 0.0
      %1298 = vmatpush1.msra.mxu0 0.0
      %1299 = vmatprep.subr.mxu0 0.0
      %1300 = vmatpush1.msra.mxu0 0.0
      %1301 = vmatprep.subr.mxu0 0.0
      %1302 = vmatpush1.msra.mxu0 0.0
      %1303 = vmatprep.subr.mxu0 0.0
      %1304 = vmatpush1.msra.mxu0 0.0
      %1305 = vmatprep.subr.mxu0 0.0
      %1306 = vmatpush1.msra.mxu0 0.0
      %1307 = vmatprep.subr.mxu0 0.0
      %1308 = vmatpush1.msra.mxu0 0.0
      %1309 = vmatprep.subr.mxu0 0.0
      %1310 = vmatpush1.msra.mxu0 0.0
      %1311 = vmatprep.subr.mxu0 0.0
      %1312 = vmatpush1.msra.mxu0 0.0
      %1313 = vmatprep.subr.mxu0 0.0
      %1314 = vmatpush1.msra.mxu0 0.0
      %1315 = vmatprep.subr.mxu0 0.0
      %1316 = vmatpush1.msra.mxu0 %v1274
      %1317 = vmatprep.subr.mxu0 0.0
      %1318 = vmatpush2.msra.mxu0 0.0
      %1319 = vmatprep.subr.mxu0 0.0
      %1320 = vmatpush2.msra.mxu0 0.0
      %1321 = vmatprep.subr.mxu0 0.0
      %1322 = vmatpush2.msra.mxu0 0.0
      %1323 = vmatprep.subr.mxu0 0.0
      %1324 = vmatpush2.msra.mxu0 0.0
      %1325 = vmatprep.subr.mxu0 0.0
      %1326 = vmatpush2.msra.mxu0 0.0
      %1327 = vmatprep.subr.mxu0 0.0
      %1328 = vmatpush2.msra.mxu0 0.0
      %1329 = vmatprep.subr.mxu0 0.0
      %1330 = vmatpush2.msra.mxu0 0.0
      %1331 = vmatprep.subr.mxu0 0.0
      %1332 = vmatpush2.msra.mxu0 0.0
      %1333 = vmatprep.subr.mxu0 0.0
      %1334 = vmatpush2.msra.mxu0 0.0
      %1335 = vmatprep.subr.mxu0 0.0
      %1336 = vmatpush2.msra.mxu0 0.0
      %1337 = vmatprep.subr.mxu0 0.0
      %1338 = vmatpush2.msra.mxu0 0.0
      %1339 = vmatprep.subr.mxu0 0.0
      %1340 = vmatpush2.msra.mxu0 0.0
      %1341 = vmatprep.subr.mxu0 0.0
      %1342 = vmatpush2.msra.mxu0 0.0
      %1343 = vmatprep.subr.mxu0 0.0
      %1344 = vmatpush2.msra.mxu0 0.0
      %1345 = vmatprep.subr.mxu0 0.0
      %1346 = vmatpush2.msra.mxu0 0.0
      %1347 = vmatprep.subr.mxu0 0.0
      %1348 = vmatpush2.msra.mxu0 0.0
      %1349 = vmatprep.mubr.f32.mxu0 0.0
      %1350 = vmatmul.mubr.f32.gmra.mxu0 %v622
      %v1351 = vpop.f32.mrf.mxu0
      %v1352 = vadd.f32 0.0, %v1351
      %v1353 = vpop.f32.mrf.mxu0
      %1354 = vdwg.mxu0
      %1356 = vrot.lane.b32.xlu0 %v1352, 32
      %v1357 = vpop.permute.xlu0 %1356
      %v1359 = vsel %vm867, %v1274, %v1357
      %v1360 = vlaneseq
      %v1361 = vshrl.u32 %v1360, 7
      %v1362 = vsub.s32 0, %v1361
      %v1363 = vrot.slane %v1284, %v1362
      %v1365 = vsel %vm873, %v1359, 0
      %1367 = vmatprep.subr.mxu0 0.0
      %1368 = vmatpush1.msra.mxu0 0.0
      %1369 = vmatprep.subr.mxu0 0.0
      %1370 = vmatpush1.msra.mxu0 0.0
      %1371 = vmatprep.subr.mxu0 0.0
      %1372 = vmatpush1.msra.mxu0 0.0
      %1373 = vmatprep.subr.mxu0 0.0
      %1374 = vmatpush1.msra.mxu0 0.0
      %1375 = vmatprep.subr.mxu0 0.0
      %1376 = vmatpush1.msra.mxu0 0.0
      %1377 = vmatprep.subr.mxu0 0.0
      %1378 = vmatpush1.msra.mxu0 0.0
      %1379 = vmatprep.subr.mxu0 0.0
      %1380 = vmatpush1.msra.mxu0 0.0
      %1381 = vmatprep.subr.mxu0 0.0
      %1382 = vmatpush1.msra.mxu0 0.0
      %1383 = vmatprep.subr.mxu0 0.0
      %1384 = vmatpush1.msra.mxu0 %v1283
      %1385 = vmatprep.subr.mxu0 0.0
      %1386 = vmatpush1.msra.mxu0 %v1282
      %1387 = vmatprep.subr.mxu0 0.0
      %1388 = vmatpush1.msra.mxu0 %v1281
      %1389 = vmatprep.subr.mxu0 0.0
      %1390 = vmatpush1.msra.mxu0 %v1280
      %1391 = vmatprep.subr.mxu0 0.0
      %1392 = vmatpush1.msra.mxu0 %v1279
      %1393 = vmatprep.subr.mxu0 0.0
      %1394 = vmatpush1.msra.mxu0 %v1278
      %1395 = vmatprep.subr.mxu0 0.0
      %1396 = vmatpush1.msra.mxu0 %v1277
      %1397 = vmatprep.subr.mxu0 0.0
      %1398 = vmatpush1.msra.mxu0 %v1276
      %1399 = vmatprep.subr.mxu0 0.0
      %1400 = vmatpush2.msra.mxu0 0.0
      %1401 = vmatprep.subr.mxu0 0.0
      %1402 = vmatpush2.msra.mxu0 0.0
      %1403 = vmatprep.subr.mxu0 0.0
      %1404 = vmatpush2.msra.mxu0 0.0
      %1405 = vmatprep.subr.mxu0 0.0
      %1406 = vmatpush2.msra.mxu0 0.0
      %1407 = vmatprep.subr.mxu0 0.0
      %1408 = vmatpush2.msra.mxu0 0.0
      %1409 = vmatprep.subr.mxu0 0.0
      %1410 = vmatpush2.msra.mxu0 0.0
      %1411 = vmatprep.subr.mxu0 0.0
      %1412 = vmatpush2.msra.mxu0 0.0
      %1413 = vmatprep.subr.mxu0 0.0
      %1414 = vmatpush2.msra.mxu0 0.0
      %1415 = vmatprep.subr.mxu0 0.0
      %1416 = vmatpush2.msra.mxu0 0.0
      %1417 = vmatprep.subr.mxu0 0.0
      %1418 = vmatpush2.msra.mxu0 0.0
      %1419 = vmatprep.subr.mxu0 0.0
      %1420 = vmatpush2.msra.mxu0 0.0
      %1421 = vmatprep.subr.mxu0 0.0
      %1422 = vmatpush2.msra.mxu0 0.0
      %1423 = vmatprep.subr.mxu0 0.0
      %1424 = vmatpush2.msra.mxu0 0.0
      %1425 = vmatprep.subr.mxu0 0.0
      %1426 = vmatpush2.msra.mxu0 0.0
      %1427 = vmatprep.subr.mxu0 0.0
      %1428 = vmatpush2.msra.mxu0 0.0
      %1429 = vmatprep.subr.mxu0 0.0
      %1430 = vmatpush2.msra.mxu0 0.0
      %1431 = vmatprep.mubr.f32.mxu0 0.0
      %1432 = vmatmul.mubr.f32.gmra.mxu0 %v1365
      %v1433 = vpop.f32.mrf.mxu0
      %v1434 = vadd.f32 %v1363, %v1433
      %v1435 = vpop.f32.mrf.mxu0
      %1436 = vdwg.mxu0
      %v1437 = vadd.f32 %v1434, %v1111
      %v1438 = vmax.f32 %v1437, 0.0
      %s1439 = scalar_lea.vmem %s6, 256
      %v1440 = vld [vmem:[%s1439] sm:$0xff]
      %v1441 = vld [vmem:[%s1439 + $0x8] sm:$0xff]
      %v1442 = vld [vmem:[%s1439 + $0x10] sm:$0xff]
      %v1443 = vld [vmem:[%s1439 + $0x18] sm:$0xff]
      %v1444 = vld [vmem:[%s1439 + $0x20] sm:$0xff]
      %v1445 = vld [vmem:[%s1439 + $0x28] sm:$0xff]
      %v1446 = vld [vmem:[%s1439 + $0x30] sm:$0xff]
      %v1447 = vld [vmem:[%s1439 + $0x38] sm:$0xff]
      %v1448 = vld [vmem:[%s7 + $0x4] sm:$0x1]
      %1449 = vmatprep.subr.mxu0 0.0
      %1450 = vmatpush1.msra.mxu0 0.0
      %1451 = vmatprep.subr.mxu0 0.0
      %1452 = vmatpush1.msra.mxu0 0.0
      %1453 = vmatprep.subr.mxu0 0.0
      %1454 = vmatpush1.msra.mxu0 0.0
      %1455 = vmatprep.subr.mxu0 0.0
      %1456 = vmatpush1.msra.mxu0 0.0
      %1457 = vmatprep.subr.mxu0 0.0
      %1458 = vmatpush1.msra.mxu0 0.0
      %1459 = vmatprep.subr.mxu0 0.0
      %1460 = vmatpush1.msra.mxu0 0.0
      %1461 = vmatprep.subr.mxu0 0.0
      %1462 = vmatpush1.msra.mxu0 0.0
      %1463 = vmatprep.subr.mxu0 0.0
      %1464 = vmatpush1.msra.mxu0 0.0
      %1465 = vmatprep.subr.mxu0 0.0
      %1466 = vmatpush1.msra.mxu0 0.0
      %1467 = vmatprep.subr.mxu0 0.0
      %1468 = vmatpush1.msra.mxu0 0.0
      %1469 = vmatprep.subr.mxu0 0.0
      %1470 = vmatpush1.msra.mxu0 0.0
      %1471 = vmatprep.subr.mxu0 0.0
      %1472 = vmatpush1.msra.mxu0 0.0
      %1473 = vmatprep.subr.mxu0 0.0
      %1474 = vmatpush1.msra.mxu0 0.0
      %1475 = vmatprep.subr.mxu0 0.0
      %1476 = vmatpush1.msra.mxu0 0.0
      %1477 = vmatprep.subr.mxu0 0.0
      %1478 = vmatpush1.msra.mxu0 0.0
      %1479 = vmatprep.subr.mxu0 0.0
      %1480 = vmatpush1.msra.mxu0 %v1438
      %1481 = vmatprep.subr.mxu0 0.0
      %1482 = vmatpush2.msra.mxu0 0.0
      %1483 = vmatprep.subr.mxu0 0.0
      %1484 = vmatpush2.msra.mxu0 0.0
      %1485 = vmatprep.subr.mxu0 0.0
      %1486 = vmatpush2.msra.mxu0 0.0
      %1487 = vmatprep.subr.mxu0 0.0
      %1488 = vmatpush2.msra.mxu0 0.0
      %1489 = vmatprep.subr.mxu0 0.0
      %1490 = vmatpush2.msra.mxu0 0.0
      %1491 = vmatprep.subr.mxu0 0.0
      %1492 = vmatpush2.msra.mxu0 0.0
      %1493 = vmatprep.subr.mxu0 0.0
      %1494 = vmatpush2.msra.mxu0 0.0
      %1495 = vmatprep.subr.mxu0 0.0
      %1496 = vmatpush2.msra.mxu0 0.0
      %1497 = vmatprep.subr.mxu0 0.0
      %1498 = vmatpush2.msra.mxu0 0.0
      %1499 = vmatprep.subr.mxu0 0.0
      %1500 = vmatpush2.msra.mxu0 0.0
      %1501 = vmatprep.subr.mxu0 0.0
      %1502 = vmatpush2.msra.mxu0 0.0
      %1503 = vmatprep.subr.mxu0 0.0
      %1504 = vmatpush2.msra.mxu0 0.0
      %1505 = vmatprep.subr.mxu0 0.0
      %1506 = vmatpush2.msra.mxu0 0.0
      %1507 = vmatprep.subr.mxu0 0.0
      %1508 = vmatpush2.msra.mxu0 0.0
      %1509 = vmatprep.subr.mxu0 0.0
      %1510 = vmatpush2.msra.mxu0 0.0
      %1511 = vmatprep.subr.mxu0 0.0
      %1512 = vmatpush2.msra.mxu0 0.0
      %1513 = vmatprep.mubr.f32.mxu0 0.0
      %1514 = vmatmul.mubr.f32.gmra.mxu0 %v622
      %v1515 = vpop.f32.mrf.mxu0
      %v1516 = vadd.f32 0.0, %v1515
      %v1517 = vpop.f32.mrf.mxu0
      %1518 = vdwg.mxu0
      %1520 = vrot.lane.b32.xlu0 %v1516, 32
      %v1521 = vpop.permute.xlu0 %1520
      %v1523 = vsel %vm867, %v1438, %v1521
      %v1524 = vlaneseq
      %v1525 = vshrl.u32 %v1524, 7
      %v1526 = vsub.s32 0, %v1525
      %v1527 = vrot.slane %v1448, %v1526
      %v1529 = vsel %vm873, %v1523, 0
      %1531 = vmatprep.subr.mxu0 0.0
      %1532 = vmatpush1.msra.mxu0 0.0
      %1533 = vmatprep.subr.mxu0 0.0
      %1534 = vmatpush1.msra.mxu0 0.0
      %1535 = vmatprep.subr.mxu0 0.0
      %1536 = vmatpush1.msra.mxu0 0.0
      %1537 = vmatprep.subr.mxu0 0.0
      %1538 = vmatpush1.msra.mxu0 0.0
      %1539 = vmatprep.subr.mxu0 0.0
      %1540 = vmatpush1.msra.mxu0 0.0
      %1541 = vmatprep.subr.mxu0 0.0
      %1542 = vmatpush1.msra.mxu0 0.0
      %1543 = vmatprep.subr.mxu0 0.0
      %1544 = vmatpush1.msra.mxu0 0.0
      %1545 = vmatprep.subr.mxu0 0.0
      %1546 = vmatpush1.msra.mxu0 0.0
      %1547 = vmatprep.subr.mxu0 0.0
      %1548 = vmatpush1.msra.mxu0 %v1447
      %1549 = vmatprep.subr.mxu0 0.0
      %1550 = vmatpush1.msra.mxu0 %v1446
      %1551 = vmatprep.subr.mxu0 0.0
      %1552 = vmatpush1.msra.mxu0 %v1445
      %1553 = vmatprep.subr.mxu0 0.0
      %1554 = vmatpush1.msra.mxu0 %v1444
      %1555 = vmatprep.subr.mxu0 0.0
      %1556 = vmatpush1.msra.mxu0 %v1443
      %1557 = vmatprep.subr.mxu0 0.0
      %1558 = vmatpush1.msra.mxu0 %v1442
      %1559 = vmatprep.subr.mxu0 0.0
      %1560 = vmatpush1.msra.mxu0 %v1441
      %1561 = vmatprep.subr.mxu0 0.0
      %1562 = vmatpush1.msra.mxu0 %v1440
      %1563 = vmatprep.subr.mxu0 0.0
      %1564 = vmatpush2.msra.mxu0 0.0
      %1565 = vmatprep.subr.mxu0 0.0
      %1566 = vmatpush2.msra.mxu0 0.0
      %1567 = vmatprep.subr.mxu0 0.0
      %1568 = vmatpush2.msra.mxu0 0.0
      %1569 = vmatprep.subr.mxu0 0.0
      %1570 = vmatpush2.msra.mxu0 0.0
      %1571 = vmatprep.subr.mxu0 0.0
      %1572 = vmatpush2.msra.mxu0 0.0
      %1573 = vmatprep.subr.mxu0 0.0
      %1574 = vmatpush2.msra.mxu0 0.0
      %1575 = vmatprep.subr.mxu0 0.0
      %1576 = vmatpush2.msra.mxu0 0.0
      %1577 = vmatprep.subr.mxu0 0.0
      %1578 = vmatpush2.msra.mxu0 0.0
      %1579 = vmatprep.subr.mxu0 0.0
      %1580 = vmatpush2.msra.mxu0 0.0
      %1581 = vmatprep.subr.mxu0 0.0
      %1582 = vmatpush2.msra.mxu0 0.0
      %1583 = vmatprep.subr.mxu0 0.0
      %1584 = vmatpush2.msra.mxu0 0.0
      %1585 = vmatprep.subr.mxu0 0.0
      %1586 = vmatpush2.msra.mxu0 0.0
      %1587 = vmatprep.subr.mxu0 0.0
      %1588 = vmatpush2.msra.mxu0 0.0
      %1589 = vmatprep.subr.mxu0 0.0
      %1590 = vmatpush2.msra.mxu0 0.0
      %1591 = vmatprep.subr.mxu0 0.0
      %1592 = vmatpush2.msra.mxu0 0.0
      %1593 = vmatprep.subr.mxu0 0.0
      %1594 = vmatpush2.msra.mxu0 0.0
      %1595 = vmatprep.mubr.f32.mxu0 0.0
      %1596 = vmatmul.mubr.f32.gmra.mxu0 %v1529
      %v1597 = vpop.f32.mrf.mxu0
      %v1598 = vadd.f32 %v1527, %v1597
      %v1599 = vpop.f32.mrf.mxu0
      %1600 = vdwg.mxu0
      %v1601 = vmax.f32 %v1598, 0.0
      %s1602 = scalar_lea.vmem %s6, 320
      %v1603 = vld [vmem:[%s1602] sm:$0xff]
      %v1604 = vld [vmem:[%s1602 + $0x8] sm:$0xff]
      %v1605 = vld [vmem:[%s1602 + $0x10] sm:$0xff]
      %v1606 = vld [vmem:[%s1602 + $0x18] sm:$0xff]
      %v1607 = vld [vmem:[%s1602 + $0x20] sm:$0xff]
      %v1608 = vld [vmem:[%s1602 + $0x28] sm:$0xff]
      %v1609 = vld [vmem:[%s1602 + $0x30] sm:$0xff]
      %v1610 = vld [vmem:[%s1602 + $0x38] sm:$0xff]
      %v1611 = vld [vmem:[%s7 + $0x5] sm:$0x1]
      %1612 = vmatprep.subr.mxu0 0.0
      %1613 = vmatpush1.msra.mxu0 0.0
      %1614 = vmatprep.subr.mxu0 0.0
      %1615 = vmatpush1.msra.mxu0 0.0
      %1616 = vmatprep.subr.mxu0 0.0
      %1617 = vmatpush1.msra.mxu0 0.0
      %1618 = vmatprep.subr.mxu0 0.0
      %1619 = vmatpush1.msra.mxu0 0.0
      %1620 = vmatprep.subr.mxu0 0.0
      %1621 = vmatpush1.msra.mxu0 0.0
      %1622 = vmatprep.subr.mxu0 0.0
      %1623 = vmatpush1.msra.mxu0 0.0
      %1624 = vmatprep.subr.mxu0 0.0
      %1625 = vmatpush1.msra.mxu0 0.0
      %1626 = vmatprep.subr.mxu0 0.0
      %1627 = vmatpush1.msra.mxu0 0.0
      %1628 = vmatprep.subr.mxu0 0.0
      %1629 = vmatpush1.msra.mxu0 0.0
      %1630 = vmatprep.subr.mxu0 0.0
      %1631 = vmatpush1.msra.mxu0 0.0
      %1632 = vmatprep.subr.mxu0 0.0
      %1633 = vmatpush1.msra.mxu0 0.0
      %1634 = vmatprep.subr.mxu0 0.0
      %1635 = vmatpush1.msra.mxu0 0.0
      %1636 = vmatprep.subr.mxu0 0.0
      %1637 = vmatpush1.msra.mxu0 0.0
      %1638 = vmatprep.subr.mxu0 0.0
      %1639 = vmatpush1.msra.mxu0 0.0
      %1640 = vmatprep.subr.mxu0 0.0
      %1641 = vmatpush1.msra.mxu0 0.0
      %1642 = vmatprep.subr.mxu0 0.0
      %1643 = vmatpush1.msra.mxu0 %v1601
      %1644 = vmatprep.subr.mxu0 0.0
      %1645 = vmatpush2.msra.mxu0 0.0
      %1646 = vmatprep.subr.mxu0 0.0
      %1647 = vmatpush2.msra.mxu0 0.0
      %1648 = vmatprep.subr.mxu0 0.0
      %1649 = vmatpush2.msra.mxu0 0.0
      %1650 = vmatprep.subr.mxu0 0.0
      %1651 = vmatpush2.msra.mxu0 0.0
      %1652 = vmatprep.subr.mxu0 0.0
      %1653 = vmatpush2.msra.mxu0 0.0
      %1654 = vmatprep.subr.mxu0 0.0
      %1655 = vmatpush2.msra.mxu0 0.0
      %1656 = vmatprep.subr.mxu0 0.0
      %1657 = vmatpush2.msra.mxu0 0.0
      %1658 = vmatprep.subr.mxu0 0.0
      %1659 = vmatpush2.msra.mxu0 0.0
      %1660 = vmatprep.subr.mxu0 0.0
      %1661 = vmatpush2.msra.mxu0 0.0
      %1662 = vmatprep.subr.mxu0 0.0
      %1663 = vmatpush2.msra.mxu0 0.0
      %1664 = vmatprep.subr.mxu0 0.0
      %1665 = vmatpush2.msra.mxu0 0.0
      %1666 = vmatprep.subr.mxu0 0.0
      %1667 = vmatpush2.msra.mxu0 0.0
      %1668 = vmatprep.subr.mxu0 0.0
      %1669 = vmatpush2.msra.mxu0 0.0
      %1670 = vmatprep.subr.mxu0 0.0
      %1671 = vmatpush2.msra.mxu0 0.0
      %1672 = vmatprep.subr.mxu0 0.0
      %1673 = vmatpush2.msra.mxu0 0.0
      %1674 = vmatprep.subr.mxu0 0.0
      %1675 = vmatpush2.msra.mxu0 0.0
      %1676 = vmatprep.mubr.f32.mxu0 0.0
      %1677 = vmatmul.mubr.f32.gmra.mxu0 %v622
      %v1678 = vpop.f32.mrf.mxu0
      %v1679 = vadd.f32 0.0, %v1678
      %v1680 = vpop.f32.mrf.mxu0
      %1681 = vdwg.mxu0
      %1683 = vrot.lane.b32.xlu0 %v1679, 32
      %v1684 = vpop.permute.xlu0 %1683
      %v1686 = vsel %vm867, %v1601, %v1684
      %v1687 = vlaneseq
      %v1688 = vshrl.u32 %v1687, 7
      %v1689 = vsub.s32 0, %v1688
      %v1690 = vrot.slane %v1611, %v1689
      %v1692 = vsel %vm873, %v1686, 0
      %1694 = vmatprep.subr.mxu0 0.0
      %1695 = vmatpush1.msra.mxu0 0.0
      %1696 = vmatprep.subr.mxu0 0.0
      %1697 = vmatpush1.msra.mxu0 0.0
      %1698 = vmatprep.subr.mxu0 0.0
      %1699 = vmatpush1.msra.mxu0 0.0
      %1700 = vmatprep.subr.mxu0 0.0
      %1701 = vmatpush1.msra.mxu0 0.0
      %1702 = vmatprep.subr.mxu0 0.0
      %1703 = vmatpush1.msra.mxu0 0.0
      %1704 = vmatprep.subr.mxu0 0.0
      %1705 = vmatpush1.msra.mxu0 0.0
      %1706 = vmatprep.subr.mxu0 0.0
      %1707 = vmatpush1.msra.mxu0 0.0
      %1708 = vmatprep.subr.mxu0 0.0
      %1709 = vmatpush1.msra.mxu0 0.0
      %1710 = vmatprep.subr.mxu0 0.0
      %1711 = vmatpush1.msra.mxu0 %v1610
      %1712 = vmatprep.subr.mxu0 0.0
      %1713 = vmatpush1.msra.mxu0 %v1609
      %1714 = vmatprep.subr.mxu0 0.0
      %1715 = vmatpush1.msra.mxu0 %v1608
      %1716 = vmatprep.subr.mxu0 0.0
      %1717 = vmatpush1.msra.mxu0 %v1607
      %1718 = vmatprep.subr.mxu0 0.0
      %1719 = vmatpush1.msra.mxu0 %v1606
      %1720 = vmatprep.subr.mxu0 0.0
      %1721 = vmatpush1.msra.mxu0 %v1605
      %1722 = vmatprep.subr.mxu0 0.0
      %1723 = vmatpush1.msra.mxu0 %v1604
      %1724 = vmatprep.subr.mxu0 0.0
      %1725 = vmatpush1.msra.mxu0 %v1603
      %1726 = vmatprep.subr.mxu0 0.0
      %1727 = vmatpush2.msra.mxu0 0.0
      %1728 = vmatprep.subr.mxu0 0.0
      %1729 = vmatpush2.msra.mxu0 0.0
      %1730 = vmatprep.subr.mxu0 0.0
      %1731 = vmatpush2.msra.mxu0 0.0
      %1732 = vmatprep.subr.mxu0 0.0
      %1733 = vmatpush2.msra.mxu0 0.0
      %1734 = vmatprep.subr.mxu0 0.0
      %1735 = vmatpush2.msra.mxu0 0.0
      %1736 = vmatprep.subr.mxu0 0.0
      %1737 = vmatpush2.msra.mxu0 0.0
      %1738 = vmatprep.subr.mxu0 0.0
      %1739 = vmatpush2.msra.mxu0 0.0
      %1740 = vmatprep.subr.mxu0 0.0
      %1741 = vmatpush2.msra.mxu0 0.0
      %1742 = vmatprep.subr.mxu0 0.0
      %1743 = vmatpush2.msra.mxu0 0.0
      %1744 = vmatprep.subr.mxu0 0.0
      %1745 = vmatpush2.msra.mxu0 0.0
      %1746 = vmatprep.subr.mxu0 0.0
      %1747 = vmatpush2.msra.mxu0 0.0
      %1748 = vmatprep.subr.mxu0 0.0
      %1749 = vmatpush2.msra.mxu0 0.0
      %1750 = vmatprep.subr.mxu0 0.0
      %1751 = vmatpush2.msra.mxu0 0.0
      %1752 = vmatprep.subr.mxu0 0.0
      %1753 = vmatpush2.msra.mxu0 0.0
      %1754 = vmatprep.subr.mxu0 0.0
      %1755 = vmatpush2.msra.mxu0 0.0
      %1756 = vmatprep.subr.mxu0 0.0
      %1757 = vmatpush2.msra.mxu0 0.0
      %1758 = vmatprep.mubr.f32.mxu0 0.0
      %1759 = vmatmul.mubr.f32.gmra.mxu0 %v1692
      %v1760 = vpop.f32.mrf.mxu0
      %v1761 = vadd.f32 %v1690, %v1760
      %v1762 = vpop.f32.mrf.mxu0
      %1763 = vdwg.mxu0
      %v1764 = vadd.f32 %v1761, %v1438
      %v1765 = vmax.f32 %v1764, 0.0
      %s1766 = scalar_lea.vmem %s6, 384
      %v1767 = vld [vmem:[%s1766] sm:$0xff]
      %v1768 = vld [vmem:[%s1766 + $0x8] sm:$0xff]
      %v1769 = vld [vmem:[%s1766 + $0x10] sm:$0xff]
      %v1770 = vld [vmem:[%s1766 + $0x18] sm:$0xff]
      %v1771 = vld [vmem:[%s1766 + $0x20] sm:$0xff]
      %v1772 = vld [vmem:[%s1766 + $0x28] sm:$0xff]
      %v1773 = vld [vmem:[%s1766 + $0x30] sm:$0xff]
      %v1774 = vld [vmem:[%s1766 + $0x38] sm:$0xff]
      %v1775 = vld [vmem:[%s7 + $0x6] sm:$0x1]
      %1776 = vmatprep.subr.mxu0 0.0
      %1777 = vmatpush1.msra.mxu0 0.0
      %1778 = vmatprep.subr.mxu0 0.0
      %1779 = vmatpush1.msra.mxu0 0.0
      %1780 = vmatprep.subr.mxu0 0.0
      %1781 = vmatpush1.msra.mxu0 0.0
      %1782 = vmatprep.subr.mxu0 0.0
      %1783 = vmatpush1.msra.mxu0 0.0
      %1784 = vmatprep.subr.mxu0 0.0
      %1785 = vmatpush1.msra.mxu0 0.0
      %1786 = vmatprep.subr.mxu0 0.0
      %1787 = vmatpush1.msra.mxu0 0.0
      %1788 = vmatprep.subr.mxu0 0.0
      %1789 = vmatpush1.msra.mxu0 0.0
      %1790 = vmatprep.subr.mxu0 0.0
      %1791 = vmatpush1.msra.mxu0 0.0
      %1792 = vmatprep.subr.mxu0 0.0
      %1793 = vmatpush1.msra.mxu0 0.0
      %1794 = vmatprep.subr.mxu0 0.0
      %1795 = vmatpush1.msra.mxu0 0.0
      %1796 = vmatprep.subr.mxu0 0.0
      %1797 = vmatpush1.msra.mxu0 0.0
      %1798 = vmatprep.subr.mxu0 0.0
      %1799 = vmatpush1.msra.mxu0 0.0
      %1800 = vmatprep.subr.mxu0 0.0
      %1801 = vmatpush1.msra.mxu0 0.0
      %1802 = vmatprep.subr.mxu0 0.0
      %1803 = vmatpush1.msra.mxu0 0.0
      %1804 = vmatprep.subr.mxu0 0.0
      %1805 = vmatpush1.msra.mxu0 0.0
      %1806 = vmatprep.subr.mxu0 0.0
      %1807 = vmatpush1.msra.mxu0 %v1765
      %1808 = vmatprep.subr.mxu0 0.0
      %1809 = vmatpush2.msra.mxu0 0.0
      %1810 = vmatprep.subr.mxu0 0.0
      %1811 = vmatpush2.msra.mxu0 0.0
      %1812 = vmatprep.subr.mxu0 0.0
      %1813 = vmatpush2.msra.mxu0 0.0
      %1814 = vmatprep.subr.mxu0 0.0
      %1815 = vmatpush2.msra.mxu0 0.0
      %1816 = vmatprep.subr.mxu0 0.0
      %1817 = vmatpush2.msra.mxu0 0.0
      %1818 = vmatprep.subr.mxu0 0.0
      %1819 = vmatpush2.msra.mxu0 0.0
      %1820 = vmatprep.subr.mxu0 0.0
      %1821 = vmatpush2.msra.mxu0 0.0
      %1822 = vmatprep.subr.mxu0 0.0
      %1823 = vmatpush2.msra.mxu0 0.0
      %1824 = vmatprep.subr.mxu0 0.0
      %1825 = vmatpush2.msra.mxu0 0.0
      %1826 = vmatprep.subr.mxu0 0.0
      %1827 = vmatpush2.msra.mxu0 0.0
      %1828 = vmatprep.subr.mxu0 0.0
      %1829 = vmatpush2.msra.mxu0 0.0
      %1830 = vmatprep.subr.mxu0 0.0
      %1831 = vmatpush2.msra.mxu0 0.0
      %1832 = vmatprep.subr.mxu0 0.0
      %1833 = vmatpush2.msra.mxu0 0.0
      %1834 = vmatprep.subr.mxu0 0.0
      %1835 = vmatpush2.msra.mxu0 0.0
      %1836 = vmatprep.subr.mxu0 0.0
      %1837 = vmatpush2.msra.mxu0 0.0
      %1838 = vmatprep.subr.mxu0 0.0
      %1839 = vmatpush2.msra.mxu0 0.0
      %1840 = vmatprep.mubr.f32.mxu0 0.0
      %1841 = vmatmul.mubr.f32.gmra.mxu0 %v622
      %v1842 = vpop.f32.mrf.mxu0
      %v1843 = vadd.f32 0.0, %v1842
      %v1844 = vpop.f32.mrf.mxu0
      %1845 = vdwg.mxu0
      %1847 = vrot.lane.b32.xlu0 %v1843, 32
      %v1848 = vpop.permute.xlu0 %1847
      %v1850 = vsel %vm867, %v1765, %v1848
      %v1851 = vlaneseq
      %v1852 = vshrl.u32 %v1851, 7
      %v1853 = vsub.s32 0, %v1852
      %v1854 = vrot.slane %v1775, %v1853
      %v1856 = vsel %vm873, %v1850, 0
      %1858 = vmatprep.subr.mxu0 0.0
      %1859 = vmatpush1.msra.mxu0 0.0
      %1860 = vmatprep.subr.mxu0 0.0
      %1861 = vmatpush1.msra.mxu0 0.0
      %1862 = vmatprep.subr.mxu0 0.0
      %1863 = vmatpush1.msra.mxu0 0.0
      %1864 = vmatprep.subr.mxu0 0.0
      %1865 = vmatpush1.msra.mxu0 0.0
      %1866 = vmatprep.subr.mxu0 0.0
      %1867 = vmatpush1.msra.mxu0 0.0
      %1868 = vmatprep.subr.mxu0 0.0
      %1869 = vmatpush1.msra.mxu0 0.0
      %1870 = vmatprep.subr.mxu0 0.0
      %1871 = vmatpush1.msra.mxu0 0.0
      %1872 = vmatprep.subr.mxu0 0.0
      %1873 = vmatpush1.msra.mxu0 0.0
      %1874 = vmatprep.subr.mxu0 0.0
      %1875 = vmatpush1.msra.mxu0 %v1774
      %1876 = vmatprep.subr.mxu0 0.0
      %1877 = vmatpush1.msra.mxu0 %v1773
      %1878 = vmatprep.subr.mxu0 0.0
      %1879 = vmatpush1.msra.mxu0 %v1772
      %1880 = vmatprep.subr.mxu0 0.0
      %1881 = vmatpush1.msra.mxu0 %v1771
      %1882 = vmatprep.subr.mxu0 0.0
      %1883 = vmatpush1.msra.mxu0 %v1770
      %1884 = vmatprep.subr.mxu0 0.0
      %1885 = vmatpush1.msra.mxu0 %v1769
      %1886 = vmatprep.subr.mxu0 0.0
      %1887 = vmatpush1.msra.mxu0 %v1768
      %1888 = vmatprep.subr.mxu0 0.0
      %1889 = vmatpush1.msra.mxu0 %v1767
      %1890 = vmatprep.subr.mxu0 0.0
      %1891 = vmatpush2.msra.mxu0 0.0
      %1892 = vmatprep.subr.mxu0 0.0
      %1893 = vmatpush2.msra.mxu0 0.0
      %1894 = vmatprep.subr.mxu0 0.0
      %1895 = vmatpush2.msra.mxu0 0.0
      %1896 = vmatprep.subr.mxu0 0.0
      %1897 = vmatpush2.msra.mxu0 0.0
      %1898 = vmatprep.subr.mxu0 0.0
      %1899 = vmatpush2.msra.mxu0 0.0
      %1900 = vmatprep.subr.mxu0 0.0
      %1901 = vmatpush2.msra.mxu0 0.0
      %1902 = vmatprep.subr.mxu0 0.0
      %1903 = vmatpush2.msra.mxu0 0.0
      %1904 = vmatprep.subr.mxu0 0.0
      %1905 = vmatpush2.msra.mxu0 0.0
      %1906 = vmatprep.subr.mxu0 0.0
      %1907 = vmatpush2.msra.mxu0 0.0
      %1908 = vmatprep.subr.mxu0 0.0
      %1909 = vmatpush2.msra.mxu0 0.0
      %1910 = vmatprep.subr.mxu0 0.0
      %1911 = vmatpush2.msra.mxu0 0.0
      %1912 = vmatprep.subr.mxu0 0.0
      %1913 = vmatpush2.msra.mxu0 0.0
      %1914 = vmatprep.subr.mxu0 0.0
      %1915 = vmatpush2.msra.mxu0 0.0
      %1916 = vmatprep.subr.mxu0 0.0
      %1917 = vmatpush2.msra.mxu0 0.0
      %1918 = vmatprep.subr.mxu0 0.0
      %1919 = vmatpush2.msra.mxu0 0.0
      %1920 = vmatprep.subr.mxu0 0.0
      %1921 = vmatpush2.msra.mxu0 0.0
      %1922 = vmatprep.mubr.f32.mxu0 0.0
      %1923 = vmatmul.mubr.f32.gmra.mxu0 %v1856
      %v1924 = vpop.f32.mrf.mxu0
      %v1925 = vadd.f32 %v1854, %v1924
      %v1926 = vpop.f32.mrf.mxu0
      %1927 = vdwg.mxu0
      %v1928 = vmax.f32 %v1925, 0.0
      %s1929 = scalar_lea.vmem %s6, 448
      %v1930 = vld [vmem:[%s1929] sm:$0xff]
      %v1931 = vld [vmem:[%s1929 + $0x8] sm:$0xff]
      %v1932 = vld [vmem:[%s1929 + $0x10] sm:$0xff]
      %v1933 = vld [vmem:[%s1929 + $0x18] sm:$0xff]
      %v1934 = vld [vmem:[%s1929 + $0x20] sm:$0xff]
      %v1935 = vld [vmem:[%s1929 + $0x28] sm:$0xff]
      %v1936 = vld [vmem:[%s1929 + $0x30] sm:$0xff]
      %v1937 = vld [vmem:[%s1929 + $0x38] sm:$0xff]
      %v1938 = vld [vmem:[%s7 + $0x7] sm:$0x1]
      %1939 = vmatprep.subr.mxu0 0.0
      %1940 = vmatpush1.msra.mxu0 0.0
      %1941 = vmatprep.subr.mxu0 0.0
      %1942 = vmatpush1.msra.mxu0 0.0
      %1943 = vmatprep.subr.mxu0 0.0
      %1944 = vmatpush1.msra.mxu0 0.0
      %1945 = vmatprep.subr.mxu0 0.0
      %1946 = vmatpush1.msra.mxu0 0.0
      %1947 = vmatprep.subr.mxu0 0.0
      %1948 = vmatpush1.msra.mxu0 0.0
      %1949 = vmatprep.subr.mxu0 0.0
      %1950 = vmatpush1.msra.mxu0 0.0
      %1951 = vmatprep.subr.mxu0 0.0
      %1952 = vmatpush1.msra.mxu0 0.0
      %1953 = vmatprep.subr.mxu0 0.0
      %1954 = vmatpush1.msra.mxu0 0.0
      %1955 = vmatprep.subr.mxu0 0.0
      %1956 = vmatpush1.msra.mxu0 0.0
      %1957 = vmatprep.subr.mxu0 0.0
      %1958 = vmatpush1.msra.mxu0 0.0
      %1959 = vmatprep.subr.mxu0 0.0
      %1960 = vmatpush1.msra.mxu0 0.0
      %1961 = vmatprep.subr.mxu0 0.0
      %1962 = vmatpush1.msra.mxu0 0.0
      %1963 = vmatprep.subr.mxu0 0.0
      %1964 = vmatpush1.msra.mxu0 0.0
      %1965 = vmatprep.subr.mxu0 0.0
      %1966 = vmatpush1.msra.mxu0 0.0
      %1967 = vmatprep.subr.mxu0 0.0
      %1968 = vmatpush1.msra.mxu0 0.0
      %1969 = vmatprep.subr.mxu0 0.0
      %1970 = vmatpush1.msra.mxu0 %v1928
      %1971 = vmatprep.subr.mxu0 0.0
      %1972 = vmatpush2.msra.mxu0 0.0
      %1973 = vmatprep.subr.mxu0 0.0
      %1974 = vmatpush2.msra.mxu0 0.0
      %1975 = vmatprep.subr.mxu0 0.0
      %1976 = vmatpush2.msra.mxu0 0.0
      %1977 = vmatprep.subr.mxu0 0.0
      %1978 = vmatpush2.msra.mxu0 0.0
      %1979 = vmatprep.subr.mxu0 0.0
      %1980 = vmatpush2.msra.mxu0 0.0
      %1981 = vmatprep.subr.mxu0 0.0
      %1982 = vmatpush2.msra.mxu0 0.0
      %1983 = vmatprep.subr.mxu0 0.0
      %1984 = vmatpush2.msra.mxu0 0.0
      %1985 = vmatprep.subr.mxu0 0.0
      %1986 = vmatpush2.msra.mxu0 0.0
      %1987 = vmatprep.subr.mxu0 0.0
      %1988 = vmatpush2.msra.mxu0 0.0
      %1989 = vmatprep.subr.mxu0 0.0
      %1990 = vmatpush2.msra.mxu0 0.0
      %1991 = vmatprep.subr.mxu0 0.0
      %1992 = vmatpush2.msra.mxu0 0.0
      %1993 = vmatprep.subr.mxu0 0.0
      %1994 = vmatpush2.msra.mxu0 0.0
      %1995 = vmatprep.subr.mxu0 0.0
      %1996 = vmatpush2.msra.mxu0 0.0
      %1997 = vmatprep.subr.mxu0 0.0
      %1998 = vmatpush2.msra.mxu0 0.0
      %1999 = vmatprep.subr.mxu0 0.0
      %2000 = vmatpush2.msra.mxu0 0.0
      %2001 = vmatprep.subr.mxu0 0.0
      %2002 = vmatpush2.msra.mxu0 0.0
      %2003 = vmatprep.mubr.f32.mxu0 0.0
      %2004 = vmatmul.mubr.f32.gmra.mxu0 %v622
      %v2005 = vpop.f32.mrf.mxu0
      %v2006 = vadd.f32 0.0, %v2005
      %v2007 = vpop.f32.mrf.mxu0
      %2008 = vdwg.mxu0
      %2010 = vrot.lane.b32.xlu0 %v2006, 32
      %v2011 = vpop.permute.xlu0 %2010
      %v2013 = vsel %vm867, %v1928, %v2011
      %v2014 = vlaneseq
      %v2015 = vshrl.u32 %v2014, 7
      %v2016 = vsub.s32 0, %v2015
      %v2017 = vrot.slane %v1938, %v2016
      %v2019 = vsel %vm873, %v2013, 0
      %2021 = vmatprep.subr.mxu0 0.0
      %2022 = vmatpush1.msra.mxu0 0.0
      %2023 = vmatprep.subr.mxu0 0.0
      %2024 = vmatpush1.msra.mxu0 0.0
      %2025 = vmatprep.subr.mxu0 0.0
      %2026 = vmatpush1.msra.mxu0 0.0
      %2027 = vmatprep.subr.mxu0 0.0
      %2028 = vmatpush1.msra.mxu0 0.0
      %2029 = vmatprep.subr.mxu0 0.0
      %2030 = vmatpush1.msra.mxu0 0.0
      %2031 = vmatprep.subr.mxu0 0.0
      %2032 = vmatpush1.msra.mxu0 0.0
      %2033 = vmatprep.subr.mxu0 0.0
      %2034 = vmatpush1.msra.mxu0 0.0
      %2035 = vmatprep.subr.mxu0 0.0
      %2036 = vmatpush1.msra.mxu0 0.0
      %2037 = vmatprep.subr.mxu0 0.0
      %2038 = vmatpush1.msra.mxu0 %v1937
      %2039 = vmatprep.subr.mxu0 0.0
      %2040 = vmatpush1.msra.mxu0 %v1936
      %2041 = vmatprep.subr.mxu0 0.0
      %2042 = vmatpush1.msra.mxu0 %v1935
      %2043 = vmatprep.subr.mxu0 0.0
      %2044 = vmatpush1.msra.mxu0 %v1934
      %2045 = vmatprep.subr.mxu0 0.0
      %2046 = vmatpush1.msra.mxu0 %v1933
      %2047 = vmatprep.subr.mxu0 0.0
      %2048 = vmatpush1.msra.mxu0 %v1932
      %2049 = vmatprep.subr.mxu0 0.0
      %2050 = vmatpush1.msra.mxu0 %v1931
      %2051 = vmatprep.subr.mxu0 0.0
      %2052 = vmatpush1.msra.mxu0 %v1930
      %2053 = vmatprep.subr.mxu0 0.0
      %2054 = vmatpush2.msra.mxu0 0.0
      %2055 = vmatprep.subr.mxu0 0.0
      %2056 = vmatpush2.msra.mxu0 0.0
      %2057 = vmatprep.subr.mxu0 0.0
      %2058 = vmatpush2.msra.mxu0 0.0
      %2059 = vmatprep.subr.mxu0 0.0
      %2060 = vmatpush2.msra.mxu0 0.0
      %2061 = vmatprep.subr.mxu0 0.0
      %2062 = vmatpush2.msra.mxu0 0.0
      %2063 = vmatprep.subr.mxu0 0.0
      %2064 = vmatpush2.msra.mxu0 0.0
      %2065 = vmatprep.subr.mxu0 0.0
      %2066 = vmatpush2.msra.mxu0 0.0
      %2067 = vmatprep.subr.mxu0 0.0
      %2068 = vmatpush2.msra.mxu0 0.0
      %2069 = vmatprep.subr.mxu0 0.0
      %2070 = vmatpush2.msra.mxu0 0.0
      %2071 = vmatprep.subr.mxu0 0.0
      %2072 = vmatpush2.msra.mxu0 0.0
      %2073 = vmatprep.subr.mxu0 0.0
      %2074 = vmatpush2.msra.mxu0 0.0
      %2075 = vmatprep.subr.mxu0 0.0
      %2076 = vmatpush2.msra.mxu0 0.0
      %2077 = vmatprep.subr.mxu0 0.0
      %2078 = vmatpush2.msra.mxu0 0.0
      %2079 = vmatprep.subr.mxu0 0.0
      %2080 = vmatpush2.msra.mxu0 0.0
      %2081 = vmatprep.subr.mxu0 0.0
      %2082 = vmatpush2.msra.mxu0 0.0
      %2083 = vmatprep.subr.mxu0 0.0
      %2084 = vmatpush2.msra.mxu0 0.0
      %2085 = vmatprep.mubr.f32.mxu0 0.0
      %2086 = vmatmul.mubr.f32.gmra.mxu0 %v2019
      %v2087 = vpop.f32.mrf.mxu0
      %v2088 = vadd.f32 %v2017, %v2087
      %v2089 = vpop.f32.mrf.mxu0
      %2090 = vdwg.mxu0
      %v2091 = vadd.f32 %v2088, %v1765
      %v2092 = vmax.f32 %v2091, 0.0
      %s2093 = scalar_lea.vmem %s6, 512
      %v2094 = vld [vmem:[%s2093] sm:$0xff]
      %v2095 = vld [vmem:[%s2093 + $0x8] sm:$0xff]
      %v2096 = vld [vmem:[%s2093 + $0x10] sm:$0xff]
      %v2097 = vld [vmem:[%s2093 + $0x18] sm:$0xff]
      %v2098 = vld [vmem:[%s2093 + $0x20] sm:$0xff]
      %v2099 = vld [vmem:[%s2093 + $0x28] sm:$0xff]
      %v2100 = vld [vmem:[%s2093 + $0x30] sm:$0xff]
      %v2101 = vld [vmem:[%s2093 + $0x38] sm:$0xff]
      %v2102 = vld [vmem:[%s7 + $0x8] sm:$0x1]
      %2103 = vmatprep.subr.mxu0 0.0
      %2104 = vmatpush1.msra.mxu0 0.0
      %2105 = vmatprep.subr.mxu0 0.0
      %2106 = vmatpush1.msra.mxu0 0.0
      %2107 = vmatprep.subr.mxu0 0.0
      %2108 = vmatpush1.msra.mxu0 0.0
      %2109 = vmatprep.subr.mxu0 0.0
      %2110 = vmatpush1.msra.mxu0 0.0
      %2111 = vmatprep.subr.mxu0 0.0
      %2112 = vmatpush1.msra.mxu0 0.0
      %2113 = vmatprep.subr.mxu0 0.0
      %2114 = vmatpush1.msra.mxu0 0.0
      %2115 = vmatprep.subr.mxu0 0.0
      %2116 = vmatpush1.msra.mxu0 0.0
      %2117 = vmatprep.subr.mxu0 0.0
      %2118 = vmatpush1.msra.mxu0 0.0
      %2119 = vmatprep.subr.mxu0 0.0
      %2120 = vmatpush1.msra.mxu0 0.0
      %2121 = vmatprep.subr.mxu0 0.0
      %2122 = vmatpush1.msra.mxu0 0.0
      %2123 = vmatprep.subr.mxu0 0.0
      %2124 = vmatpush1.msra.mxu0 0.0
      %2125 = vmatprep.subr.mxu0 0.0
      %2126 = vmatpush1.msra.mxu0 0.0
      %2127 = vmatprep.subr.mxu0 0.0
      %2128 = vmatpush1.msra.mxu0 0.0
      %2129 = vmatprep.subr.mxu0 0.0
      %2130 = vmatpush1.msra.mxu0 0.0
      %2131 = vmatprep.subr.mxu0 0.0
      %2132 = vmatpush1.msra.mxu0 0.0
      %2133 = vmatprep.subr.mxu0 0.0
      %2134 = vmatpush1.msra.mxu0 %v2092
      %2135 = vmatprep.subr.mxu0 0.0
      %2136 = vmatpush2.msra.mxu0 0.0
      %2137 = vmatprep.subr.mxu0 0.0
      %2138 = vmatpush2.msra.mxu0 0.0
      %2139 = vmatprep.subr.mxu0 0.0
      %2140 = vmatpush2.msra.mxu0 0.0
      %2141 = vmatprep.subr.mxu0 0.0
      %2142 = vmatpush2.msra.mxu0 0.0
      %2143 = vmatprep.subr.mxu0 0.0
      %2144 = vmatpush2.msra.mxu0 0.0
      %2145 = vmatprep.subr.mxu0 0.0
      %2146 = vmatpush2.msra.mxu0 0.0
      %2147 = vmatprep.subr.mxu0 0.0
      %2148 = vmatpush2.msra.mxu0 0.0
      %2149 = vmatprep.subr.mxu0 0.0
      %2150 = vmatpush2.msra.mxu0 0.0
      %2151 = vmatprep.subr.mxu0 0.0
      %2152 = vmatpush2.msra.mxu0 0.0
      %2153 = vmatprep.subr.mxu0 0.0
      %2154 = vmatpush2.msra.mxu0 0.0
      %2155 = vmatprep.subr.mxu0 0.0
      %2156 = vmatpush2.msra.mxu0 0.0
      %2157 = vmatprep.subr.mxu0 0.0
      %2158 = vmatpush2.msra.mxu0 0.0
      %2159 = vmatprep.subr.mxu0 0.0
      %2160 = vmatpush2.msra.mxu0 0.0
      %2161 = vmatprep.subr.mxu0 0.0
      %2162 = vmatpush2.msra.mxu0 0.0
      %2163 = vmatprep.subr.mxu0 0.0
      %2164 = vmatpush2.msra.mxu0 0.0
      %2165 = vmatprep.subr.mxu0 0.0
      %2166 = vmatpush2.msra.mxu0 0.0
      %2167 = vmatprep.mubr.f32.mxu0 0.0
      %2168 = vmatmul.mubr.f32.gmra.mxu0 %v622
      %v2169 = vpop.f32.mrf.mxu0
      %v2170 = vadd.f32 0.0, %v2169
      %v2171 = vpop.f32.mrf.mxu0
      %2172 = vdwg.mxu0
      %2174 = vrot.lane.b32.xlu0 %v2170, 32
      %v2175 = vpop.permute.xlu0 %2174
      %v2177 = vsel %vm867, %v2092, %v2175
      %v2178 = vlaneseq
      %v2179 = vshrl.u32 %v2178, 7
      %v2180 = vsub.s32 0, %v2179
      %v2181 = vrot.slane %v2102, %v2180
      %v2183 = vsel %vm873, %v2177, 0
      %2185 = vmatprep.subr.mxu0 0.0
      %2186 = vmatpush1.msra.mxu0 0.0
      %2187 = vmatprep.subr.mxu0 0.0
      %2188 = vmatpush1.msra.mxu0 0.0
      %2189 = vmatprep.subr.mxu0 0.0
      %2190 = vmatpush1.msra.mxu0 0.0
      %2191 = vmatprep.subr.mxu0 0.0
      %2192 = vmatpush1.msra.mxu0 0.0
      %2193 = vmatprep.subr.mxu0 0.0
      %2194 = vmatpush1.msra.mxu0 0.0
      %2195 = vmatprep.subr.mxu0 0.0
      %2196 = vmatpush1.msra.mxu0 0.0
      %2197 = vmatprep.subr.mxu0 0.0
      %2198 = vmatpush1.msra.mxu0 0.0
      %2199 = vmatprep.subr.mxu0 0.0
      %2200 = vmatpush1.msra.mxu0 0.0
      %2201 = vmatprep.subr.mxu0 0.0
      %2202 = vmatpush1.msra.mxu0 %v2101
      %2203 = vmatprep.subr.mxu0 0.0
      %2204 = vmatpush1.msra.mxu0 %v2100
      %2205 = vmatprep.subr.mxu0 0.0
      %2206 = vmatpush1.msra.mxu0 %v2099
      %2207 = vmatprep.subr.mxu0 0.0
      %2208 = vmatpush1.msra.mxu0 %v2098
      %2209 = vmatprep.subr.mxu0 0.0
      %2210 = vmatpush1.msra.mxu0 %v2097
      %2211 = vmatprep.subr.mxu0 0.0
      %2212 = vmatpush1.msra.mxu0 %v2096
      %2213 = vmatprep.subr.mxu0 0.0
      %2214 = vmatpush1.msra.mxu0 %v2095
      %2215 = vmatprep.subr.mxu0 0.0
      %2216 = vmatpush1.msra.mxu0 %v2094
      %2217 = vmatprep.subr.mxu0 0.0
      %2218 = vmatpush2.msra.mxu0 0.0
      %2219 = vmatprep.subr.mxu0 0.0
      %2220 = vmatpush2.msra.mxu0 0.0
      %2221 = vmatprep.subr.mxu0 0.0
      %2222 = vmatpush2.msra.mxu0 0.0
      %2223 = vmatprep.subr.mxu0 0.0
      %2224 = vmatpush2.msra.mxu0 0.0
      %2225 = vmatprep.subr.mxu0 0.0
      %2226 = vmatpush2.msra.mxu0 0.0
      %2227 = vmatprep.subr.mxu0 0.0
      %2228 = vmatpush2.msra.mxu0 0.0
      %2229 = vmatprep.subr.mxu0 0.0
      %2230 = vmatpush2.msra.mxu0 0.0
      %2231 = vmatprep.subr.mxu0 0.0
      %2232 = vmatpush2.msra.mxu0 0.0
      %2233 = vmatprep.subr.mxu0 0.0
      %2234 = vmatpush2.msra.mxu0 0.0
      %2235 = vmatprep.subr.mxu0 0.0
      %2236 = vmatpush2.msra.mxu0 0.0
      %2237 = vmatprep.subr.mxu0 0.0
      %2238 = vmatpush2.msra.mxu0 0.0
      %2239 = vmatprep.subr.mxu0 0.0
      %2240 = vmatpush2.msra.mxu0 0.0
      %2241 = vmatprep.subr.mxu0 0.0
      %2242 = vmatpush2.msra.mxu0 0.0
      %2243 = vmatprep.subr.mxu0 0.0
      %2244 = vmatpush2.msra.mxu0 0.0
      %2245 = vmatprep.subr.mxu0 0.0
      %2246 = vmatpush2.msra.mxu0 0.0
      %2247 = vmatprep.subr.mxu0 0.0
      %2248 = vmatpush2.msra.mxu0 0.0
      %2249 = vmatprep.mubr.f32.mxu0 0.0
      %2250 = vmatmul.mubr.f32.gmra.mxu0 %v2183
      %v2251 = vpop.f32.mrf.mxu0
      %v2252 = vadd.f32 %v2181, %v2251
      %v2253 = vpop.f32.mrf.mxu0
      %2254 = vdwg.mxu0
      %v2255 = vmax.f32 %v2252, 0.0
      %s2256 = scalar_lea.vmem %s6, 576
      %v2257 = vld [vmem:[%s2256] sm:$0xff]
      %v2258 = vld [vmem:[%s2256 + $0x8] sm:$0xff]
      %v2259 = vld [vmem:[%s2256 + $0x10] sm:$0xff]
      %v2260 = vld [vmem:[%s2256 + $0x18] sm:$0xff]
      %v2261 = vld [vmem:[%s2256 + $0x20] sm:$0xff]
      %v2262 = vld [vmem:[%s2256 + $0x28] sm:$0xff]
      %v2263 = vld [vmem:[%s2256 + $0x30] sm:$0xff]
      %v2264 = vld [vmem:[%s2256 + $0x38] sm:$0xff]
      %v2265 = vld [vmem:[%s7 + $0x9] sm:$0x1]
      %2266 = vmatprep.subr.mxu0 0.0
      %2267 = vmatpush1.msra.mxu0 0.0
      %2268 = vmatprep.subr.mxu0 0.0
      %2269 = vmatpush1.msra.mxu0 0.0
      %2270 = vmatprep.subr.mxu0 0.0
      %2271 = vmatpush1.msra.mxu0 0.0
      %2272 = vmatprep.subr.mxu0 0.0
      %2273 = vmatpush1.msra.mxu0 0.0
      %2274 = vmatprep.subr.mxu0 0.0
      %2275 = vmatpush1.msra.mxu0 0.0
      %2276 = vmatprep.subr.mxu0 0.0
      %2277 = vmatpush1.msra.mxu0 0.0
      %2278 = vmatprep.subr.mxu0 0.0
      %2279 = vmatpush1.msra.mxu0 0.0
      %2280 = vmatprep.subr.mxu0 0.0
      %2281 = vmatpush1.msra.mxu0 0.0
      %2282 = vmatprep.subr.mxu0 0.0
      %2283 = vmatpush1.msra.mxu0 0.0
      %2284 = vmatprep.subr.mxu0 0.0
      %2285 = vmatpush1.msra.mxu0 0.0
      %2286 = vmatprep.subr.mxu0 0.0
      %2287 = vmatpush1.msra.mxu0 0.0
      %2288 = vmatprep.subr.mxu0 0.0
      %2289 = vmatpush1.msra.mxu0 0.0
      %2290 = vmatprep.subr.mxu0 0.0
      %2291 = vmatpush1.msra.mxu0 0.0
      %2292 = vmatprep.subr.mxu0 0.0
      %2293 = vmatpush1.msra.mxu0 0.0
      %2294 = vmatprep.subr.mxu0 0.0
      %2295 = vmatpush1.msra.mxu0 0.0
      %2296 = vmatprep.subr.mxu0 0.0
      %2297 = vmatpush1.msra.mxu0 %v2255
      %2298 = vmatprep.subr.mxu0 0.0
      %2299 = vmatpush2.msra.mxu0 0.0
      %2300 = vmatprep.subr.mxu0 0.0
      %2301 = vmatpush2.msra.mxu0 0.0
      %2302 = vmatprep.subr.mxu0 0.0
      %2303 = vmatpush2.msra.mxu0 0.0
      %2304 = vmatprep.subr.mxu0 0.0
      %2305 = vmatpush2.msra.mxu0 0.0
      %2306 = vmatprep.subr.mxu0 0.0
      %2307 = vmatpush2.msra.mxu0 0.0
      %2308 = vmatprep.subr.mxu0 0.0
      %2309 = vmatpush2.msra.mxu0 0.0
      %2310 = vmatprep.subr.mxu0 0.0
      %2311 = vmatpush2.msra.mxu0 0.0
      %2312 = vmatprep.subr.mxu0 0.0
      %2313 = vmatpush2.msra.mxu0 0.0
      %2314 = vmatprep.subr.mxu0 0.0
      %2315 = vmatpush2.msra.mxu0 0.0
      %2316 = vmatprep.subr.mxu0 0.0
      %2317 = vmatpush2.msra.mxu0 0.0
      %2318 = vmatprep.subr.mxu0 0.0
      %2319 = vmatpush2.msra.mxu0 0.0
      %2320 = vmatprep.subr.mxu0 0.0
      %2321 = vmatpush2.msra.mxu0 0.0
      %2322 = vmatprep.subr.mxu0 0.0
      %2323 = vmatpush2.msra.mxu0 0.0
      %2324 = vmatprep.subr.mxu0 0.0
      %2325 = vmatpush2.msra.mxu0 0.0
      %2326 = vmatprep.subr.mxu0 0.0
      %2327 = vmatpush2.msra.mxu0 0.0
      %2328 = vmatprep.subr.mxu0 0.0
      %2329 = vmatpush2.msra.mxu0 0.0
      %2330 = vmatprep.mubr.f32.mxu0 0.0
      %2331 = vmatmul.mubr.f32.gmra.mxu0 %v622
      %v2332 = vpop.f32.mrf.mxu0
      %v2333 = vadd.f32 0.0, %v2332
      %v2334 = vpop.f32.mrf.mxu0
      %2335 = vdwg.mxu0
      %2337 = vrot.lane.b32.xlu0 %v2333, 32
      %v2338 = vpop.permute.xlu0 %2337
      %v2340 = vsel %vm867, %v2255, %v2338
      %v2341 = vlaneseq
      %v2342 = vshrl.u32 %v2341, 7
      %v2343 = vsub.s32 0, %v2342
      %v2344 = vrot.slane %v2265, %v2343
      %v2346 = vsel %vm873, %v2340, 0
      %2348 = vmatprep.subr.mxu0 0.0
      %2349 = vmatpush1.msra.mxu0 0.0
      %2350 = vmatprep.subr.mxu0 0.0
      %2351 = vmatpush1.msra.mxu0 0.0
      %2352 = vmatprep.subr.mxu0 0.0
      %2353 = vmatpush1.msra.mxu0 0.0
      %2354 = vmatprep.subr.mxu0 0.0
      %2355 = vmatpush1.msra.mxu0 0.0
      %2356 = vmatprep.subr.mxu0 0.0
      %2357 = vmatpush1.msra.mxu0 0.0
      %2358 = vmatprep.subr.mxu0 0.0
      %2359 = vmatpush1.msra.mxu0 0.0
      %2360 = vmatprep.subr.mxu0 0.0
      %2361 = vmatpush1.msra.mxu0 0.0
      %2362 = vmatprep.subr.mxu0 0.0
      %2363 = vmatpush1.msra.mxu0 0.0
      %2364 = vmatprep.subr.mxu0 0.0
      %2365 = vmatpush1.msra.mxu0 %v2264
      %2366 = vmatprep.subr.mxu0 0.0
      %2367 = vmatpush1.msra.mxu0 %v2263
      %2368 = vmatprep.subr.mxu0 0.0
      %2369 = vmatpush1.msra.mxu0 %v2262
      %2370 = vmatprep.subr.mxu0 0.0
      %2371 = vmatpush1.msra.mxu0 %v2261
      %2372 = vmatprep.subr.mxu0 0.0
      %2373 = vmatpush1.msra.mxu0 %v2260
      %2374 = vmatprep.subr.mxu0 0.0
      %2375 = vmatpush1.msra.mxu0 %v2259
      %2376 = vmatprep.subr.mxu0 0.0
      %2377 = vmatpush1.msra.mxu0 %v2258
      %2378 = vmatprep.subr.mxu0 0.0
      %2379 = vmatpush1.msra.mxu0 %v2257
      %2380 = vmatprep.subr.mxu0 0.0
      %2381 = vmatpush2.msra.mxu0 0.0
      %2382 = vmatprep.subr.mxu0 0.0
      %2383 = vmatpush2.msra.mxu0 0.0
      %2384 = vmatprep.subr.mxu0 0.0
      %2385 = vmatpush2.msra.mxu0 0.0
      %2386 = vmatprep.subr.mxu0 0.0
      %2387 = vmatpush2.msra.mxu0 0.0
      %2388 = vmatprep.subr.mxu0 0.0
      %2389 = vmatpush2.msra.mxu0 0.0
      %2390 = vmatprep.subr.mxu0 0.0
      %2391 = vmatpush2.msra.mxu0 0.0
      %2392 = vmatprep.subr.mxu0 0.0
      %2393 = vmatpush2.msra.mxu0 0.0
      %2394 = vmatprep.subr.mxu0 0.0
      %2395 = vmatpush2.msra.mxu0 0.0
      %2396 = vmatprep.subr.mxu0 0.0
      %2397 = vmatpush2.msra.mxu0 0.0
      %2398 = vmatprep.subr.mxu0 0.0
      %2399 = vmatpush2.msra.mxu0 0.0
      %2400 = vmatprep.subr.mxu0 0.0
      %2401 = vmatpush2.msra.mxu0 0.0
      %2402 = vmatprep.subr.mxu0 0.0
      %2403 = vmatpush2.msra.mxu0 0.0
      %2404 = vmatprep.subr.mxu0 0.0
      %2405 = vmatpush2.msra.mxu0 0.0
      %2406 = vmatprep.subr.mxu0 0.0
      %2407 = vmatpush2.msra.mxu0 0.0
      %2408 = vmatprep.subr.mxu0 0.0
      %2409 = vmatpush2.msra.mxu0 0.0
      %2410 = vmatprep.subr.mxu0 0.0
      %2411 = vmatpush2.msra.mxu0 0.0
      %2412 = vmatprep.mubr.f32.mxu0 0.0
      %2413 = vmatmul.mubr.f32.gmra.mxu0 %v2346
      %v2414 = vpop.f32.mrf.mxu0
      %v2415 = vadd.f32 %v2344, %v2414
      %v2416 = vpop.f32.mrf.mxu0
      %2417 = vdwg.mxu0
      %v2418 = vadd.f32 %v2415, %v2092
      %v2419 = vmax.f32 %v2418, 0.0
      %s2420 = scalar_lea.vmem %s6, 640
      %v2421 = vld [vmem:[%s2420] sm:$0xff]
      %v2422 = vld [vmem:[%s2420 + $0x8] sm:$0xff]
      %v2423 = vld [vmem:[%s2420 + $0x10] sm:$0xff]
      %v2424 = vld [vmem:[%s2420 + $0x18] sm:$0xff]
      %v2425 = vld [vmem:[%s2420 + $0x20] sm:$0xff]
      %v2426 = vld [vmem:[%s2420 + $0x28] sm:$0xff]
      %v2427 = vld [vmem:[%s2420 + $0x30] sm:$0xff]
      %v2428 = vld [vmem:[%s2420 + $0x38] sm:$0xff]
      %v2429 = vld [vmem:[%s7 + $0xa] sm:$0x1]
      %2430 = vmatprep.subr.mxu0 0.0
      %2431 = vmatpush1.msra.mxu0 0.0
      %2432 = vmatprep.subr.mxu0 0.0
      %2433 = vmatpush1.msra.mxu0 0.0
      %2434 = vmatprep.subr.mxu0 0.0
      %2435 = vmatpush1.msra.mxu0 0.0
      %2436 = vmatprep.subr.mxu0 0.0
      %2437 = vmatpush1.msra.mxu0 0.0
      %2438 = vmatprep.subr.mxu0 0.0
      %2439 = vmatpush1.msra.mxu0 0.0
      %2440 = vmatprep.subr.mxu0 0.0
      %2441 = vmatpush1.msra.mxu0 0.0
      %2442 = vmatprep.subr.mxu0 0.0
      %2443 = vmatpush1.msra.mxu0 0.0
      %2444 = vmatprep.subr.mxu0 0.0
      %2445 = vmatpush1.msra.mxu0 0.0
      %2446 = vmatprep.subr.mxu0 0.0
      %2447 = vmatpush1.msra.mxu0 0.0
      %2448 = vmatprep.subr.mxu0 0.0
      %2449 = vmatpush1.msra.mxu0 0.0
      %2450 = vmatprep.subr.mxu0 0.0
      %2451 = vmatpush1.msra.mxu0 0.0
      %2452 = vmatprep.subr.mxu0 0.0
      %2453 = vmatpush1.msra.mxu0 0.0
      %2454 = vmatprep.subr.mxu0 0.0
      %2455 = vmatpush1.msra.mxu0 0.0
      %2456 = vmatprep.subr.mxu0 0.0
      %2457 = vmatpush1.msra.mxu0 0.0
      %2458 = vmatprep.subr.mxu0 0.0
      %2459 = vmatpush1.msra.mxu0 0.0
      %2460 = vmatprep.subr.mxu0 0.0
      %2461 = vmatpush1.msra.mxu0 %v2419
      %2462 = vmatprep.subr.mxu0 0.0
      %2463 = vmatpush2.msra.mxu0 0.0
      %2464 = vmatprep.subr.mxu0 0.0
      %2465 = vmatpush2.msra.mxu0 0.0
      %2466 = vmatprep.subr.mxu0 0.0
      %2467 = vmatpush2.msra.mxu0 0.0
      %2468 = vmatprep.subr.mxu0 0.0
      %2469 = vmatpush2.msra.mxu0 0.0
      %2470 = vmatprep.subr.mxu0 0.0
      %2471 = vmatpush2.msra.mxu0 0.0
      %2472 = vmatprep.subr.mxu0 0.0
      %2473 = vmatpush2.msra.mxu0 0.0
      %2474 = vmatprep.subr.mxu0 0.0
      %2475 = vmatpush2.msra.mxu0 0.0
      %2476 = vmatprep.subr.mxu0 0.0
      %2477 = vmatpush2.msra.mxu0 0.0
      %2478 = vmatprep.subr.mxu0 0.0
      %2479 = vmatpush2.msra.mxu0 0.0
      %2480 = vmatprep.subr.mxu0 0.0
      %2481 = vmatpush2.msra.mxu0 0.0
      %2482 = vmatprep.subr.mxu0 0.0
      %2483 = vmatpush2.msra.mxu0 0.0
      %2484 = vmatprep.subr.mxu0 0.0
      %2485 = vmatpush2.msra.mxu0 0.0
      %2486 = vmatprep.subr.mxu0 0.0
      %2487 = vmatpush2.msra.mxu0 0.0
      %2488 = vmatprep.subr.mxu0 0.0
      %2489 = vmatpush2.msra.mxu0 0.0
      %2490 = vmatprep.subr.mxu0 0.0
      %2491 = vmatpush2.msra.mxu0 0.0
      %2492 = vmatprep.subr.mxu0 0.0
      %2493 = vmatpush2.msra.mxu0 0.0
      %2494 = vmatprep.mubr.f32.mxu0 0.0
      %2495 = vmatmul.mubr.f32.gmra.mxu0 %v622
      %v2496 = vpop.f32.mrf.mxu0
      %v2497 = vadd.f32 0.0, %v2496
      %v2498 = vpop.f32.mrf.mxu0
      %2499 = vdwg.mxu0
      %2501 = vrot.lane.b32.xlu0 %v2497, 32
      %v2502 = vpop.permute.xlu0 %2501
      %v2504 = vsel %vm867, %v2419, %v2502
      %v2505 = vlaneseq
      %v2506 = vshrl.u32 %v2505, 7
      %v2507 = vsub.s32 0, %v2506
      %v2508 = vrot.slane %v2429, %v2507
      %v2510 = vsel %vm873, %v2504, 0
      %2512 = vmatprep.subr.mxu0 0.0
      %2513 = vmatpush1.msra.mxu0 0.0
      %2514 = vmatprep.subr.mxu0 0.0
      %2515 = vmatpush1.msra.mxu0 0.0
      %2516 = vmatprep.subr.mxu0 0.0
      %2517 = vmatpush1.msra.mxu0 0.0
      %2518 = vmatprep.subr.mxu0 0.0
      %2519 = vmatpush1.msra.mxu0 0.0
      %2520 = vmatprep.subr.mxu0 0.0
      %2521 = vmatpush1.msra.mxu0 0.0
      %2522 = vmatprep.subr.mxu0 0.0
      %2523 = vmatpush1.msra.mxu0 0.0
      %2524 = vmatprep.subr.mxu0 0.0
      %2525 = vmatpush1.msra.mxu0 0.0
      %2526 = vmatprep.subr.mxu0 0.0
      %2527 = vmatpush1.msra.mxu0 0.0
      %2528 = vmatprep.subr.mxu0 0.0
      %2529 = vmatpush1.msra.mxu0 %v2428
      %2530 = vmatprep.subr.mxu0 0.0
      %2531 = vmatpush1.msra.mxu0 %v2427
      %2532 = vmatprep.subr.mxu0 0.0
      %2533 = vmatpush1.msra.mxu0 %v2426
      %2534 = vmatprep.subr.mxu0 0.0
      %2535 = vmatpush1.msra.mxu0 %v2425
      %2536 = vmatprep.subr.mxu0 0.0
      %2537 = vmatpush1.msra.mxu0 %v2424
      %2538 = vmatprep.subr.mxu0 0.0
      %2539 = vmatpush1.msra.mxu0 %v2423
      %2540 = vmatprep.subr.mxu0 0.0
      %2541 = vmatpush1.msra.mxu0 %v2422
      %2542 = vmatprep.subr.mxu0 0.0
      %2543 = vmatpush1.msra.mxu0 %v2421
      %2544 = vmatprep.subr.mxu0 0.0
      %2545 = vmatpush2.msra.mxu0 0.0
      %2546 = vmatprep.subr.mxu0 0.0
      %2547 = vmatpush2.msra.mxu0 0.0
      %2548 = vmatprep.subr.mxu0 0.0
      %2549 = vmatpush2.msra.mxu0 0.0
      %2550 = vmatprep.subr.mxu0 0.0
      %2551 = vmatpush2.msra.mxu0 0.0
      %2552 = vmatprep.subr.mxu0 0.0
      %2553 = vmatpush2.msra.mxu0 0.0
      %2554 = vmatprep.subr.mxu0 0.0
      %2555 = vmatpush2.msra.mxu0 0.0
      %2556 = vmatprep.subr.mxu0 0.0
      %2557 = vmatpush2.msra.mxu0 0.0
      %2558 = vmatprep.subr.mxu0 0.0
      %2559 = vmatpush2.msra.mxu0 0.0
      %2560 = vmatprep.subr.mxu0 0.0
      %2561 = vmatpush2.msra.mxu0 0.0
      %2562 = vmatprep.subr.mxu0 0.0
      %2563 = vmatpush2.msra.mxu0 0.0
      %2564 = vmatprep.subr.mxu0 0.0
      %2565 = vmatpush2.msra.mxu0 0.0
      %2566 = vmatprep.subr.mxu0 0.0
      %2567 = vmatpush2.msra.mxu0 0.0
      %2568 = vmatprep.subr.mxu0 0.0
      %2569 = vmatpush2.msra.mxu0 0.0
      %2570 = vmatprep.subr.mxu0 0.0
      %2571 = vmatpush2.msra.mxu0 0.0
      %2572 = vmatprep.subr.mxu0 0.0
      %2573 = vmatpush2.msra.mxu0 0.0
      %2574 = vmatprep.subr.mxu0 0.0
      %2575 = vmatpush2.msra.mxu0 0.0
      %2576 = vmatprep.mubr.f32.mxu0 0.0
      %2577 = vmatmul.mubr.f32.gmra.mxu0 %v2510
      %v2578 = vpop.f32.mrf.mxu0
      %v2579 = vadd.f32 %v2508, %v2578
      %v2580 = vpop.f32.mrf.mxu0
      %2581 = vdwg.mxu0
      %v2582 = vmax.f32 %v2579, 0.0
      %s2583 = scalar_lea.vmem %s6, 704
      %v2584 = vld [vmem:[%s2583] sm:$0xff]
      %v2585 = vld [vmem:[%s2583 + $0x8] sm:$0xff]
      %v2586 = vld [vmem:[%s2583 + $0x10] sm:$0xff]
      %v2587 = vld [vmem:[%s2583 + $0x18] sm:$0xff]
      %v2588 = vld [vmem:[%s2583 + $0x20] sm:$0xff]
      %v2589 = vld [vmem:[%s2583 + $0x28] sm:$0xff]
      %v2590 = vld [vmem:[%s2583 + $0x30] sm:$0xff]
      %v2591 = vld [vmem:[%s2583 + $0x38] sm:$0xff]
      %v2592 = vld [vmem:[%s7 + $0xb] sm:$0x1]
      %2593 = vmatprep.subr.mxu0 0.0
      %2594 = vmatpush1.msra.mxu0 0.0
      %2595 = vmatprep.subr.mxu0 0.0
      %2596 = vmatpush1.msra.mxu0 0.0
      %2597 = vmatprep.subr.mxu0 0.0
      %2598 = vmatpush1.msra.mxu0 0.0
      %2599 = vmatprep.subr.mxu0 0.0
      %2600 = vmatpush1.msra.mxu0 0.0
      %2601 = vmatprep.subr.mxu0 0.0
      %2602 = vmatpush1.msra.mxu0 0.0
      %2603 = vmatprep.subr.mxu0 0.0
      %2604 = vmatpush1.msra.mxu0 0.0
      %2605 = vmatprep.subr.mxu0 0.0
      %2606 = vmatpush1.msra.mxu0 0.0
      %2607 = vmatprep.subr.mxu0 0.0
      %2608 = vmatpush1.msra.mxu0 0.0
      %2609 = vmatprep.subr.mxu0 0.0
      %2610 = vmatpush1.msra.mxu0 0.0
      %2611 = vmatprep.subr.mxu0 0.0
      %2612 = vmatpush1.msra.mxu0 0.0
      %2613 = vmatprep.subr.mxu0 0.0
      %2614 = vmatpush1.msra.mxu0 0.0
      %2615 = vmatprep.subr.mxu0 0.0
      %2616 = vmatpush1.msra.mxu0 0.0
      %2617 = vmatprep.subr.mxu0 0.0
      %2618 = vmatpush1.msra.mxu0 0.0
      %2619 = vmatprep.subr.mxu0 0.0
      %2620 = vmatpush1.msra.mxu0 0.0
      %2621 = vmatprep.subr.mxu0 0.0
      %2622 = vmatpush1.msra.mxu0 0.0
      %2623 = vmatprep.subr.mxu0 0.0
      %2624 = vmatpush1.msra.mxu0 %v2582
      %2625 = vmatprep.subr.mxu0 0.0
      %2626 = vmatpush2.msra.mxu0 0.0
      %2627 = vmatprep.subr.mxu0 0.0
      %2628 = vmatpush2.msra.mxu0 0.0
      %2629 = vmatprep.subr.mxu0 0.0
      %2630 = vmatpush2.msra.mxu0 0.0
      %2631 = vmatprep.subr.mxu0 0.0
      %2632 = vmatpush2.msra.mxu0 0.0
      %2633 = vmatprep.subr.mxu0 0.0
      %2634 = vmatpush2.msra.mxu0 0.0
      %2635 = vmatprep.subr.mxu0 0.0
      %2636 = vmatpush2.msra.mxu0 0.0
      %2637 = vmatprep.subr.mxu0 0.0
      %2638 = vmatpush2.msra.mxu0 0.0
      %2639 = vmatprep.subr.mxu0 0.0
      %2640 = vmatpush2.msra.mxu0 0.0
      %2641 = vmatprep.subr.mxu0 0.0
      %2642 = vmatpush2.msra.mxu0 0.0
      %2643 = vmatprep.subr.mxu0 0.0
      %2644 = vmatpush2.msra.mxu0 0.0
      %2645 = vmatprep.subr.mxu0 0.0
      %2646 = vmatpush2.msra.mxu0 0.0
      %2647 = vmatprep.subr.mxu0 0.0
      %2648 = vmatpush2.msra.mxu0 0.0
      %2649 = vmatprep.subr.mxu0 0.0
      %2650 = vmatpush2.msra.mxu0 0.0
      %2651 = vmatprep.subr.mxu0 0.0
      %2652 = vmatpush2.msra.mxu0 0.0
      %2653 = vmatprep.subr.mxu0 0.0
      %2654 = vmatpush2.msra.mxu0 0.0
      %2655 = vmatprep.subr.mxu0 0.0
      %2656 = vmatpush2.msra.mxu0 0.0
      %2657 = vmatprep.mubr.f32.mxu0 0.0
      %2658 = vmatmul.mubr.f32.gmra.mxu0 %v622
      %v2659 = vpop.f32.mrf.mxu0
      %v2660 = vadd.f32 0.0, %v2659
      %v2661 = vpop.f32.mrf.mxu0
      %2662 = vdwg.mxu0
      %2664 = vrot.lane.b32.xlu0 %v2660, 32
      %v2665 = vpop.permute.xlu0 %2664
      %v2667 = vsel %vm867, %v2582, %v2665
      %v2668 = vlaneseq
      %v2669 = vshrl.u32 %v2668, 7
      %v2670 = vsub.s32 0, %v2669
      %v2671 = vrot.slane %v2592, %v2670
      %v2673 = vsel %vm873, %v2667, 0
      %2675 = vmatprep.subr.mxu0 0.0
      %2676 = vmatpush1.msra.mxu0 0.0
      %2677 = vmatprep.subr.mxu0 0.0
      %2678 = vmatpush1.msra.mxu0 0.0
      %2679 = vmatprep.subr.mxu0 0.0
      %2680 = vmatpush1.msra.mxu0 0.0
      %2681 = vmatprep.subr.mxu0 0.0
      %2682 = vmatpush1.msra.mxu0 0.0
      %2683 = vmatprep.subr.mxu0 0.0
      %2684 = vmatpush1.msra.mxu0 0.0
      %2685 = vmatprep.subr.mxu0 0.0
      %2686 = vmatpush1.msra.mxu0 0.0
      %2687 = vmatprep.subr.mxu0 0.0
      %2688 = vmatpush1.msra.mxu0 0.0
      %2689 = vmatprep.subr.mxu0 0.0
      %2690 = vmatpush1.msra.mxu0 0.0
      %2691 = vmatprep.subr.mxu0 0.0
      %2692 = vmatpush1.msra.mxu0 %v2591
      %2693 = vmatprep.subr.mxu0 0.0
      %2694 = vmatpush1.msra.mxu0 %v2590
      %2695 = vmatprep.subr.mxu0 0.0
      %2696 = vmatpush1.msra.mxu0 %v2589
      %2697 = vmatprep.subr.mxu0 0.0
      %2698 = vmatpush1.msra.mxu0 %v2588
      %2699 = vmatprep.subr.mxu0 0.0
      %2700 = vmatpush1.msra.mxu0 %v2587
      %2701 = vmatprep.subr.mxu0 0.0
      %2702 = vmatpush1.msra.mxu0 %v2586
      %2703 = vmatprep.subr.mxu0 0.0
      %2704 = vmatpush1.msra.mxu0 %v2585
      %2705 = vmatprep.subr.mxu0 0.0
      %2706 = vmatpush1.msra.mxu0 %v2584
      %2707 = vmatprep.subr.mxu0 0.0
      %2708 = vmatpush2.msra.mxu0 0.0
      %2709 = vmatprep.subr.mxu0 0.0
      %2710 = vmatpush2.msra.mxu0 0.0
      %2711 = vmatprep.subr.mxu0 0.0
      %2712 = vmatpush2.msra.mxu0 0.0
      %2713 = vmatprep.subr.mxu0 0.0
      %2714 = vmatpush2.msra.mxu0 0.0
      %2715 = vmatprep.subr.mxu0 0.0
      %2716 = vmatpush2.msra.mxu0 0.0
      %2717 = vmatprep.subr.mxu0 0.0
      %2718 = vmatpush2.msra.mxu0 0.0
      %2719 = vmatprep.subr.mxu0 0.0
      %2720 = vmatpush2.msra.mxu0 0.0
      %2721 = vmatprep.subr.mxu0 0.0
      %2722 = vmatpush2.msra.mxu0 0.0
      %2723 = vmatprep.subr.mxu0 0.0
      %2724 = vmatpush2.msra.mxu0 0.0
      %2725 = vmatprep.subr.mxu0 0.0
      %2726 = vmatpush2.msra.mxu0 0.0
      %2727 = vmatprep.subr.mxu0 0.0
      %2728 = vmatpush2.msra.mxu0 0.0
      %2729 = vmatprep.subr.mxu0 0.0
      %2730 = vmatpush2.msra.mxu0 0.0
      %2731 = vmatprep.subr.mxu0 0.0
      %2732 = vmatpush2.msra.mxu0 0.0
      %2733 = vmatprep.subr.mxu0 0.0
      %2734 = vmatpush2.msra.mxu0 0.0
      %2735 = vmatprep.subr.mxu0 0.0
      %2736 = vmatpush2.msra.mxu0 0.0
      %2737 = vmatprep.subr.mxu0 0.0
      %2738 = vmatpush2.msra.mxu0 0.0
      %2739 = vmatprep.mubr.f32.mxu0 0.0
      %2740 = vmatmul.mubr.f32.gmra.mxu0 %v2673
      %v2741 = vpop.f32.mrf.mxu0
      %v2742 = vadd.f32 %v2671, %v2741
      %v2743 = vpop.f32.mrf.mxu0
      %2744 = vdwg.mxu0
      %v2745 = vadd.f32 %v2742, %v2419
      %v2746 = vmax.f32 %v2745, 0.0
      %v2747 = vld [vmem:[%s8] sm:$0xff]
      %v2748 = vld [vmem:[%s8 + $0x8] sm:$0xff]
      %v2749 = vld [vmem:[%s8 + $0x10] sm:$0xff]
      %v2750 = vld [vmem:[%s8 + $0x18] sm:$0xff]
      %v2751 = vld [vmem:[%s8 + $0x20] sm:$0xff]
      %v2752 = vld [vmem:[%s8 + $0x28] sm:$0xff]
      %v2753 = vld [vmem:[%s8 + $0x30] sm:$0xff]
      %v2754 = vld [vmem:[%s8 + $0x38] sm:$0xff]
      %v2755 = vld [vmem:[%s9] sm:$0x1]
      %2756 = vmatprep.subr.mxu0 0.0
      %2757 = vmatpush1.msra.mxu0 0.0
      %2758 = vmatprep.subr.mxu0 0.0
      %2759 = vmatpush1.msra.mxu0 0.0
      %2760 = vmatprep.subr.mxu0 0.0
      %2761 = vmatpush1.msra.mxu0 0.0
      %2762 = vmatprep.subr.mxu0 0.0
      %2763 = vmatpush1.msra.mxu0 0.0
      %2764 = vmatprep.subr.mxu0 0.0
      %2765 = vmatpush1.msra.mxu0 0.0
      %2766 = vmatprep.subr.mxu0 0.0
      %2767 = vmatpush1.msra.mxu0 0.0
      %2768 = vmatprep.subr.mxu0 0.0
      %2769 = vmatpush1.msra.mxu0 0.0
      %2770 = vmatprep.subr.mxu0 0.0
      %2771 = vmatpush1.msra.mxu0 0.0
      %2772 = vmatprep.subr.mxu0 0.0
      %2773 = vmatpush1.msra.mxu0 0.0
      %2774 = vmatprep.subr.mxu0 0.0
      %2775 = vmatpush1.msra.mxu0 0.0
      %2776 = vmatprep.subr.mxu0 0.0
      %2777 = vmatpush1.msra.mxu0 0.0
      %2778 = vmatprep.subr.mxu0 0.0
      %2779 = vmatpush1.msra.mxu0 0.0
      %2780 = vmatprep.subr.mxu0 0.0
      %2781 = vmatpush1.msra.mxu0 0.0
      %2782 = vmatprep.subr.mxu0 0.0
      %2783 = vmatpush1.msra.mxu0 0.0
      %2784 = vmatprep.subr.mxu0 0.0
      %2785 = vmatpush1.msra.mxu0 0.0
      %2786 = vmatprep.subr.mxu0 0.0
      %2787 = vmatpush1.msra.mxu0 %v2746
      %2788 = vmatprep.subr.mxu0 0.0
      %2789 = vmatpush2.msra.mxu0 0.0
      %2790 = vmatprep.subr.mxu0 0.0
      %2791 = vmatpush2.msra.mxu0 0.0
      %2792 = vmatprep.subr.mxu0 0.0
      %2793 = vmatpush2.msra.mxu0 0.0
      %2794 = vmatprep.subr.mxu0 0.0
      %2795 = vmatpush2.msra.mxu0 0.0
      %2796 = vmatprep.subr.mxu0 0.0
      %2797 = vmatpush2.msra.mxu0 0.0
      %2798 = vmatprep.subr.mxu0 0.0
      %2799 = vmatpush2.msra.mxu0 0.0
      %2800 = vmatprep.subr.mxu0 0.0
      %2801 = vmatpush2.msra.mxu0 0.0
      %2802 = vmatprep.subr.mxu0 0.0
      %2803 = vmatpush2.msra.mxu0 0.0
      %2804 = vmatprep.subr.mxu0 0.0
      %2805 = vmatpush2.msra.mxu0 0.0
      %2806 = vmatprep.subr.mxu0 0.0
      %2807 = vmatpush2.msra.mxu0 0.0
      %2808 = vmatprep.subr.mxu0 0.0
      %2809 = vmatpush2.msra.mxu0 0.0
      %2810 = vmatprep.subr.mxu0 0.0
      %2811 = vmatpush2.msra.mxu0 0.0
      %2812 = vmatprep.subr.mxu0 0.0
      %2813 = vmatpush2.msra.mxu0 0.0
      %2814 = vmatprep.subr.mxu0 0.0
      %2815 = vmatpush2.msra.mxu0 0.0
      %2816 = vmatprep.subr.mxu0 0.0
      %2817 = vmatpush2.msra.mxu0 0.0
      %2818 = vmatprep.subr.mxu0 0.0
      %2819 = vmatpush2.msra.mxu0 0.0
      %2820 = vmatprep.mubr.f32.mxu0 0.0
      %2821 = vmatmul.mubr.f32.gmra.mxu0 %v622
      %v2822 = vpop.f32.mrf.mxu0
      %v2823 = vadd.f32 0.0, %v2822
      %v2824 = vpop.f32.mrf.mxu0
      %2825 = vdwg.mxu0
      %2827 = vrot.lane.b32.xlu0 %v2823, 32
      %v2828 = vpop.permute.xlu0 %2827
      %v2830 = vsel %vm867, %v2746, %v2828
      %v2832 = vlaneseq
      %v2833 = vshrl.u32 %v2832, 7
      %v2834 = vsub.s32 0, %v2833
      %v2835 = vrot.slane %v2755, %v2834
      %v2838 = vsel %vm873, %v2830, 0
      %2840 = vmatprep.subr.mxu0 0.0
      %2841 = vmatpush1.msra.mxu0 0.0
      %2842 = vmatprep.subr.mxu0 0.0
      %2843 = vmatpush1.msra.mxu0 0.0
      %2844 = vmatprep.subr.mxu0 0.0
      %2845 = vmatpush1.msra.mxu0 0.0
      %2846 = vmatprep.subr.mxu0 0.0
      %2847 = vmatpush1.msra.mxu0 0.0
      %2848 = vmatprep.subr.mxu0 0.0
      %2849 = vmatpush1.msra.mxu0 0.0
      %2850 = vmatprep.subr.mxu0 0.0
      %2851 = vmatpush1.msra.mxu0 0.0
      %2852 = vmatprep.subr.mxu0 0.0
      %2853 = vmatpush1.msra.mxu0 0.0
      %2854 = vmatprep.subr.mxu0 0.0
      %2855 = vmatpush1.msra.mxu0 0.0
      %2856 = vmatprep.subr.mxu0 0.0
      %2857 = vmatpush1.msra.mxu0 %v2754
      %2858 = vmatprep.subr.mxu0 0.0
      %2859 = vmatpush1.msra.mxu0 %v2753
      %2860 = vmatprep.subr.mxu0 0.0
      %2861 = vmatpush1.msra.mxu0 %v2752
      %2862 = vmatprep.subr.mxu0 0.0
      %2863 = vmatpush1.msra.mxu0 %v2751
      %2864 = vmatprep.subr.mxu0 0.0
      %2865 = vmatpush1.msra.mxu0 %v2750
      %2866 = vmatprep.subr.mxu0 0.0
      %2867 = vmatpush1.msra.mxu0 %v2749
      %2868 = vmatprep.subr.mxu0 0.0
      %2869 = vmatpush1.msra.mxu0 %v2748
      %2870 = vmatprep.subr.mxu0 0.0
      %2871 = vmatpush1.msra.mxu0 %v2747
      %2872 = vmatprep.subr.mxu0 0.0
      %2873 = vmatpush2.msra.mxu0 0.0
      %2874 = vmatprep.subr.mxu0 0.0
      %2875 = vmatpush2.msra.mxu0 0.0
      %2876 = vmatprep.subr.mxu0 0.0
      %2877 = vmatpush2.msra.mxu0 0.0
      %2878 = vmatprep.subr.mxu0 0.0
      %2879 = vmatpush2.msra.mxu0 0.0
      %2880 = vmatprep.subr.mxu0 0.0
      %2881 = vmatpush2.msra.mxu0 0.0
      %2882 = vmatprep.subr.mxu0 0.0
      %2883 = vmatpush2.msra.mxu0 0.0
      %2884 = vmatprep.subr.mxu0 0.0
      %2885 = vmatpush2.msra.mxu0 0.0
      %2886 = vmatprep.subr.mxu0 0.0
      %2887 = vmatpush2.msra.mxu0 0.0
      %2888 = vmatprep.subr.mxu0 0.0
      %2889 = vmatpush2.msra.mxu0 0.0
      %2890 = vmatprep.subr.mxu0 0.0
      %2891 = vmatpush2.msra.mxu0 0.0
      %2892 = vmatprep.subr.mxu0 0.0
      %2893 = vmatpush2.msra.mxu0 0.0
      %2894 = vmatprep.subr.mxu0 0.0
      %2895 = vmatpush2.msra.mxu0 0.0
      %2896 = vmatprep.subr.mxu0 0.0
      %2897 = vmatpush2.msra.mxu0 0.0
      %2898 = vmatprep.subr.mxu0 0.0
      %2899 = vmatpush2.msra.mxu0 0.0
      %2900 = vmatprep.subr.mxu0 0.0
      %2901 = vmatpush2.msra.mxu0 0.0
      %2902 = vmatprep.subr.mxu0 0.0
      %2903 = vmatpush2.msra.mxu0 0.0
      %2904 = vmatprep.mubr.f32.mxu0 0.0
      %2905 = vmatmul.mubr.f32.gmra.mxu0 %v2838
      %v2906 = vpop.f32.mrf.mxu0
      %v2907 = vadd.f32 %v2835, %v2906
      %v2908 = vpop.f32.mrf.mxu0
      %2909 = vdwg.mxu0
      %v2910 = vld [vmem:[%s10] sm:$0xff]
      %v2911 = vld [vmem:[%s10 + $0x8] sm:$0xff]
      %v2912 = vld [vmem:[%s10 + $0x10] sm:$0xff]
      %v2913 = vld [vmem:[%s10 + $0x18] sm:$0xff]
      %v2914 = vld [vmem:[%s11] sm:$0x1]
      %v2916 = vlaneseq
      %v2917 = vshrl.u32 %v2916, 7
      %v2918 = vsub.s32 0, %v2917
      %v2919 = vrot.slane %v2914, %v2918
      %v2922 = vsel %vm867, %v2907, 0
      %2924 = vmatprep.subr.mxu0 0.0
      %2925 = vmatpush1.msra.mxu0 0.0
      %2926 = vmatprep.subr.mxu0 0.0
      %2927 = vmatpush1.msra.mxu0 0.0
      %2928 = vmatprep.subr.mxu0 0.0
      %2929 = vmatpush1.msra.mxu0 0.0
      %2930 = vmatprep.subr.mxu0 0.0
      %2931 = vmatpush1.msra.mxu0 0.0
      %2932 = vmatprep.subr.mxu0 0.0
      %2933 = vmatpush1.msra.mxu0 0.0
      %2934 = vmatprep.subr.mxu0 0.0
      %2935 = vmatpush1.msra.mxu0 0.0
      %2936 = vmatprep.subr.mxu0 0.0
      %2937 = vmatpush1.msra.mxu0 0.0
      %2938 = vmatprep.subr.mxu0 0.0
      %2939 = vmatpush1.msra.mxu0 0.0
      %2940 = vmatprep.subr.mxu0 0.0
      %2941 = vmatpush1.msra.mxu0 0.0
      %2942 = vmatprep.subr.mxu0 0.0
      %2943 = vmatpush1.msra.mxu0 0.0
      %2944 = vmatprep.subr.mxu0 0.0
      %2945 = vmatpush1.msra.mxu0 0.0
      %2946 = vmatprep.subr.mxu0 0.0
      %2947 = vmatpush1.msra.mxu0 0.0
      %2948 = vmatprep.subr.mxu0 0.0
      %2949 = vmatpush1.msra.mxu0 %v2913
      %2950 = vmatprep.subr.mxu0 0.0
      %2951 = vmatpush1.msra.mxu0 %v2912
      %2952 = vmatprep.subr.mxu0 0.0
      %2953 = vmatpush1.msra.mxu0 %v2911
      %2954 = vmatprep.subr.mxu0 0.0
      %2955 = vmatpush1.msra.mxu0 %v2910
      %2956 = vmatprep.subr.mxu0 0.0
      %2957 = vmatpush2.msra.mxu0 0.0
      %2958 = vmatprep.subr.mxu0 0.0
      %2959 = vmatpush2.msra.mxu0 0.0
      %2960 = vmatprep.subr.mxu0 0.0
      %2961 = vmatpush2.msra.mxu0 0.0
      %2962 = vmatprep.subr.mxu0 0.0
      %2963 = vmatpush2.msra.mxu0 0.0
      %2964 = vmatprep.subr.mxu0 0.0
      %2965 = vmatpush2.msra.mxu0 0.0
      %2966 = vmatprep.subr.mxu0 0.0
      %2967 = vmatpush2.msra.mxu0 0.0
      %2968 = vmatprep.subr.mxu0 0.0
      %2969 = vmatpush2.msra.mxu0 0.0
      %2970 = vmatprep.subr.mxu0 0.0
      %2971 = vmatpush2.msra.mxu0 0.0
      %2972 = vmatprep.subr.mxu0 0.0
      %2973 = vmatpush2.msra.mxu0 0.0
      %2974 = vmatprep.subr.mxu0 0.0
      %2975 = vmatpush2.msra.mxu0 0.0
      %2976 = vmatprep.subr.mxu0 0.0
      %2977 = vmatpush2.msra.mxu0 0.0
      %2978 = vmatprep.subr.mxu0 0.0
      %2979 = vmatpush2.msra.mxu0 0.0
      %2980 = vmatprep.subr.mxu0 0.0
      %2981 = vmatpush2.msra.mxu0 0.0
      %2982 = vmatprep.subr.mxu0 0.0
      %2983 = vmatpush2.msra.mxu0 0.0
      %2984 = vmatprep.subr.mxu0 0.0
      %2985 = vmatpush2.msra.mxu0 0.0
      %2986 = vmatprep.subr.mxu0 0.0
      %2987 = vmatpush2.msra.mxu0 0.0
      %2988 = vmatprep.mubr.f32.mxu0 0.0
      %2989 = vmatmul.mubr.f32.gmra.mxu0 %v2922
      %v2990 = vpop.f32.mrf.mxu0
      %v2991 = vadd.f32 %v2919, %v2990
      %v2992 = vpop.f32.mrf.mxu0
      %2993 = vdwg.mxu0
      %2995 = vset.pattern.permute.xlu0 0
      %2996 = vperm.xlu0 %2995, %v609
      %v2997 = vpop.permute.xlu0 %2996
      %v2999 = vmul.f32 %v2991, %v2997
      %v3000 = vadd.f32 %v464, %v2999
      %3001 = vmatprep.subr.mxu0 0.0
      %3002 = vmatpush1.msra.mxu0 0.0
      %3003 = vmatprep.subr.mxu0 0.0
      %3004 = vmatpush1.msra.mxu0 0.0
      %3005 = vmatprep.subr.mxu0 0.0
      %3006 = vmatpush1.msra.mxu0 0.0
      %3007 = vmatprep.subr.mxu0 0.0
      %3008 = vmatpush1.msra.mxu0 0.0
      %3009 = vmatprep.subr.mxu0 0.0
      %3010 = vmatpush1.msra.mxu0 0.0
      %3011 = vmatprep.subr.mxu0 0.0
      %3012 = vmatpush1.msra.mxu0 0.0
      %3013 = vmatprep.subr.mxu0 0.0
      %3014 = vmatpush1.msra.mxu0 0.0
      %3015 = vmatprep.subr.mxu0 0.0
      %3016 = vmatpush1.msra.mxu0 0.0
      %3017 = vmatprep.subr.mxu0 0.0
      %3018 = vmatpush1.msra.mxu0 0.0
      %3019 = vmatprep.subr.mxu0 0.0
      %3020 = vmatpush1.msra.mxu0 0.0
      %3021 = vmatprep.subr.mxu0 0.0
      %3022 = vmatpush1.msra.mxu0 0.0
      %3023 = vmatprep.subr.mxu0 0.0
      %3024 = vmatpush1.msra.mxu0 0.0
      %3025 = vmatprep.subr.mxu0 0.0
      %3026 = vmatpush1.msra.mxu0 0.0
      %3027 = vmatprep.subr.mxu0 0.0
      %3028 = vmatpush1.msra.mxu0 0.0
      %3029 = vmatprep.subr.mxu0 0.0
      %3030 = vmatpush1.msra.mxu0 0.0
      %3031 = vmatprep.subr.mxu0 0.0
      %3032 = vmatpush1.msra.mxu0 %v2999
      %3033 = vmatprep.subr.mxu0 0.0
      %3034 = vmatpush2.msra.mxu0 0.0
      %3035 = vmatprep.subr.mxu0 0.0
      %3036 = vmatpush2.msra.mxu0 0.0
      %3037 = vmatprep.subr.mxu0 0.0
      %3038 = vmatpush2.msra.mxu0 0.0
      %3039 = vmatprep.subr.mxu0 0.0
      %3040 = vmatpush2.msra.mxu0 0.0
      %3041 = vmatprep.subr.mxu0 0.0
      %3042 = vmatpush2.msra.mxu0 0.0
      %3043 = vmatprep.subr.mxu0 0.0
      %3044 = vmatpush2.msra.mxu0 0.0
      %3045 = vmatprep.subr.mxu0 0.0
      %3046 = vmatpush2.msra.mxu0 0.0
      %3047 = vmatprep.subr.mxu0 0.0
      %3048 = vmatpush2.msra.mxu0 0.0
      %3049 = vmatprep.subr.mxu0 0.0
      %3050 = vmatpush2.msra.mxu0 0.0
      %3051 = vmatprep.subr.mxu0 0.0
      %3052 = vmatpush2.msra.mxu0 0.0
      %3053 = vmatprep.subr.mxu0 0.0
      %3054 = vmatpush2.msra.mxu0 0.0
      %3055 = vmatprep.subr.mxu0 0.0
      %3056 = vmatpush2.msra.mxu0 0.0
      %3057 = vmatprep.subr.mxu0 0.0
      %3058 = vmatpush2.msra.mxu0 0.0
      %3059 = vmatprep.subr.mxu0 0.0
      %3060 = vmatpush2.msra.mxu0 0.0
      %3061 = vmatprep.subr.mxu0 0.0
      %3062 = vmatpush2.msra.mxu0 0.0
      %3063 = vmatprep.subr.mxu0 0.0
      %3064 = vmatpush2.msra.mxu0 0.0
      %3065 = vmatprep.mubr.f32.mxu0 0.0
      %3066 = vmatmul.mubr.f32.gmra.mxu0 %v622
      %v3067 = vpop.f32.mrf.mxu0
      %v3068 = vadd.f32 0.0, %v3067
      %v3069 = vpop.f32.mrf.mxu0
      %3070 = vdwg.mxu0
      %v3071 = vsub.f32 %v2999, %v3068
      %v3072 = vmul.f32 %v3071, %v3071
      %v3073 = vadd.f32 %v3072, 1e-10
      %vm3074 = vcmask 15360
      %v3075 = vsel %vm3074, %v3073, 0.0
      %3076 = vadd.xlane.f32.xlu0 %v3075
      %v3077 = vpop.xlane.xlu0 %3076
      %v3078 = vrsqrt.pop %v3077
      %v3079 = vmul.f32 %v3077, %v3078
      %vm3080 = vcmp.eq.f32.partialorder %v3077, inf
      %v3081 = vsel %vm3080, %v3077, %v3079
      %vm3082 = vcmp.eq.f32.partialorder %v3077, 0.0
      %v3083 = vand.u32 %v3077, 2147483648
      %v3084 = vsel %vm3082, %v3083, %v3081
      %3086 = vrot.lane.b32.xlu0 %v2991, 2
      %v3087 = vpop.permute.xlu0 %3086
      %v3089 = vsel %vm3074, %v3000, %v3087
      %v3090 = vsel %vm615, %v3089, %v3084
      %vm3091 = vcmask 39936
      %3092 = vst.msk [vmem:[%s462] sm:$0xff] %vm3091, %v3090
      %p3093 = scmp.lt.s32.totalorder %s23, 1
      %s3094 = scalar_select %p3093, %s23, 1
      %s3095 = smul.addr %s3094, 8
      %s3096 = scalar_lea.vmem %s12, %s3095
      // Predicated region
      $region69: #{tpu_custom_call.1} parent=67 // pred_check
        %p3097 = pneg %p313
      $region70: #{tpu_custom_call.1} parent=67 // pred_check_branch
        %3099 = sbr.rel (%p3097) target = $region72
      $region71: #{tpu_custom_call.1} parent=67 // pred_region
        _
      $region72: #{tpu_custom_call.1} parent=67 // pred_fallthru
        _
    $region68: #{tpu_custom_call.1} parent=5 // pred_fallthru
      _
    %p3100 = scmp.le.s32.totalorder 2, %s18
    // Predicated region
    $region73: #{tpu_custom_call.1} parent=5 // pred_check
      %p3101 = pneg %p3100
    $region74: #{tpu_custom_call.1} parent=5 // pred_check_branch
      %3103 = sbr.rel (%p3101) target = $region76
    $region75: #{tpu_custom_call.1} parent=5 // pred_region
      %s3104 = ssub.s32 %s18, 2
      // Predicated region
      $region77: #{tpu_custom_call.1} parent=75 // pred_check
        %p3105 = pneg %p319
      $region78: #{tpu_custom_call.1} parent=75 // pred_check_branch
        %3107 = sbr.rel (%p3105) target = $region80
      $region79: #{tpu_custom_call.1} parent=75 // pred_region
        %p3108 = scmp.lt.s32.totalorder %s24, 1
        %s3109 = scalar_select %p3108, %s24, 1
        %s3110 = smul.addr %s3109, 8
        %s3111 = scalar_lea.vmem %s12, %s3110
      $region80: #{tpu_custom_call.1} parent=75 // pred_fallthru
        _
    $region76: #{tpu_custom_call.1} parent=5 // pred_fallthru
      _
  $region6: #{tpu_custom_call.1} parent=0 // loop_footer
    %s22 = sadd.s32 1, %s18
  $region7: #{tpu_custom_call.1} parent=0 // loop_footer_branch
    %17 = sbr.rel target = $region3
  $region8: #{tpu_custom_call.1} parent=0 // loop_exit
    _

</llo_original>
